<compile_context>
chip_gen: v5e
topology: v5e:2x2
jax: 0.10.0
libtpu: 0.0.40
codegen_flags: <defaults>
</compile_context>

<pallas_src>
import functools
import numpy as np

import jax
import jax.numpy as jnp
from jax.experimental import pallas as pl
from jax.experimental.pallas import tpu as pltpu

# ----------------------------- configuration --------------------------------
INPUT_DIM = 16
OUTPUT_DIM = 4
D_MODEL = 64
NHEAD = 4
HEAD_DIM = D_MODEL // NHEAD
NUM_ENC_LAYERS = 8
NUM_DEC_LAYERS = 8
DFF = 128
EPS = 1e-5  # PyTorch LayerNorm default
_ATTN_SCALE = 1.0 / float(np.sqrt(HEAD_DIM))

# Fixed argument order for the fused kernel (matches kernel unpacking below).
PARAM_ORDER = (
    "inp_w", "inp_b",
    "enc_qkv_w", "enc_qkv_b", "enc_ao_w", "enc_ao_b",
    "enc_ln1_g", "enc_ln1_b",
    "enc_w1", "enc_b1", "enc_w2", "enc_b2",
    "enc_ln2_g", "enc_ln2_b",
    "enc_norm_g", "enc_norm_b",
    "dec_sa_qkv_w", "dec_sa_qkv_b", "dec_sa_ao_w", "dec_sa_ao_b",
    "dec_ln1_g", "dec_ln1_b",
    "dec_ca_qkv_w", "dec_ca_qkv_b", "dec_ca_ao_w", "dec_ca_ao_b",
    "dec_ln2_g", "dec_ln2_b",
    "dec_w1", "dec_b1", "dec_w2", "dec_b2",
    "dec_ln3_g", "dec_ln3_b",
    "dec_norm_g", "dec_norm_b",
    "outp_w", "outp_b",
)


# --------------------------- in-kernel helpers --------------------------------
def _layernorm(y, g, b):
    """LayerNorm over the last (feature) axis. g,b: (1, D)."""
    mu = jnp.mean(y, axis=-1, keepdims=True)
    var = jnp.mean(jnp.square(y - mu), axis=-1, keepdims=True)
    return (y - mu) * jax.lax.rsqrt(var + EPS) * g + b


def _attention(q, k, v, out_w, out_b, *, B, S):
    """Multi-head attention on pre-projected q/k/v: (B*S, D_MODEL) each.
    Rows are grouped per batch (row = b*S + s). No masks, dropout=identity."""
    batch_rows = []
    for b in range(B):
        r0 = b * S
        head_ctx = []
        for h in range(NHEAD):
            c0 = h * HEAD_DIM
            q_bh = q[r0:r0 + S, c0:c0 + HEAD_DIM]          # (S, hd)
            k_bh = k[r0:r0 + S, c0:c0 + HEAD_DIM]
            v_bh = v[r0:r0 + S, c0:c0 + HEAD_DIM]
            s_bh = jnp.dot(q_bh, k_bh.T,
                           preferred_element_type=jnp.float32) * _ATTN_SCALE
            s_bh = s_bh - jnp.max(s_bh, axis=-1, keepdims=True)
            p = jnp.exp(s_bh)
            p = p * pl.reciprocal(jnp.sum(p, axis=-1, keepdims=True), approx=True)
            head_ctx.append(jnp.dot(p, v_bh, preferred_element_type=jnp.float32))
        batch_rows.append(jnp.concatenate(head_ctx, axis=-1))  # (S, D_MODEL)
    ctx = jnp.concatenate(batch_rows, axis=0)                  # (B*S, D_MODEL)
    return jnp.dot(ctx, out_w, preferred_element_type=jnp.float32) + out_b


def _ffn(x, w1, b1, w2, b2):
    """linear2(relu(linear1(x))) — ReLU is the nn.Transformer default."""
    h = jnp.dot(x, w1, preferred_element_type=jnp.float32) + b1
    h = jnp.maximum(h, 0.0)
    return jnp.dot(h, w2, preferred_element_type=jnp.float32) + b2


# ------------------------------ fused kernel ----------------------------------
def _transformer_kernel(*refs, B, S):
    (src_ref,
     inp_w, inp_b,
     enc_qkv_w, enc_qkv_b, enc_ao_w, enc_ao_b,
     enc_ln1_g, enc_ln1_b,
     enc_w1, enc_b1, enc_w2, enc_b2,
     enc_ln2_g, enc_ln2_b,
     enc_norm_g, enc_norm_b,
     dec_sa_qkv_w, dec_sa_qkv_b, dec_sa_ao_w, dec_sa_ao_b,
     dec_ln1_g, dec_ln1_b,
     dec_ca_qkv_w, dec_ca_qkv_b, dec_ca_ao_w, dec_ca_ao_b,
     dec_ln2_g, dec_ln2_b,
     dec_w1, dec_b1, dec_w2, dec_b2,
     dec_ln3_g, dec_ln3_b,
     dec_norm_g, dec_norm_b,
     outp_w, outp_b,
     out_ref) = refs

    E = D_MODEL

    # ---- input projection: (B*S, INPUT_DIM) @ (INPUT_DIM, D_MODEL) ----------
    x0 = (jnp.dot(src_ref[...], inp_w[...], preferred_element_type=jnp.float32)
          + inp_b[...])

    # ---------------------------- encoder stack ------------------------------
    def enc_body(l, x):
        qkv = (jnp.dot(x, enc_qkv_w[l], preferred_element_type=jnp.float32)
               + enc_qkv_b[l])                                  # (B*S, 3E)
        sa = _attention(qkv[:, :E], qkv[:, E:2 * E], qkv[:, 2 * E:],
                        enc_ao_w[l], enc_ao_b[l], B=B, S=S)
        x = _layernorm(x + sa, enc_ln1_g[l], enc_ln1_b[l])
        ff = _ffn(x, enc_w1[l], enc_b1[l], enc_w2[l], enc_b2[l])
        x = _layernorm(x + ff, enc_ln2_g[l], enc_ln2_b[l])
        return x

    mem = jax.lax.fori_loop(0, NUM_ENC_LAYERS, enc_body, x0)
    mem = _layernorm(mem, enc_norm_g[...], enc_norm_b[...])

    # ---------------------------- decoder stack ------------------------------
    def dec_body(l, x):
        # self-attention
        qkv = (jnp.dot(x, dec_sa_qkv_w[l], preferred_element_type=jnp.float32)
               + dec_sa_qkv_b[l])
        sa = _attention(qkv[:, :E], qkv[:, E:2 * E], qkv[:, 2 * E:],
                        dec_sa_ao_w[l], dec_sa_ao_b[l], B=B, S=S)
        x = _layernorm(x + sa, dec_ln1_g[l], dec_ln1_b[l])

        # cross-attention: query from decoder state, key/value from memory
        ca_w = dec_ca_qkv_w[l]                                  # (E, 3E)
        ca_b = dec_ca_qkv_b[l]                                  # (1, 3E)
        q = (jnp.dot(x, ca_w[:, :E], preferred_element_type=jnp.float32)
             + ca_b[:, :E])
        kv = (jnp.dot(mem, ca_w[:, E:], preferred_element_type=jnp.float32)
              + ca_b[:, E:])                                    # (B*S, 2E)
        ca = _attention(q, kv[:, :E], kv[:, E:],
                        dec_ca_ao_w[l], dec_ca_ao_b[l], B=B, S=S)
        x = _layernorm(x + ca, dec_ln2_g[l], dec_ln2_b[l])

        # feed-forward
        ff = _ffn(x, dec_w1[l], dec_b1[l], dec_w2[l], dec_b2[l])
        x = _layernorm(x + ff, dec_ln3_g[l], dec_ln3_b[l])
        return x

    y = jax.lax.fori_loop(0, NUM_DEC_LAYERS, dec_body, x0)
    y = _layernorm(y, dec_norm_g[...], dec_norm_b[...])

    # ---- last time-step per batch, then output projection -------------------
    last = jnp.concatenate([y[b * S + S - 1: b * S + S, :] for b in range(B)],
                           axis=0)                              # (B, D_MODEL)
    out_ref[...] = (jnp.dot(last, outp_w[...],
                            preferred_element_type=jnp.float32)
                    + outp_b[...])


# ------------------------------- wrapper --------------------------------------
def forward(src, params):
    """src: (batch, seq, input_dim) -> (batch, output_dim)."""
    B, S, F = src.shape
    kern = functools.partial(_transformer_kernel, B=B, S=S)
    args = (src.reshape(B * S, F),) + tuple(params[name] for name in PARAM_ORDER)
    return pl.pallas_call(
        kern,
        out_shape=jax.ShapeDtypeStruct((B, OUTPUT_DIM), jnp.float32),
        compiler_params=pltpu.CompilerParams(
            vmem_limit_bytes=32 * 1024 * 1024),
    )(*args)


# ----------------------------- parameter init ---------------------------------
def init_params(key):
    """Parameters are stored directly in kernel layout:
       weights as (in, out) (pre-transposed vs. PyTorch Linear),
       per-layer tensors stacked with a leading layer axis,
       biases / LN params as (L, 1, N) (or (1, N) for the non-stacked ones)."""
    keys = iter(jax.random.split(key, 64))

    def w(shape, scale=0.02):
        return (scale * jax.random.normal(next(keys), shape)).astype(jnp.float32)

    def zeros(shape):
        return jnp.zeros(shape, jnp.float32)

    def ones(shape):
        return jnp.ones(shape, jnp.float32)

    E, LE, LD = D_MODEL, NUM_ENC_LAYERS, NUM_DEC_LAYERS
    return dict(
        inp_w=w((INPUT_DIM, E)), inp_b=zeros((1, E)),
        # encoder stack
        enc_qkv_w=w((LE, E, 3 * E)), enc_qkv_b=zeros((LE, 1, 3 * E)),
        enc_ao_w=w((LE, E, E)), enc_ao_b=zeros((LE, 1, E)),
        enc_ln1_g=ones((LE, 1, E)), enc_ln1_b=zeros((LE, 1, E)),
        enc_w1=w((LE, E, DFF)), enc_b1=zeros((LE, 1, DFF)),
        enc_w2=w((LE, DFF, E)), enc_b2=zeros((LE, 1, E)),
        enc_ln2_g=ones((LE, 1, E)), enc_ln2_b=zeros((LE, 1, E)),
        enc_norm_g=ones((1, E)), enc_norm_b=zeros((1, E)),
        # decoder stack
        dec_sa_qkv_w=w((LD, E, 3 * E)), dec_sa_qkv_b=zeros((LD, 1, 3 * E)),
        dec_sa_ao_w=w((LD, E, E)), dec_sa_ao_b=zeros((LD, 1, E)),
        dec_ln1_g=ones((LD, 1, E)), dec_ln1_b=zeros((LD, 1, E)),
        dec_ca_qkv_w=w((LD, E, 3 * E)), dec_ca_qkv_b=zeros((LD, 1, 3 * E)),
        dec_ca_ao_w=w((LD, E, E)), dec_ca_ao_b=zeros((LD, 1, E)),
        dec_ln2_g=ones((LD, 1, E)), dec_ln2_b=zeros((LD, 1, E)),
        dec_w1=w((LD, E, DFF)), dec_b1=zeros((LD, 1, DFF)),
        dec_w2=w((LD, DFF, E)), dec_b2=zeros((LD, 1, E)),
        dec_ln3_g=ones((LD, 1, E)), dec_ln3_b=zeros((LD, 1, E)),
        dec_norm_g=ones((1, E)), dec_norm_b=zeros((1, E)),
        # output projection
        outp_w=w((E, OUTPUT_DIM)), outp_b=zeros((1, OUTPUT_DIM)),
    )


# ---------------------------------- main ---------------------------------------
if __name__ == "__main__":
    key = jax.random.PRNGKey(0)
    pkey, xkey = jax.random.split(key)
    params = init_params(pkey)

    batch, seq = 2, 8
    src = jax.random.normal(xkey, (batch, seq, INPUT_DIM), dtype=jnp.float32)

    y = jax.jit(forward)(src, params)
    y = jax.block_until_ready(y)

    assert y.shape == (batch, OUTPUT_DIM), y.shape
    assert bool(jnp.all(jnp.isfinite(y)))
    print("KERNEL_OK")
</pallas_src>

<mosaic_0001>
module attributes {stable_mosaic.version = 11 : i64} {
  func.func @_transformer_kernel(%arg0: memref<16x16xf32, #tpu.memory_space<vmem>>, %arg1: memref<16x64xf32, #tpu.memory_space<vmem>>, %arg2: memref<1x64xf32, #tpu.memory_space<vmem>>, %arg3: memref<8x64x192xf32, #tpu.memory_space<vmem>>, %arg4: memref<8x1x192xf32, #tpu.memory_space<vmem>>, %arg5: memref<8x64x64xf32, #tpu.memory_space<vmem>>, %arg6: memref<8x1x64xf32, #tpu.memory_space<vmem>>, %arg7: memref<8x1x64xf32, #tpu.memory_space<vmem>>, %arg8: memref<8x1x64xf32, #tpu.memory_space<vmem>>, %arg9: memref<8x64x128xf32, #tpu.memory_space<vmem>>, %arg10: memref<8x1x128xf32, #tpu.memory_space<vmem>>, %arg11: memref<8x128x64xf32, #tpu.memory_space<vmem>>, %arg12: memref<8x1x64xf32, #tpu.memory_space<vmem>>, %arg13: memref<8x1x64xf32, #tpu.memory_space<vmem>>, %arg14: memref<8x1x64xf32, #tpu.memory_space<vmem>>, %arg15: memref<1x64xf32, #tpu.memory_space<vmem>>, %arg16: memref<1x64xf32, #tpu.memory_space<vmem>>, %arg17: memref<8x64x192xf32, #tpu.memory_space<vmem>>, %arg18: memref<8x1x192xf32, #tpu.memory_space<vmem>>, %arg19: memref<8x64x64xf32, #tpu.memory_space<vmem>>, %arg20: memref<8x1x64xf32, #tpu.memory_space<vmem>>, %arg21: memref<8x1x64xf32, #tpu.memory_space<vmem>>, %arg22: memref<8x1x64xf32, #tpu.memory_space<vmem>>, %arg23: memref<8x64x192xf32, #tpu.memory_space<vmem>>, %arg24: memref<8x1x192xf32, #tpu.memory_space<vmem>>, %arg25: memref<8x64x64xf32, #tpu.memory_space<vmem>>, %arg26: memref<8x1x64xf32, #tpu.memory_space<vmem>>, %arg27: memref<8x1x64xf32, #tpu.memory_space<vmem>>, %arg28: memref<8x1x64xf32, #tpu.memory_space<vmem>>, %arg29: memref<8x64x128xf32, #tpu.memory_space<vmem>>, %arg30: memref<8x1x128xf32, #tpu.memory_space<vmem>>, %arg31: memref<8x128x64xf32, #tpu.memory_space<vmem>>, %arg32: memref<8x1x64xf32, #tpu.memory_space<vmem>>, %arg33: memref<8x1x64xf32, #tpu.memory_space<vmem>>, %arg34: memref<8x1x64xf32, #tpu.memory_space<vmem>>, %arg35: memref<1x64xf32, #tpu.memory_space<vmem>>, %arg36: memref<1x64xf32, #tpu.memory_space<vmem>>, %arg37: memref<64x4xf32, #tpu.memory_space<vmem>>, %arg38: memref<1x4xf32, #tpu.memory_space<vmem>>, %arg39: memref<2x4xf32, #tpu.memory_space<vmem>>) attributes {dimension_semantics = [], scalar_prefetch = 0 : i64, scratch_operands = 0 : i64, tpu.core_type = #tpu.core_type<tc>} {
    %c0 = arith.constant 0 : index
    %c0_0 = arith.constant 0 : index
    %0 = vector.load %arg0[%c0, %c0_0] : memref<16x16xf32, #tpu.memory_space<vmem>>, vector<16x16xf32>
    %c0_1 = arith.constant 0 : index
    %c0_2 = arith.constant 0 : index
    %1 = vector.load %arg1[%c0_1, %c0_2] : memref<16x64xf32, #tpu.memory_space<vmem>>, vector<16x64xf32>
    %cst = arith.constant dense<0.000000e+00> : vector<16x64xf32>
    %2 = tpu.matmul %0, %1, %cst {dimension_numbers = #tpu.dot_dimension_numbers<[1], [0], [0], [1], [0, 0, 1, 1], [], []>} : vector<16x16xf32>, vector<16x64xf32>, vector<16x64xf32> -> vector<16x64xf32>
    %c0_3 = arith.constant 0 : index
    %c0_4 = arith.constant 0 : index
    %3 = vector.load %arg2[%c0_3, %c0_4] : memref<1x64xf32, #tpu.memory_space<vmem>>, vector<1x64xf32>
    %4 = vector.broadcast %3 : vector<1x64xf32> to vector<16x64xf32>
    %5 = arith.addf %2, %4 : vector<16x64xf32>
    %c0_i32 = arith.constant 0 : i32
    %c8_i32 = arith.constant 8 : i32
    %6 = arith.addi %c0_i32, %c8_i32 : i32
    %c1_i32 = arith.constant 1 : i32
    %7 = scf.for %arg40 = %c0_i32 to %6 step %c1_i32 iter_args(%arg41 = %5) -> (vector<16x64xf32>)  : i32 {
      %67 = arith.index_cast %arg40 : i32 to index
      %c0_35 = arith.constant 0 : index
      %c0_36 = arith.constant 0 : index
      %68 = vector.load %arg3[%67, %c0_35, %c0_36] : memref<8x64x192xf32, #tpu.memory_space<vmem>>, vector<1x64x192xf32>
      %69 = vector.shape_cast %68 : vector<1x64x192xf32> to vector<64x192xf32>
      %cst_37 = arith.constant dense<0.000000e+00> : vector<16x192xf32>
      %70 = tpu.matmul %arg41, %69, %cst_37 {dimension_numbers = #tpu.dot_dimension_numbers<[1], [0], [0], [1], [0, 0, 1, 1], [], []>} : vector<16x64xf32>, vector<64x192xf32>, vector<16x192xf32> -> vector<16x192xf32>
      %71 = arith.index_cast %arg40 : i32 to index
      %c0_38 = arith.constant 0 : index
      %c0_39 = arith.constant 0 : index
      %72 = vector.load %arg4[%71, %c0_38, %c0_39] : memref<8x1x192xf32, #tpu.memory_space<vmem>>, vector<1x1x192xf32>
      %73 = vector.shape_cast %72 : vector<1x1x192xf32> to vector<1x192xf32>
      %74 = vector.broadcast %73 : vector<1x192xf32> to vector<16x192xf32>
      %75 = arith.addf %70, %74 : vector<16x192xf32>
      %76 = vector.extract_strided_slice %75 {offsets = [0, 0], sizes = [16, 64], strides = [1, 1]} : vector<16x192xf32> to vector<16x64xf32>
      %77 = vector.extract_strided_slice %75 {offsets = [0, 64], sizes = [16, 64], strides = [1, 1]} : vector<16x192xf32> to vector<16x64xf32>
      %78 = vector.extract_strided_slice %75 {offsets = [0, 128], sizes = [16, 64], strides = [1, 1]} : vector<16x192xf32> to vector<16x64xf32>
      %79 = arith.index_cast %arg40 : i32 to index
      %c0_40 = arith.constant 0 : index
      %c0_41 = arith.constant 0 : index
      %80 = vector.load %arg5[%79, %c0_40, %c0_41] : memref<8x64x64xf32, #tpu.memory_space<vmem>>, vector<1x64x64xf32>
      %81 = vector.shape_cast %80 : vector<1x64x64xf32> to vector<64x64xf32>
      %82 = arith.index_cast %arg40 : i32 to index
      %c0_42 = arith.constant 0 : index
      %c0_43 = arith.constant 0 : index
      %83 = vector.load %arg6[%82, %c0_42, %c0_43] : memref<8x1x64xf32, #tpu.memory_space<vmem>>, vector<1x1x64xf32>
      %84 = vector.shape_cast %83 : vector<1x1x64xf32> to vector<1x64xf32>
      %85 = vector.extract_strided_slice %76 {offsets = [0, 0], sizes = [8, 16], strides = [1, 1]} : vector<16x64xf32> to vector<8x16xf32>
      %86 = vector.extract_strided_slice %77 {offsets = [0, 0], sizes = [8, 16], strides = [1, 1]} : vector<16x64xf32> to vector<8x16xf32>
      %87 = vector.extract_strided_slice %78 {offsets = [0, 0], sizes = [8, 16], strides = [1, 1]} : vector<16x64xf32> to vector<8x16xf32>
      %88 = tpu.transpose %86, [1, 0] : vector<8x16xf32> -> vector<16x8xf32>
      %cst_44 = arith.constant dense<0.000000e+00> : vector<8x8xf32>
      %89 = tpu.matmul %85, %88, %cst_44 {dimension_numbers = #tpu.dot_dimension_numbers<[1], [0], [0], [1], [0, 0, 1, 1], [], []>} : vector<8x16xf32>, vector<16x8xf32>, vector<8x8xf32> -> vector<8x8xf32>
      %cst_45 = arith.constant 2.500000e-01 : f32
      %90 = vector.broadcast %cst_45 : f32 to vector<8x8xf32>
      %91 = arith.mulf %89, %90 : vector<8x8xf32>
      %cst_46 = arith.constant dense<0xFF800000> : vector<8xf32>
      %92 = vector.multi_reduction <maximumf>, %91, %cst_46 [1] : vector<8x8xf32> to vector<8xf32>
      %93 = vector.shape_cast %92 : vector<8xf32> to vector<8x1xf32>
      %94 = vector.broadcast %93 : vector<8x1xf32> to vector<8x8xf32>
      %95 = arith.subf %91, %94 : vector<8x8xf32>
      %96 = math.exp %95 : vector<8x8xf32>
      %cst_47 = arith.constant dense<0.000000e+00> : vector<8xf32>
      %97 = vector.multi_reduction <add>, %96, %cst_47 [1] : vector<8x8xf32> to vector<8xf32>
      %98 = vector.shape_cast %97 : vector<8xf32> to vector<8x1xf32>
      %99 = tpu.reciprocal %98 {approx = true} : vector<8x1xf32> -> vector<8x1xf32>
      %100 = vector.broadcast %99 : vector<8x1xf32> to vector<8x8xf32>
      %101 = arith.mulf %96, %100 : vector<8x8xf32>
      %cst_48 = arith.constant dense<0.000000e+00> : vector<8x16xf32>
      %102 = tpu.matmul %101, %87, %cst_48 {dimension_numbers = #tpu.dot_dimension_numbers<[1], [0], [0], [1], [0, 0, 1, 1], [], []>} : vector<8x8xf32>, vector<8x16xf32>, vector<8x16xf32> -> vector<8x16xf32>
      %103 = vector.extract_strided_slice %76 {offsets = [0, 16], sizes = [8, 16], strides = [1, 1]} : vector<16x64xf32> to vector<8x16xf32>
      %104 = vector.extract_strided_slice %77 {offsets = [0, 16], sizes = [8, 16], strides = [1, 1]} : vector<16x64xf32> to vector<8x16xf32>
      %105 = vector.extract_strided_slice %78 {offsets = [0, 16], sizes = [8, 16], strides = [1, 1]} : vector<16x64xf32> to vector<8x16xf32>
      %106 = tpu.transpose %104, [1, 0] : vector<8x16xf32> -> vector<16x8xf32>
      %cst_49 = arith.constant dense<0.000000e+00> : vector<8x8xf32>
      %107 = tpu.matmul %103, %106, %cst_49 {dimension_numbers = #tpu.dot_dimension_numbers<[1], [0], [0], [1], [0, 0, 1, 1], [], []>} : vector<8x16xf32>, vector<16x8xf32>, vector<8x8xf32> -> vector<8x8xf32>
      %cst_50 = arith.constant 2.500000e-01 : f32
      %108 = vector.broadcast %cst_50 : f32 to vector<8x8xf32>
      %109 = arith.mulf %107, %108 : vector<8x8xf32>
      %cst_51 = arith.constant dense<0xFF800000> : vector<8xf32>
      %110 = vector.multi_reduction <maximumf>, %109, %cst_51 [1] : vector<8x8xf32> to vector<8xf32>
      %111 = vector.shape_cast %110 : vector<8xf32> to vector<8x1xf32>
      %112 = vector.broadcast %111 : vector<8x1xf32> to vector<8x8xf32>
      %113 = arith.subf %109, %112 : vector<8x8xf32>
      %114 = math.exp %113 : vector<8x8xf32>
      %cst_52 = arith.constant dense<0.000000e+00> : vector<8xf32>
      %115 = vector.multi_reduction <add>, %114, %cst_52 [1] : vector<8x8xf32> to vector<8xf32>
      %116 = vector.shape_cast %115 : vector<8xf32> to vector<8x1xf32>
      %117 = tpu.reciprocal %116 {approx = true} : vector<8x1xf32> -> vector<8x1xf32>
      %118 = vector.broadcast %117 : vector<8x1xf32> to vector<8x8xf32>
      %119 = arith.mulf %114, %118 : vector<8x8xf32>
      %cst_53 = arith.constant dense<0.000000e+00> : vector<8x16xf32>
      %120 = tpu.matmul %119, %105, %cst_53 {dimension_numbers = #tpu.dot_dimension_numbers<[1], [0], [0], [1], [0, 0, 1, 1], [], []>} : vector<8x8xf32>, vector<8x16xf32>, vector<8x16xf32> -> vector<8x16xf32>
      %121 = vector.extract_strided_slice %76 {offsets = [0, 32], sizes = [8, 16], strides = [1, 1]} : vector<16x64xf32> to vector<8x16xf32>
      %122 = vector.extract_strided_slice %77 {offsets = [0, 32], sizes = [8, 16], strides = [1, 1]} : vector<16x64xf32> to vector<8x16xf32>
      %123 = vector.extract_strided_slice %78 {offsets = [0, 32], sizes = [8, 16], strides = [1, 1]} : vector<16x64xf32> to vector<8x16xf32>
      %124 = tpu.transpose %122, [1, 0] : vector<8x16xf32> -> vector<16x8xf32>
      %cst_54 = arith.constant dense<0.000000e+00> : vector<8x8xf32>
      %125 = tpu.matmul %121, %124, %cst_54 {dimension_numbers = #tpu.dot_dimension_numbers<[1], [0], [0], [1], [0, 0, 1, 1], [], []>} : vector<8x16xf32>, vector<16x8xf32>, vector<8x8xf32> -> vector<8x8xf32>
      %cst_55 = arith.constant 2.500000e-01 : f32
      %126 = vector.broadcast %cst_55 : f32 to vector<8x8xf32>
      %127 = arith.mulf %125, %126 : vector<8x8xf32>
      %cst_56 = arith.constant dense<0xFF800000> : vector<8xf32>
      %128 = vector.multi_reduction <maximumf>, %127, %cst_56 [1] : vector<8x8xf32> to vector<8xf32>
      %129 = vector.shape_cast %128 : vector<8xf32> to vector<8x1xf32>
      %130 = vector.broadcast %129 : vector<8x1xf32> to vector<8x8xf32>
      %131 = arith.subf %127, %130 : vector<8x8xf32>
      %132 = math.exp %131 : vector<8x8xf32>
      %cst_57 = arith.constant dense<0.000000e+00> : vector<8xf32>
      %133 = vector.multi_reduction <add>, %132, %cst_57 [1] : vector<8x8xf32> to vector<8xf32>
      %134 = vector.shape_cast %133 : vector<8xf32> to vector<8x1xf32>
      %135 = tpu.reciprocal %134 {approx = true} : vector<8x1xf32> -> vector<8x1xf32>
      %136 = vector.broadcast %135 : vector<8x1xf32> to vector<8x8xf32>
      %137 = arith.mulf %132, %136 : vector<8x8xf32>
      %cst_58 = arith.constant dense<0.000000e+00> : vector<8x16xf32>
      %138 = tpu.matmul %137, %123, %cst_58 {dimension_numbers = #tpu.dot_dimension_numbers<[1], [0], [0], [1], [0, 0, 1, 1], [], []>} : vector<8x8xf32>, vector<8x16xf32>, vector<8x16xf32> -> vector<8x16xf32>
      %139 = vector.extract_strided_slice %76 {offsets = [0, 48], sizes = [8, 16], strides = [1, 1]} : vector<16x64xf32> to vector<8x16xf32>
      %140 = vector.extract_strided_slice %77 {offsets = [0, 48], sizes = [8, 16], strides = [1, 1]} : vector<16x64xf32> to vector<8x16xf32>
      %141 = vector.extract_strided_slice %78 {offsets = [0, 48], sizes = [8, 16], strides = [1, 1]} : vector<16x64xf32> to vector<8x16xf32>
      %142 = tpu.transpose %140, [1, 0] : vector<8x16xf32> -> vector<16x8xf32>
      %cst_59 = arith.constant dense<0.000000e+00> : vector<8x8xf32>
      %143 = tpu.matmul %139, %142, %cst_59 {dimension_numbers = #tpu.dot_dimension_numbers<[1], [0], [0], [1], [0, 0, 1, 1], [], []>} : vector<8x16xf32>, vector<16x8xf32>, vector<8x8xf32> -> vector<8x8xf32>
      %cst_60 = arith.constant 2.500000e-01 : f32
      %144 = vector.broadcast %cst_60 : f32 to vector<8x8xf32>
      %145 = arith.mulf %143, %144 : vector<8x8xf32>
      %cst_61 = arith.constant dense<0xFF800000> : vector<8xf32>
      %146 = vector.multi_reduction <maximumf>, %145, %cst_61 [1] : vector<8x8xf32> to vector<8xf32>
      %147 = vector.shape_cast %146 : vector<8xf32> to vector<8x1xf32>
      %148 = vector.broadcast %147 : vector<8x1xf32> to vector<8x8xf32>
      %149 = arith.subf %145, %148 : vector<8x8xf32>
      %150 = math.exp %149 : vector<8x8xf32>
      %cst_62 = arith.constant dense<0.000000e+00> : vector<8xf32>
      %151 = vector.multi_reduction <add>, %150, %cst_62 [1] : vector<8x8xf32> to vector<8xf32>
      %152 = vector.shape_cast %151 : vector<8xf32> to vector<8x1xf32>
      %153 = tpu.reciprocal %152 {approx = true} : vector<8x1xf32> -> vector<8x1xf32>
      %154 = vector.broadcast %153 : vector<8x1xf32> to vector<8x8xf32>
      %155 = arith.mulf %150, %154 : vector<8x8xf32>
      %cst_63 = arith.constant dense<0.000000e+00> : vector<8x16xf32>
      %156 = tpu.matmul %155, %141, %cst_63 {dimension_numbers = #tpu.dot_dimension_numbers<[1], [0], [0], [1], [0, 0, 1, 1], [], []>} : vector<8x8xf32>, vector<8x16xf32>, vector<8x16xf32> -> vector<8x16xf32>
      %157 = tpu.concatenate %102, %120, %138, %156 in 1 : vector<8x16xf32>, vector<8x16xf32>, vector<8x16xf32>, vector<8x16xf32> -> vector<8x64xf32>
      %158 = vector.extract_strided_slice %76 {offsets = [8, 0], sizes = [8, 16], strides = [1, 1]} : vector<16x64xf32> to vector<8x16xf32>
      %159 = vector.extract_strided_slice %77 {offsets = [8, 0], sizes = [8, 16], strides = [1, 1]} : vector<16x64xf32> to vector<8x16xf32>
      %160 = vector.extract_strided_slice %78 {offsets = [8, 0], sizes = [8, 16], strides = [1, 1]} : vector<16x64xf32> to vector<8x16xf32>
      %161 = tpu.transpose %159, [1, 0] : vector<8x16xf32> -> vector<16x8xf32>
      %cst_64 = arith.constant dense<0.000000e+00> : vector<8x8xf32>
      %162 = tpu.matmul %158, %161, %cst_64 {dimension_numbers = #tpu.dot_dimension_numbers<[1], [0], [0], [1], [0, 0, 1, 1], [], []>} : vector<8x16xf32>, vector<16x8xf32>, vector<8x8xf32> -> vector<8x8xf32>
      %cst_65 = arith.constant 2.500000e-01 : f32
      %163 = vector.broadcast %cst_65 : f32 to vector<8x8xf32>
      %164 = arith.mulf %162, %163 : vector<8x8xf32>
      %cst_66 = arith.constant dense<0xFF800000> : vector<8xf32>
      %165 = vector.multi_reduction <maximumf>, %164, %cst_66 [1] : vector<8x8xf32> to vector<8xf32>
      %166 = vector.shape_cast %165 : vector<8xf32> to vector<8x1xf32>
      %167 = vector.broadcast %166 : vector<8x1xf32> to vector<8x8xf32>
      %168 = arith.subf %164, %167 : vector<8x8xf32>
      %169 = math.exp %168 : vector<8x8xf32>
      %cst_67 = arith.constant dense<0.000000e+00> : vector<8xf32>
      %170 = vector.multi_reduction <add>, %169, %cst_67 [1] : vector<8x8xf32> to vector<8xf32>
      %171 = vector.shape_cast %170 : vector<8xf32> to vector<8x1xf32>
      %172 = tpu.reciprocal %171 {approx = true} : vector<8x1xf32> -> vector<8x1xf32>
      %173 = vector.broadcast %172 : vector<8x1xf32> to vector<8x8xf32>
      %174 = arith.mulf %169, %173 : vector<8x8xf32>
      %cst_68 = arith.constant dense<0.000000e+00> : vector<8x16xf32>
      %175 = tpu.matmul %174, %160, %cst_68 {dimension_numbers = #tpu.dot_dimension_numbers<[1], [0], [0], [1], [0, 0, 1, 1], [], []>} : vector<8x8xf32>, vector<8x16xf32>, vector<8x16xf32> -> vector<8x16xf32>
      %176 = vector.extract_strided_slice %76 {offsets = [8, 16], sizes = [8, 16], strides = [1, 1]} : vector<16x64xf32> to vector<8x16xf32>
      %177 = vector.extract_strided_slice %77 {offsets = [8, 16], sizes = [8, 16], strides = [1, 1]} : vector<16x64xf32> to vector<8x16xf32>
      %178 = vector.extract_strided_slice %78 {offsets = [8, 16], sizes = [8, 16], strides = [1, 1]} : vector<16x64xf32> to vector<8x16xf32>
      %179 = tpu.transpose %177, [1, 0] : vector<8x16xf32> -> vector<16x8xf32>
      %cst_69 = arith.constant dense<0.000000e+00> : vector<8x8xf32>
      %180 = tpu.matmul %176, %179, %cst_69 {dimension_numbers = #tpu.dot_dimension_numbers<[1], [0], [0], [1], [0, 0, 1, 1], [], []>} : vector<8x16xf32>, vector<16x8xf32>, vector<8x8xf32> -> vector<8x8xf32>
      %cst_70 = arith.constant 2.500000e-01 : f32
      %181 = vector.broadcast %cst_70 : f32 to vector<8x8xf32>
      %182 = arith.mulf %180, %181 : vector<8x8xf32>
      %cst_71 = arith.constant dense<0xFF800000> : vector<8xf32>
      %183 = vector.multi_reduction <maximumf>, %182, %cst_71 [1] : vector<8x8xf32> to vector<8xf32>
      %184 = vector.shape_cast %183 : vector<8xf32> to vector<8x1xf32>
      %185 = vector.broadcast %184 : vector<8x1xf32> to vector<8x8xf32>
      %186 = arith.subf %182, %185 : vector<8x8xf32>
      %187 = math.exp %186 : vector<8x8xf32>
      %cst_72 = arith.constant dense<0.000000e+00> : vector<8xf32>
      %188 = vector.multi_reduction <add>, %187, %cst_72 [1] : vector<8x8xf32> to vector<8xf32>
      %189 = vector.shape_cast %188 : vector<8xf32> to vector<8x1xf32>
      %190 = tpu.reciprocal %189 {approx = true} : vector<8x1xf32> -> vector<8x1xf32>
      %191 = vector.broadcast %190 : vector<8x1xf32> to vector<8x8xf32>
      %192 = arith.mulf %187, %191 : vector<8x8xf32>
      %cst_73 = arith.constant dense<0.000000e+00> : vector<8x16xf32>
      %193 = tpu.matmul %192, %178, %cst_73 {dimension_numbers = #tpu.dot_dimension_numbers<[1], [0], [0], [1], [0, 0, 1, 1], [], []>} : vector<8x8xf32>, vector<8x16xf32>, vector<8x16xf32> -> vector<8x16xf32>
      %194 = vector.extract_strided_slice %76 {offsets = [8, 32], sizes = [8, 16], strides = [1, 1]} : vector<16x64xf32> to vector<8x16xf32>
      %195 = vector.extract_strided_slice %77 {offsets = [8, 32], sizes = [8, 16], strides = [1, 1]} : vector<16x64xf32> to vector<8x16xf32>
      %196 = vector.extract_strided_slice %78 {offsets = [8, 32], sizes = [8, 16], strides = [1, 1]} : vector<16x64xf32> to vector<8x16xf32>
      %197 = tpu.transpose %195, [1, 0] : vector<8x16xf32> -> vector<16x8xf32>
      %cst_74 = arith.constant dense<0.000000e+00> : vector<8x8xf32>
      %198 = tpu.matmul %194, %197, %cst_74 {dimension_numbers = #tpu.dot_dimension_numbers<[1], [0], [0], [1], [0, 0, 1, 1], [], []>} : vector<8x16xf32>, vector<16x8xf32>, vector<8x8xf32> -> vector<8x8xf32>
      %cst_75 = arith.constant 2.500000e-01 : f32
      %199 = vector.broadcast %cst_75 : f32 to vector<8x8xf32>
      %200 = arith.mulf %198, %199 : vector<8x8xf32>
      %cst_76 = arith.constant dense<0xFF800000> : vector<8xf32>
      %201 = vector.multi_reduction <maximumf>, %200, %cst_76 [1] : vector<8x8xf32> to vector<8xf32>
      %202 = vector.shape_cast %201 : vector<8xf32> to vector<8x1xf32>
      %203 = vector.broadcast %202 : vector<8x1xf32> to vector<8x8xf32>
      %204 = arith.subf %200, %203 : vector<8x8xf32>
      %205 = math.exp %204 : vector<8x8xf32>
      %cst_77 = arith.constant dense<0.000000e+00> : vector<8xf32>
      %206 = vector.multi_reduction <add>, %205, %cst_77 [1] : vector<8x8xf32> to vector<8xf32>
      %207 = vector.shape_cast %206 : vector<8xf32> to vector<8x1xf32>
      %208 = tpu.reciprocal %207 {approx = true} : vector<8x1xf32> -> vector<8x1xf32>
      %209 = vector.broadcast %208 : vector<8x1xf32> to vector<8x8xf32>
      %210 = arith.mulf %205, %209 : vector<8x8xf32>
      %cst_78 = arith.constant dense<0.000000e+00> : vector<8x16xf32>
      %211 = tpu.matmul %210, %196, %cst_78 {dimension_numbers = #tpu.dot_dimension_numbers<[1], [0], [0], [1], [0, 0, 1, 1], [], []>} : vector<8x8xf32>, vector<8x16xf32>, vector<8x16xf32> -> vector<8x16xf32>
      %212 = vector.extract_strided_slice %76 {offsets = [8, 48], sizes = [8, 16], strides = [1, 1]} : vector<16x64xf32> to vector<8x16xf32>
      %213 = vector.extract_strided_slice %77 {offsets = [8, 48], sizes = [8, 16], strides = [1, 1]} : vector<16x64xf32> to vector<8x16xf32>
      %214 = vector.extract_strided_slice %78 {offsets = [8, 48], sizes = [8, 16], strides = [1, 1]} : vector<16x64xf32> to vector<8x16xf32>
      %215 = tpu.transpose %213, [1, 0] : vector<8x16xf32> -> vector<16x8xf32>
      %cst_79 = arith.constant dense<0.000000e+00> : vector<8x8xf32>
      %216 = tpu.matmul %212, %215, %cst_79 {dimension_numbers = #tpu.dot_dimension_numbers<[1], [0], [0], [1], [0, 0, 1, 1], [], []>} : vector<8x16xf32>, vector<16x8xf32>, vector<8x8xf32> -> vector<8x8xf32>
      %cst_80 = arith.constant 2.500000e-01 : f32
      %217 = vector.broadcast %cst_80 : f32 to vector<8x8xf32>
      %218 = arith.mulf %216, %217 : vector<8x8xf32>
      %cst_81 = arith.constant dense<0xFF800000> : vector<8xf32>
      %219 = vector.multi_reduction <maximumf>, %218, %cst_81 [1] : vector<8x8xf32> to vector<8xf32>
      %220 = vector.shape_cast %219 : vector<8xf32> to vector<8x1xf32>
      %221 = vector.broadcast %220 : vector<8x1xf32> to vector<8x8xf32>
      %222 = arith.subf %218, %221 : vector<8x8xf32>
      %223 = math.exp %222 : vector<8x8xf32>
      %cst_82 = arith.constant dense<0.000000e+00> : vector<8xf32>
      %224 = vector.multi_reduction <add>, %223, %cst_82 [1] : vector<8x8xf32> to vector<8xf32>
      %225 = vector.shape_cast %224 : vector<8xf32> to vector<8x1xf32>
      %226 = tpu.reciprocal %225 {approx = true} : vector<8x1xf32> -> vector<8x1xf32>
      %227 = vector.broadcast %226 : vector<8x1xf32> to vector<8x8xf32>
      %228 = arith.mulf %223, %227 : vector<8x8xf32>
      %cst_83 = arith.constant dense<0.000000e+00> : vector<8x16xf32>
      %229 = tpu.matmul %228, %214, %cst_83 {dimension_numbers = #tpu.dot_dimension_numbers<[1], [0], [0], [1], [0, 0, 1, 1], [], []>} : vector<8x8xf32>, vector<8x16xf32>, vector<8x16xf32> -> vector<8x16xf32>
      %230 = tpu.concatenate %175, %193, %211, %229 in 1 : vector<8x16xf32>, vector<8x16xf32>, vector<8x16xf32>, vector<8x16xf32> -> vector<8x64xf32>
      %231 = tpu.concatenate %157, %230 in 0 : vector<8x64xf32>, vector<8x64xf32> -> vector<16x64xf32>
      %cst_84 = arith.constant dense<0.000000e+00> : vector<16x64xf32>
      %232 = tpu.matmul %231, %81, %cst_84 {dimension_numbers = #tpu.dot_dimension_numbers<[1], [0], [0], [1], [0, 0, 1, 1], [], []>} : vector<16x64xf32>, vector<64x64xf32>, vector<16x64xf32> -> vector<16x64xf32>
      %233 = vector.broadcast %84 : vector<1x64xf32> to vector<16x64xf32>
      %234 = arith.addf %232, %233 : vector<16x64xf32>
      %235 = arith.addf %arg41, %234 : vector<16x64xf32>
      %236 = arith.index_cast %arg40 : i32 to index
      %c0_85 = arith.constant 0 : index
      %c0_86 = arith.constant 0 : index
      %237 = vector.load %arg7[%236, %c0_85, %c0_86] : memref<8x1x64xf32, #tpu.memory_space<vmem>>, vector<1x1x64xf32>
      %238 = vector.shape_cast %237 : vector<1x1x64xf32> to vector<1x64xf32>
      %239 = arith.index_cast %arg40 : i32 to index
      %c0_87 = arith.constant 0 : index
      %c0_88 = arith.constant 0 : index
      %240 = vector.load %arg8[%239, %c0_87, %c0_88] : memref<8x1x64xf32, #tpu.memory_space<vmem>>, vector<1x1x64xf32>
      %241 = vector.shape_cast %240 : vector<1x1x64xf32> to vector<1x64xf32>
      %cst_89 = arith.constant dense<0.000000e+00> : vector<16xf32>
      %242 = vector.multi_reduction <add>, %235, %cst_89 [1] : vector<16x64xf32> to vector<16xf32>
      %243 = vector.shape_cast %242 : vector<16xf32> to vector<16x1xf32>
      %cst_90 = arith.constant 6.400000e+01 : f32
      %244 = vector.broadcast %cst_90 : f32 to vector<16x1xf32>
      %245 = arith.divf %243, %244 : vector<16x1xf32>
      %246 = vector.broadcast %245 : vector<16x1xf32> to vector<16x64xf32>
      %247 = arith.subf %235, %246 : vector<16x64xf32>
      %248 = arith.mulf %247, %247 : vector<16x64xf32>
      %cst_91 = arith.constant dense<0.000000e+00> : vector<16xf32>
      %249 = vector.multi_reduction <add>, %248, %cst_91 [1] : vector<16x64xf32> to vector<16xf32>
      %250 = vector.shape_cast %249 : vector<16xf32> to vector<16x1xf32>
      %cst_92 = arith.constant 6.400000e+01 : f32
      %251 = vector.broadcast %cst_92 : f32 to vector<16x1xf32>
      %252 = arith.divf %250, %251 : vector<16x1xf32>
      %253 = vector.broadcast %245 : vector<16x1xf32> to vector<16x64xf32>
      %254 = arith.subf %235, %253 : vector<16x64xf32>
      %cst_93 = arith.constant 9.99999974E-6 : f32
      %255 = vector.broadcast %cst_93 : f32 to vector<16x1xf32>
      %256 = arith.addf %252, %255 : vector<16x1xf32>
      %257 = math.rsqrt %256 : vector<16x1xf32>
      %258 = vector.broadcast %257 : vector<16x1xf32> to vector<16x64xf32>
      %259 = arith.mulf %254, %258 : vector<16x64xf32>
      %260 = vector.broadcast %238 : vector<1x64xf32> to vector<16x64xf32>
      %261 = arith.mulf %259, %260 : vector<16x64xf32>
      %262 = vector.broadcast %241 : vector<1x64xf32> to vector<16x64xf32>
      %263 = arith.addf %261, %262 : vector<16x64xf32>
      %264 = arith.index_cast %arg40 : i32 to index
      %c0_94 = arith.constant 0 : index
      %c0_95 = arith.constant 0 : index
      %265 = vector.load %arg9[%264, %c0_94, %c0_95] : memref<8x64x128xf32, #tpu.memory_space<vmem>>, vector<1x64x128xf32>
      %266 = vector.shape_cast %265 : vector<1x64x128xf32> to vector<64x128xf32>
      %267 = arith.index_cast %arg40 : i32 to index
      %c0_96 = arith.constant 0 : index
      %c0_97 = arith.constant 0 : index
      %268 = vector.load %arg10[%267, %c0_96, %c0_97] : memref<8x1x128xf32, #tpu.memory_space<vmem>>, vector<1x1x128xf32>
      %269 = vector.shape_cast %268 : vector<1x1x128xf32> to vector<1x128xf32>
      %270 = arith.index_cast %arg40 : i32 to index
      %c0_98 = arith.constant 0 : index
      %c0_99 = arith.constant 0 : index
      %271 = vector.load %arg11[%270, %c0_98, %c0_99] : memref<8x128x64xf32, #tpu.memory_space<vmem>>, vector<1x128x64xf32>
      %272 = vector.shape_cast %271 : vector<1x128x64xf32> to vector<128x64xf32>
      %273 = arith.index_cast %arg40 : i32 to index
      %c0_100 = arith.constant 0 : index
      %c0_101 = arith.constant 0 : index
      %274 = vector.load %arg12[%273, %c0_100, %c0_101] : memref<8x1x64xf32, #tpu.memory_space<vmem>>, vector<1x1x64xf32>
      %275 = vector.shape_cast %274 : vector<1x1x64xf32> to vector<1x64xf32>
      %cst_102 = arith.constant dense<0.000000e+00> : vector<16x128xf32>
      %276 = tpu.matmul %263, %266, %cst_102 {dimension_numbers = #tpu.dot_dimension_numbers<[1], [0], [0], [1], [0, 0, 1, 1], [], []>} : vector<16x64xf32>, vector<64x128xf32>, vector<16x128xf32> -> vector<16x128xf32>
      %277 = vector.broadcast %269 : vector<1x128xf32> to vector<16x128xf32>
      %278 = arith.addf %276, %277 : vector<16x128xf32>
      %cst_103 = arith.constant 0.000000e+00 : f32
      %279 = vector.broadcast %cst_103 : f32 to vector<16x128xf32>
      %280 = arith.maximumf %278, %279 : vector<16x128xf32>
      %cst_104 = arith.constant dense<0.000000e+00> : vector<16x64xf32>
      %281 = tpu.matmul %280, %272, %cst_104 {dimension_numbers = #tpu.dot_dimension_numbers<[1], [0], [0], [1], [0, 0, 1, 1], [], []>} : vector<16x128xf32>, vector<128x64xf32>, vector<16x64xf32> -> vector<16x64xf32>
      %282 = vector.broadcast %275 : vector<1x64xf32> to vector<16x64xf32>
      %283 = arith.addf %281, %282 : vector<16x64xf32>
      %284 = arith.addf %263, %283 : vector<16x64xf32>
      %285 = arith.index_cast %arg40 : i32 to index
      %c0_105 = arith.constant 0 : index
      %c0_106 = arith.constant 0 : index
      %286 = vector.load %arg13[%285, %c0_105, %c0_106] : memref<8x1x64xf32, #tpu.memory_space<vmem>>, vector<1x1x64xf32>
      %287 = vector.shape_cast %286 : vector<1x1x64xf32> to vector<1x64xf32>
      %288 = arith.index_cast %arg40 : i32 to index
      %c0_107 = arith.constant 0 : index
      %c0_108 = arith.constant 0 : index
      %289 = vector.load %arg14[%288, %c0_107, %c0_108] : memref<8x1x64xf32, #tpu.memory_space<vmem>>, vector<1x1x64xf32>
      %290 = vector.shape_cast %289 : vector<1x1x64xf32> to vector<1x64xf32>
      %cst_109 = arith.constant dense<0.000000e+00> : vector<16xf32>
      %291 = vector.multi_reduction <add>, %284, %cst_109 [1] : vector<16x64xf32> to vector<16xf32>
      %292 = vector.shape_cast %291 : vector<16xf32> to vector<16x1xf32>
      %cst_110 = arith.constant 6.400000e+01 : f32
      %293 = vector.broadcast %cst_110 : f32 to vector<16x1xf32>
      %294 = arith.divf %292, %293 : vector<16x1xf32>
      %295 = vector.broadcast %294 : vector<16x1xf32> to vector<16x64xf32>
      %296 = arith.subf %284, %295 : vector<16x64xf32>
      %297 = arith.mulf %296, %296 : vector<16x64xf32>
      %cst_111 = arith.constant dense<0.000000e+00> : vector<16xf32>
      %298 = vector.multi_reduction <add>, %297, %cst_111 [1] : vector<16x64xf32> to vector<16xf32>
      %299 = vector.shape_cast %298 : vector<16xf32> to vector<16x1xf32>
      %cst_112 = arith.constant 6.400000e+01 : f32
      %300 = vector.broadcast %cst_112 : f32 to vector<16x1xf32>
      %301 = arith.divf %299, %300 : vector<16x1xf32>
      %302 = vector.broadcast %294 : vector<16x1xf32> to vector<16x64xf32>
      %303 = arith.subf %284, %302 : vector<16x64xf32>
      %cst_113 = arith.constant 9.99999974E-6 : f32
      %304 = vector.broadcast %cst_113 : f32 to vector<16x1xf32>
      %305 = arith.addf %301, %304 : vector<16x1xf32>
      %306 = math.rsqrt %305 : vector<16x1xf32>
      %307 = vector.broadcast %306 : vector<16x1xf32> to vector<16x64xf32>
      %308 = arith.mulf %303, %307 : vector<16x64xf32>
      %309 = vector.broadcast %287 : vector<1x64xf32> to vector<16x64xf32>
      %310 = arith.mulf %308, %309 : vector<16x64xf32>
      %311 = vector.broadcast %290 : vector<1x64xf32> to vector<16x64xf32>
      %312 = arith.addf %310, %311 : vector<16x64xf32>
      scf.yield %312 : vector<16x64xf32>
    }
    %c8_i32_5 = arith.constant 8 : i32
    %c0_6 = arith.constant 0 : index
    %c0_7 = arith.constant 0 : index
    %8 = vector.load %arg15[%c0_6, %c0_7] : memref<1x64xf32, #tpu.memory_space<vmem>>, vector<1x64xf32>
    %c0_8 = arith.constant 0 : index
    %c0_9 = arith.constant 0 : index
    %9 = vector.load %arg16[%c0_8, %c0_9] : memref<1x64xf32, #tpu.memory_space<vmem>>, vector<1x64xf32>
    %cst_10 = arith.constant dense<0.000000e+00> : vector<16xf32>
    %10 = vector.multi_reduction <add>, %7, %cst_10 [1] : vector<16x64xf32> to vector<16xf32>
    %11 = vector.shape_cast %10 : vector<16xf32> to vector<16x1xf32>
    %cst_11 = arith.constant 6.400000e+01 : f32
    %12 = vector.broadcast %cst_11 : f32 to vector<16x1xf32>
    %13 = arith.divf %11, %12 : vector<16x1xf32>
    %14 = vector.broadcast %13 : vector<16x1xf32> to vector<16x64xf32>
    %15 = arith.subf %7, %14 : vector<16x64xf32>
    %16 = arith.mulf %15, %15 : vector<16x64xf32>
    %cst_12 = arith.constant dense<0.000000e+00> : vector<16xf32>
    %17 = vector.multi_reduction <add>, %16, %cst_12 [1] : vector<16x64xf32> to vector<16xf32>
    %18 = vector.shape_cast %17 : vector<16xf32> to vector<16x1xf32>
    %cst_13 = arith.constant 6.400000e+01 : f32
    %19 = vector.broadcast %cst_13 : f32 to vector<16x1xf32>
    %20 = arith.divf %18, %19 : vector<16x1xf32>
    %21 = vector.broadcast %13 : vector<16x1xf32> to vector<16x64xf32>
    %22 = arith.subf %7, %21 : vector<16x64xf32>
    %cst_14 = arith.constant 9.99999974E-6 : f32
    %23 = vector.broadcast %cst_14 : f32 to vector<16x1xf32>
    %24 = arith.addf %20, %23 : vector<16x1xf32>
    %25 = math.rsqrt %24 : vector<16x1xf32>
    %26 = vector.broadcast %25 : vector<16x1xf32> to vector<16x64xf32>
    %27 = arith.mulf %22, %26 : vector<16x64xf32>
    %28 = vector.broadcast %8 : vector<1x64xf32> to vector<16x64xf32>
    %29 = arith.mulf %27, %28 : vector<16x64xf32>
    %30 = vector.broadcast %9 : vector<1x64xf32> to vector<16x64xf32>
    %31 = arith.addf %29, %30 : vector<16x64xf32>
    %c0_i32_15 = arith.constant 0 : i32
    %c8_i32_16 = arith.constant 8 : i32
    %32 = arith.addi %c0_i32_15, %c8_i32_16 : i32
    %c1_i32_17 = arith.constant 1 : i32
    %33 = scf.for %arg40 = %c0_i32_15 to %32 step %c1_i32_17 iter_args(%arg41 = %5) -> (vector<16x64xf32>)  : i32 {
      %67 = arith.index_cast %arg40 : i32 to index
      %c0_35 = arith.constant 0 : index
      %c0_36 = arith.constant 0 : index
      %68 = vector.load %arg17[%67, %c0_35, %c0_36] : memref<8x64x192xf32, #tpu.memory_space<vmem>>, vector<1x64x192xf32>
      %69 = vector.shape_cast %68 : vector<1x64x192xf32> to vector<64x192xf32>
      %cst_37 = arith.constant dense<0.000000e+00> : vector<16x192xf32>
      %70 = tpu.matmul %arg41, %69, %cst_37 {dimension_numbers = #tpu.dot_dimension_numbers<[1], [0], [0], [1], [0, 0, 1, 1], [], []>} : vector<16x64xf32>, vector<64x192xf32>, vector<16x192xf32> -> vector<16x192xf32>
      %71 = arith.index_cast %arg40 : i32 to index
      %c0_38 = arith.constant 0 : index
      %c0_39 = arith.constant 0 : index
      %72 = vector.load %arg18[%71, %c0_38, %c0_39] : memref<8x1x192xf32, #tpu.memory_space<vmem>>, vector<1x1x192xf32>
      %73 = vector.shape_cast %72 : vector<1x1x192xf32> to vector<1x192xf32>
      %74 = vector.broadcast %73 : vector<1x192xf32> to vector<16x192xf32>
      %75 = arith.addf %70, %74 : vector<16x192xf32>
      %76 = vector.extract_strided_slice %75 {offsets = [0, 0], sizes = [16, 64], strides = [1, 1]} : vector<16x192xf32> to vector<16x64xf32>
      %77 = vector.extract_strided_slice %75 {offsets = [0, 64], sizes = [16, 64], strides = [1, 1]} : vector<16x192xf32> to vector<16x64xf32>
      %78 = vector.extract_strided_slice %75 {offsets = [0, 128], sizes = [16, 64], strides = [1, 1]} : vector<16x192xf32> to vector<16x64xf32>
      %79 = arith.index_cast %arg40 : i32 to index
      %c0_40 = arith.constant 0 : index
      %c0_41 = arith.constant 0 : index
      %80 = vector.load %arg19[%79, %c0_40, %c0_41] : memref<8x64x64xf32, #tpu.memory_space<vmem>>, vector<1x64x64xf32>
      %81 = vector.shape_cast %80 : vector<1x64x64xf32> to vector<64x64xf32>
      %82 = arith.index_cast %arg40 : i32 to index
      %c0_42 = arith.constant 0 : index
      %c0_43 = arith.constant 0 : index
      %83 = vector.load %arg20[%82, %c0_42, %c0_43] : memref<8x1x64xf32, #tpu.memory_space<vmem>>, vector<1x1x64xf32>
      %84 = vector.shape_cast %83 : vector<1x1x64xf32> to vector<1x64xf32>
      %85 = vector.extract_strided_slice %76 {offsets = [0, 0], sizes = [8, 16], strides = [1, 1]} : vector<16x64xf32> to vector<8x16xf32>
      %86 = vector.extract_strided_slice %77 {offsets = [0, 0], sizes = [8, 16], strides = [1, 1]} : vector<16x64xf32> to vector<8x16xf32>
      %87 = vector.extract_strided_slice %78 {offsets = [0, 0], sizes = [8, 16], strides = [1, 1]} : vector<16x64xf32> to vector<8x16xf32>
      %88 = tpu.transpose %86, [1, 0] : vector<8x16xf32> -> vector<16x8xf32>
      %cst_44 = arith.constant dense<0.000000e+00> : vector<8x8xf32>
      %89 = tpu.matmul %85, %88, %cst_44 {dimension_numbers = #tpu.dot_dimension_numbers<[1], [0], [0], [1], [0, 0, 1, 1], [], []>} : vector<8x16xf32>, vector<16x8xf32>, vector<8x8xf32> -> vector<8x8xf32>
      %cst_45 = arith.constant 2.500000e-01 : f32
      %90 = vector.broadcast %cst_45 : f32 to vector<8x8xf32>
      %91 = arith.mulf %89, %90 : vector<8x8xf32>
      %cst_46 = arith.constant dense<0xFF800000> : vector<8xf32>
      %92 = vector.multi_reduction <maximumf>, %91, %cst_46 [1] : vector<8x8xf32> to vector<8xf32>
      %93 = vector.shape_cast %92 : vector<8xf32> to vector<8x1xf32>
      %94 = vector.broadcast %93 : vector<8x1xf32> to vector<8x8xf32>
      %95 = arith.subf %91, %94 : vector<8x8xf32>
      %96 = math.exp %95 : vector<8x8xf32>
      %cst_47 = arith.constant dense<0.000000e+00> : vector<8xf32>
      %97 = vector.multi_reduction <add>, %96, %cst_47 [1] : vector<8x8xf32> to vector<8xf32>
      %98 = vector.shape_cast %97 : vector<8xf32> to vector<8x1xf32>
      %99 = tpu.reciprocal %98 {approx = true} : vector<8x1xf32> -> vector<8x1xf32>
      %100 = vector.broadcast %99 : vector<8x1xf32> to vector<8x8xf32>
      %101 = arith.mulf %96, %100 : vector<8x8xf32>
      %cst_48 = arith.constant dense<0.000000e+00> : vector<8x16xf32>
      %102 = tpu.matmul %101, %87, %cst_48 {dimension_numbers = #tpu.dot_dimension_numbers<[1], [0], [0], [1], [0, 0, 1, 1], [], []>} : vector<8x8xf32>, vector<8x16xf32>, vector<8x16xf32> -> vector<8x16xf32>
      %103 = vector.extract_strided_slice %76 {offsets = [0, 16], sizes = [8, 16], strides = [1, 1]} : vector<16x64xf32> to vector<8x16xf32>
      %104 = vector.extract_strided_slice %77 {offsets = [0, 16], sizes = [8, 16], strides = [1, 1]} : vector<16x64xf32> to vector<8x16xf32>
      %105 = vector.extract_strided_slice %78 {offsets = [0, 16], sizes = [8, 16], strides = [1, 1]} : vector<16x64xf32> to vector<8x16xf32>
      %106 = tpu.transpose %104, [1, 0] : vector<8x16xf32> -> vector<16x8xf32>
      %cst_49 = arith.constant dense<0.000000e+00> : vector<8x8xf32>
      %107 = tpu.matmul %103, %106, %cst_49 {dimension_numbers = #tpu.dot_dimension_numbers<[1], [0], [0], [1], [0, 0, 1, 1], [], []>} : vector<8x16xf32>, vector<16x8xf32>, vector<8x8xf32> -> vector<8x8xf32>
      %cst_50 = arith.constant 2.500000e-01 : f32
      %108 = vector.broadcast %cst_50 : f32 to vector<8x8xf32>
      %109 = arith.mulf %107, %108 : vector<8x8xf32>
      %cst_51 = arith.constant dense<0xFF800000> : vector<8xf32>
      %110 = vector.multi_reduction <maximumf>, %109, %cst_51 [1] : vector<8x8xf32> to vector<8xf32>
      %111 = vector.shape_cast %110 : vector<8xf32> to vector<8x1xf32>
      %112 = vector.broadcast %111 : vector<8x1xf32> to vector<8x8xf32>
      %113 = arith.subf %109, %112 : vector<8x8xf32>
      %114 = math.exp %113 : vector<8x8xf32>
      %cst_52 = arith.constant dense<0.000000e+00> : vector<8xf32>
      %115 = vector.multi_reduction <add>, %114, %cst_52 [1] : vector<8x8xf32> to vector<8xf32>
      %116 = vector.shape_cast %115 : vector<8xf32> to vector<8x1xf32>
      %117 = tpu.reciprocal %116 {approx = true} : vector<8x1xf32> -> vector<8x1xf32>
      %118 = vector.broadcast %117 : vector<8x1xf32> to vector<8x8xf32>
      %119 = arith.mulf %114, %118 : vector<8x8xf32>
      %cst_53 = arith.constant dense<0.000000e+00> : vector<8x16xf32>
      %120 = tpu.matmul %119, %105, %cst_53 {dimension_numbers = #tpu.dot_dimension_numbers<[1], [0], [0], [1], [0, 0, 1, 1], [], []>} : vector<8x8xf32>, vector<8x16xf32>, vector<8x16xf32> -> vector<8x16xf32>
      %121 = vector.extract_strided_slice %76 {offsets = [0, 32], sizes = [8, 16], strides = [1, 1]} : vector<16x64xf32> to vector<8x16xf32>
      %122 = vector.extract_strided_slice %77 {offsets = [0, 32], sizes = [8, 16], strides = [1, 1]} : vector<16x64xf32> to vector<8x16xf32>
      %123 = vector.extract_strided_slice %78 {offsets = [0, 32], sizes = [8, 16], strides = [1, 1]} : vector<16x64xf32> to vector<8x16xf32>
      %124 = tpu.transpose %122, [1, 0] : vector<8x16xf32> -> vector<16x8xf32>
      %cst_54 = arith.constant dense<0.000000e+00> : vector<8x8xf32>
      %125 = tpu.matmul %121, %124, %cst_54 {dimension_numbers = #tpu.dot_dimension_numbers<[1], [0], [0], [1], [0, 0, 1, 1], [], []>} : vector<8x16xf32>, vector<16x8xf32>, vector<8x8xf32> -> vector<8x8xf32>
      %cst_55 = arith.constant 2.500000e-01 : f32
      %126 = vector.broadcast %cst_55 : f32 to vector<8x8xf32>
      %127 = arith.mulf %125, %126 : vector<8x8xf32>
      %cst_56 = arith.constant dense<0xFF800000> : vector<8xf32>
      %128 = vector.multi_reduction <maximumf>, %127, %cst_56 [1] : vector<8x8xf32> to vector<8xf32>
      %129 = vector.shape_cast %128 : vector<8xf32> to vector<8x1xf32>
      %130 = vector.broadcast %129 : vector<8x1xf32> to vector<8x8xf32>
      %131 = arith.subf %127, %130 : vector<8x8xf32>
      %132 = math.exp %131 : vector<8x8xf32>
      %cst_57 = arith.constant dense<0.000000e+00> : vector<8xf32>
      %133 = vector.multi_reduction <add>, %132, %cst_57 [1] : vector<8x8xf32> to vector<8xf32>
      %134 = vector.shape_cast %133 : vector<8xf32> to vector<8x1xf32>
      %135 = tpu.reciprocal %134 {approx = true} : vector<8x1xf32> -> vector<8x1xf32>
      %136 = vector.broadcast %135 : vector<8x1xf32> to vector<8x8xf32>
      %137 = arith.mulf %132, %136 : vector<8x8xf32>
      %cst_58 = arith.constant dense<0.000000e+00> : vector<8x16xf32>
      %138 = tpu.matmul %137, %123, %cst_58 {dimension_numbers = #tpu.dot_dimension_numbers<[1], [0], [0], [1], [0, 0, 1, 1], [], []>} : vector<8x8xf32>, vector<8x16xf32>, vector<8x16xf32> -> vector<8x16xf32>
      %139 = vector.extract_strided_slice %76 {offsets = [0, 48], sizes = [8, 16], strides = [1, 1]} : vector<16x64xf32> to vector<8x16xf32>
      %140 = vector.extract_strided_slice %77 {offsets = [0, 48], sizes = [8, 16], strides = [1, 1]} : vector<16x64xf32> to vector<8x16xf32>
      %141 = vector.extract_strided_slice %78 {offsets = [0, 48], sizes = [8, 16], strides = [1, 1]} : vector<16x64xf32> to vector<8x16xf32>
      %142 = tpu.transpose %140, [1, 0] : vector<8x16xf32> -> vector<16x8xf32>
      %cst_59 = arith.constant dense<0.000000e+00> : vector<8x8xf32>
      %143 = tpu.matmul %139, %142, %cst_59 {dimension_numbers = #tpu.dot_dimension_numbers<[1], [0], [0], [1], [0, 0, 1, 1], [], []>} : vector<8x16xf32>, vector<16x8xf32>, vector<8x8xf32> -> vector<8x8xf32>
      %cst_60 = arith.constant 2.500000e-01 : f32
      %144 = vector.broadcast %cst_60 : f32 to vector<8x8xf32>
      %145 = arith.mulf %143, %144 : vector<8x8xf32>
      %cst_61 = arith.constant dense<0xFF800000> : vector<8xf32>
      %146 = vector.multi_reduction <maximumf>, %145, %cst_61 [1] : vector<8x8xf32> to vector<8xf32>
      %147 = vector.shape_cast %146 : vector<8xf32> to vector<8x1xf32>
      %148 = vector.broadcast %147 : vector<8x1xf32> to vector<8x8xf32>
      %149 = arith.subf %145, %148 : vector<8x8xf32>
      %150 = math.exp %149 : vector<8x8xf32>
      %cst_62 = arith.constant dense<0.000000e+00> : vector<8xf32>
      %151 = vector.multi_reduction <add>, %150, %cst_62 [1] : vector<8x8xf32> to vector<8xf32>
      %152 = vector.shape_cast %151 : vector<8xf32> to vector<8x1xf32>
      %153 = tpu.reciprocal %152 {approx = true} : vector<8x1xf32> -> vector<8x1xf32>
      %154 = vector.broadcast %153 : vector<8x1xf32> to vector<8x8xf32>
      %155 = arith.mulf %150, %154 : vector<8x8xf32>
      %cst_63 = arith.constant dense<0.000000e+00> : vector<8x16xf32>
      %156 = tpu.matmul %155, %141, %cst_63 {dimension_numbers = #tpu.dot_dimension_numbers<[1], [0], [0], [1], [0, 0, 1, 1], [], []>} : vector<8x8xf32>, vector<8x16xf32>, vector<8x16xf32> -> vector<8x16xf32>
      %157 = tpu.concatenate %102, %120, %138, %156 in 1 : vector<8x16xf32>, vector<8x16xf32>, vector<8x16xf32>, vector<8x16xf32> -> vector<8x64xf32>
      %158 = vector.extract_strided_slice %76 {offsets = [8, 0], sizes = [8, 16], strides = [1, 1]} : vector<16x64xf32> to vector<8x16xf32>
      %159 = vector.extract_strided_slice %77 {offsets = [8, 0], sizes = [8, 16], strides = [1, 1]} : vector<16x64xf32> to vector<8x16xf32>
      %160 = vector.extract_strided_slice %78 {offsets = [8, 0], sizes = [8, 16], strides = [1, 1]} : vector<16x64xf32> to vector<8x16xf32>
      %161 = tpu.transpose %159, [1, 0] : vector<8x16xf32> -> vector<16x8xf32>
      %cst_64 = arith.constant dense<0.000000e+00> : vector<8x8xf32>
      %162 = tpu.matmul %158, %161, %cst_64 {dimension_numbers = #tpu.dot_dimension_numbers<[1], [0], [0], [1], [0, 0, 1, 1], [], []>} : vector<8x16xf32>, vector<16x8xf32>, vector<8x8xf32> -> vector<8x8xf32>
      %cst_65 = arith.constant 2.500000e-01 : f32
      %163 = vector.broadcast %cst_65 : f32 to vector<8x8xf32>
      %164 = arith.mulf %162, %163 : vector<8x8xf32>
      %cst_66 = arith.constant dense<0xFF800000> : vector<8xf32>
      %165 = vector.multi_reduction <maximumf>, %164, %cst_66 [1] : vector<8x8xf32> to vector<8xf32>
      %166 = vector.shape_cast %165 : vector<8xf32> to vector<8x1xf32>
      %167 = vector.broadcast %166 : vector<8x1xf32> to vector<8x8xf32>
      %168 = arith.subf %164, %167 : vector<8x8xf32>
      %169 = math.exp %168 : vector<8x8xf32>
      %cst_67 = arith.constant dense<0.000000e+00> : vector<8xf32>
      %170 = vector.multi_reduction <add>, %169, %cst_67 [1] : vector<8x8xf32> to vector<8xf32>
      %171 = vector.shape_cast %170 : vector<8xf32> to vector<8x1xf32>
      %172 = tpu.reciprocal %171 {approx = true} : vector<8x1xf32> -> vector<8x1xf32>
      %173 = vector.broadcast %172 : vector<8x1xf32> to vector<8x8xf32>
      %174 = arith.mulf %169, %173 : vector<8x8xf32>
      %cst_68 = arith.constant dense<0.000000e+00> : vector<8x16xf32>
      %175 = tpu.matmul %174, %160, %cst_68 {dimension_numbers = #tpu.dot_dimension_numbers<[1], [0], [0], [1], [0, 0, 1, 1], [], []>} : vector<8x8xf32>, vector<8x16xf32>, vector<8x16xf32> -> vector<8x16xf32>
      %176 = vector.extract_strided_slice %76 {offsets = [8, 16], sizes = [8, 16], strides = [1, 1]} : vector<16x64xf32> to vector<8x16xf32>
      %177 = vector.extract_strided_slice %77 {offsets = [8, 16], sizes = [8, 16], strides = [1, 1]} : vector<16x64xf32> to vector<8x16xf32>
      %178 = vector.extract_strided_slice %78 {offsets = [8, 16], sizes = [8, 16], strides = [1, 1]} : vector<16x64xf32> to vector<8x16xf32>
      %179 = tpu.transpose %177, [1, 0] : vector<8x16xf32> -> vector<16x8xf32>
      %cst_69 = arith.constant dense<0.000000e+00> : vector<8x8xf32>
      %180 = tpu.matmul %176, %179, %cst_69 {dimension_numbers = #tpu.dot_dimension_numbers<[1], [0], [0], [1], [0, 0, 1, 1], [], []>} : vector<8x16xf32>, vector<16x8xf32>, vector<8x8xf32> -> vector<8x8xf32>
      %cst_70 = arith.constant 2.500000e-01 : f32
      %181 = vector.broadcast %cst_70 : f32 to vector<8x8xf32>
      %182 = arith.mulf %180, %181 : vector<8x8xf32>
      %cst_71 = arith.constant dense<0xFF800000> : vector<8xf32>
      %183 = vector.multi_reduction <maximumf>, %182, %cst_71 [1] : vector<8x8xf32> to vector<8xf32>
      %184 = vector.shape_cast %183 : vector<8xf32> to vector<8x1xf32>
      %185 = vector.broadcast %184 : vector<8x1xf32> to vector<8x8xf32>
      %186 = arith.subf %182, %185 : vector<8x8xf32>
      %187 = math.exp %186 : vector<8x8xf32>
      %cst_72 = arith.constant dense<0.000000e+00> : vector<8xf32>
      %188 = vector.multi_reduction <add>, %187, %cst_72 [1] : vector<8x8xf32> to vector<8xf32>
      %189 = vector.shape_cast %188 : vector<8xf32> to vector<8x1xf32>
      %190 = tpu.reciprocal %189 {approx = true} : vector<8x1xf32> -> vector<8x1xf32>
      %191 = vector.broadcast %190 : vector<8x1xf32> to vector<8x8xf32>
      %192 = arith.mulf %187, %191 : vector<8x8xf32>
      %cst_73 = arith.constant dense<0.000000e+00> : vector<8x16xf32>
      %193 = tpu.matmul %192, %178, %cst_73 {dimension_numbers = #tpu.dot_dimension_numbers<[1], [0], [0], [1], [0, 0, 1, 1], [], []>} : vector<8x8xf32>, vector<8x16xf32>, vector<8x16xf32> -> vector<8x16xf32>
      %194 = vector.extract_strided_slice %76 {offsets = [8, 32], sizes = [8, 16], strides = [1, 1]} : vector<16x64xf32> to vector<8x16xf32>
      %195 = vector.extract_strided_slice %77 {offsets = [8, 32], sizes = [8, 16], strides = [1, 1]} : vector<16x64xf32> to vector<8x16xf32>
      %196 = vector.extract_strided_slice %78 {offsets = [8, 32], sizes = [8, 16], strides = [1, 1]} : vector<16x64xf32> to vector<8x16xf32>
      %197 = tpu.transpose %195, [1, 0] : vector<8x16xf32> -> vector<16x8xf32>
      %cst_74 = arith.constant dense<0.000000e+00> : vector<8x8xf32>
      %198 = tpu.matmul %194, %197, %cst_74 {dimension_numbers = #tpu.dot_dimension_numbers<[1], [0], [0], [1], [0, 0, 1, 1], [], []>} : vector<8x16xf32>, vector<16x8xf32>, vector<8x8xf32> -> vector<8x8xf32>
      %cst_75 = arith.constant 2.500000e-01 : f32
      %199 = vector.broadcast %cst_75 : f32 to vector<8x8xf32>
      %200 = arith.mulf %198, %199 : vector<8x8xf32>
      %cst_76 = arith.constant dense<0xFF800000> : vector<8xf32>
      %201 = vector.multi_reduction <maximumf>, %200, %cst_76 [1] : vector<8x8xf32> to vector<8xf32>
      %202 = vector.shape_cast %201 : vector<8xf32> to vector<8x1xf32>
      %203 = vector.broadcast %202 : vector<8x1xf32> to vector<8x8xf32>
      %204 = arith.subf %200, %203 : vector<8x8xf32>
      %205 = math.exp %204 : vector<8x8xf32>
      %cst_77 = arith.constant dense<0.000000e+00> : vector<8xf32>
      %206 = vector.multi_reduction <add>, %205, %cst_77 [1] : vector<8x8xf32> to vector<8xf32>
      %207 = vector.shape_cast %206 : vector<8xf32> to vector<8x1xf32>
      %208 = tpu.reciprocal %207 {approx = true} : vector<8x1xf32> -> vector<8x1xf32>
      %209 = vector.broadcast %208 : vector<8x1xf32> to vector<8x8xf32>
      %210 = arith.mulf %205, %209 : vector<8x8xf32>
      %cst_78 = arith.constant dense<0.000000e+00> : vector<8x16xf32>
      %211 = tpu.matmul %210, %196, %cst_78 {dimension_numbers = #tpu.dot_dimension_numbers<[1], [0], [0], [1], [0, 0, 1, 1], [], []>} : vector<8x8xf32>, vector<8x16xf32>, vector<8x16xf32> -> vector<8x16xf32>
      %212 = vector.extract_strided_slice %76 {offsets = [8, 48], sizes = [8, 16], strides = [1, 1]} : vector<16x64xf32> to vector<8x16xf32>
      %213 = vector.extract_strided_slice %77 {offsets = [8, 48], sizes = [8, 16], strides = [1, 1]} : vector<16x64xf32> to vector<8x16xf32>
      %214 = vector.extract_strided_slice %78 {offsets = [8, 48], sizes = [8, 16], strides = [1, 1]} : vector<16x64xf32> to vector<8x16xf32>
      %215 = tpu.transpose %213, [1, 0] : vector<8x16xf32> -> vector<16x8xf32>
      %cst_79 = arith.constant dense<0.000000e+00> : vector<8x8xf32>
      %216 = tpu.matmul %212, %215, %cst_79 {dimension_numbers = #tpu.dot_dimension_numbers<[1], [0], [0], [1], [0, 0, 1, 1], [], []>} : vector<8x16xf32>, vector<16x8xf32>, vector<8x8xf32> -> vector<8x8xf32>
      %cst_80 = arith.constant 2.500000e-01 : f32
      %217 = vector.broadcast %cst_80 : f32 to vector<8x8xf32>
      %218 = arith.mulf %216, %217 : vector<8x8xf32>
      %cst_81 = arith.constant dense<0xFF800000> : vector<8xf32>
      %219 = vector.multi_reduction <maximumf>, %218, %cst_81 [1] : vector<8x8xf32> to vector<8xf32>
      %220 = vector.shape_cast %219 : vector<8xf32> to vector<8x1xf32>
      %221 = vector.broadcast %220 : vector<8x1xf32> to vector<8x8xf32>
      %222 = arith.subf %218, %221 : vector<8x8xf32>
      %223 = math.exp %222 : vector<8x8xf32>
      %cst_82 = arith.constant dense<0.000000e+00> : vector<8xf32>
      %224 = vector.multi_reduction <add>, %223, %cst_82 [1] : vector<8x8xf32> to vector<8xf32>
      %225 = vector.shape_cast %224 : vector<8xf32> to vector<8x1xf32>
      %226 = tpu.reciprocal %225 {approx = true} : vector<8x1xf32> -> vector<8x1xf32>
      %227 = vector.broadcast %226 : vector<8x1xf32> to vector<8x8xf32>
      %228 = arith.mulf %223, %227 : vector<8x8xf32>
      %cst_83 = arith.constant dense<0.000000e+00> : vector<8x16xf32>
      %229 = tpu.matmul %228, %214, %cst_83 {dimension_numbers = #tpu.dot_dimension_numbers<[1], [0], [0], [1], [0, 0, 1, 1], [], []>} : vector<8x8xf32>, vector<8x16xf32>, vector<8x16xf32> -> vector<8x16xf32>
      %230 = tpu.concatenate %175, %193, %211, %229 in 1 : vector<8x16xf32>, vector<8x16xf32>, vector<8x16xf32>, vector<8x16xf32> -> vector<8x64xf32>
      %231 = tpu.concatenate %157, %230 in 0 : vector<8x64xf32>, vector<8x64xf32> -> vector<16x64xf32>
      %cst_84 = arith.constant dense<0.000000e+00> : vector<16x64xf32>
      %232 = tpu.matmul %231, %81, %cst_84 {dimension_numbers = #tpu.dot_dimension_numbers<[1], [0], [0], [1], [0, 0, 1, 1], [], []>} : vector<16x64xf32>, vector<64x64xf32>, vector<16x64xf32> -> vector<16x64xf32>
      %233 = vector.broadcast %84 : vector<1x64xf32> to vector<16x64xf32>
      %234 = arith.addf %232, %233 : vector<16x64xf32>
      %235 = arith.addf %arg41, %234 : vector<16x64xf32>
      %236 = arith.index_cast %arg40 : i32 to index
      %c0_85 = arith.constant 0 : index
      %c0_86 = arith.constant 0 : index
      %237 = vector.load %arg21[%236, %c0_85, %c0_86] : memref<8x1x64xf32, #tpu.memory_space<vmem>>, vector<1x1x64xf32>
      %238 = vector.shape_cast %237 : vector<1x1x64xf32> to vector<1x64xf32>
      %239 = arith.index_cast %arg40 : i32 to index
      %c0_87 = arith.constant 0 : index
      %c0_88 = arith.constant 0 : index
      %240 = vector.load %arg22[%239, %c0_87, %c0_88] : memref<8x1x64xf32, #tpu.memory_space<vmem>>, vector<1x1x64xf32>
      %241 = vector.shape_cast %240 : vector<1x1x64xf32> to vector<1x64xf32>
      %cst_89 = arith.constant dense<0.000000e+00> : vector<16xf32>
      %242 = vector.multi_reduction <add>, %235, %cst_89 [1] : vector<16x64xf32> to vector<16xf32>
      %243 = vector.shape_cast %242 : vector<16xf32> to vector<16x1xf32>
      %cst_90 = arith.constant 6.400000e+01 : f32
      %244 = vector.broadcast %cst_90 : f32 to vector<16x1xf32>
      %245 = arith.divf %243, %244 : vector<16x1xf32>
      %246 = vector.broadcast %245 : vector<16x1xf32> to vector<16x64xf32>
      %247 = arith.subf %235, %246 : vector<16x64xf32>
      %248 = arith.mulf %247, %247 : vector<16x64xf32>
      %cst_91 = arith.constant dense<0.000000e+00> : vector<16xf32>
      %249 = vector.multi_reduction <add>, %248, %cst_91 [1] : vector<16x64xf32> to vector<16xf32>
      %250 = vector.shape_cast %249 : vector<16xf32> to vector<16x1xf32>
      %cst_92 = arith.constant 6.400000e+01 : f32
      %251 = vector.broadcast %cst_92 : f32 to vector<16x1xf32>
      %252 = arith.divf %250, %251 : vector<16x1xf32>
      %253 = vector.broadcast %245 : vector<16x1xf32> to vector<16x64xf32>
      %254 = arith.subf %235, %253 : vector<16x64xf32>
      %cst_93 = arith.constant 9.99999974E-6 : f32
      %255 = vector.broadcast %cst_93 : f32 to vector<16x1xf32>
      %256 = arith.addf %252, %255 : vector<16x1xf32>
      %257 = math.rsqrt %256 : vector<16x1xf32>
      %258 = vector.broadcast %257 : vector<16x1xf32> to vector<16x64xf32>
      %259 = arith.mulf %254, %258 : vector<16x64xf32>
      %260 = vector.broadcast %238 : vector<1x64xf32> to vector<16x64xf32>
      %261 = arith.mulf %259, %260 : vector<16x64xf32>
      %262 = vector.broadcast %241 : vector<1x64xf32> to vector<16x64xf32>
      %263 = arith.addf %261, %262 : vector<16x64xf32>
      %264 = arith.index_cast %arg40 : i32 to index
      %c0_94 = arith.constant 0 : index
      %c0_95 = arith.constant 0 : index
      %265 = vector.load %arg23[%264, %c0_94, %c0_95] : memref<8x64x192xf32, #tpu.memory_space<vmem>>, vector<1x64x192xf32>
      %266 = vector.shape_cast %265 : vector<1x64x192xf32> to vector<64x192xf32>
      %267 = arith.index_cast %arg40 : i32 to index
      %c0_96 = arith.constant 0 : index
      %c0_97 = arith.constant 0 : index
      %268 = vector.load %arg24[%267, %c0_96, %c0_97] : memref<8x1x192xf32, #tpu.memory_space<vmem>>, vector<1x1x192xf32>
      %269 = vector.shape_cast %268 : vector<1x1x192xf32> to vector<1x192xf32>
      %270 = vector.extract_strided_slice %266 {offsets = [0, 0], sizes = [64, 64], strides = [1, 1]} : vector<64x192xf32> to vector<64x64xf32>
      %cst_98 = arith.constant dense<0.000000e+00> : vector<16x64xf32>
      %271 = tpu.matmul %263, %270, %cst_98 {dimension_numbers = #tpu.dot_dimension_numbers<[1], [0], [0], [1], [0, 0, 1, 1], [], []>} : vector<16x64xf32>, vector<64x64xf32>, vector<16x64xf32> -> vector<16x64xf32>
      %272 = vector.extract_strided_slice %269 {offsets = [0, 0], sizes = [1, 64], strides = [1, 1]} : vector<1x192xf32> to vector<1x64xf32>
      %273 = vector.broadcast %272 : vector<1x64xf32> to vector<16x64xf32>
      %274 = arith.addf %271, %273 : vector<16x64xf32>
      %275 = vector.extract_strided_slice %266 {offsets = [0, 64], sizes = [64, 128], strides = [1, 1]} : vector<64x192xf32> to vector<64x128xf32>
      %cst_99 = arith.constant dense<0.000000e+00> : vector<16x128xf32>
      %276 = tpu.matmul %31, %275, %cst_99 {dimension_numbers = #tpu.dot_dimension_numbers<[1], [0], [0], [1], [0, 0, 1, 1], [], []>} : vector<16x64xf32>, vector<64x128xf32>, vector<16x128xf32> -> vector<16x128xf32>
      %277 = vector.extract_strided_slice %269 {offsets = [0, 64], sizes = [1, 128], strides = [1, 1]} : vector<1x192xf32> to vector<1x128xf32>
      %278 = vector.broadcast %277 : vector<1x128xf32> to vector<16x128xf32>
      %279 = arith.addf %276, %278 : vector<16x128xf32>
      %280 = vector.extract_strided_slice %279 {offsets = [0, 0], sizes = [16, 64], strides = [1, 1]} : vector<16x128xf32> to vector<16x64xf32>
      %281 = vector.extract_strided_slice %279 {offsets = [0, 64], sizes = [16, 64], strides = [1, 1]} : vector<16x128xf32> to vector<16x64xf32>
      %282 = arith.index_cast %arg40 : i32 to index
      %c0_100 = arith.constant 0 : index
      %c0_101 = arith.constant 0 : index
      %283 = vector.load %arg25[%282, %c0_100, %c0_101] : memref<8x64x64xf32, #tpu.memory_space<vmem>>, vector<1x64x64xf32>
      %284 = vector.shape_cast %283 : vector<1x64x64xf32> to vector<64x64xf32>
      %285 = arith.index_cast %arg40 : i32 to index
      %c0_102 = arith.constant 0 : index
      %c0_103 = arith.constant 0 : index
      %286 = vector.load %arg26[%285, %c0_102, %c0_103] : memref<8x1x64xf32, #tpu.memory_space<vmem>>, vector<1x1x64xf32>
      %287 = vector.shape_cast %286 : vector<1x1x64xf32> to vector<1x64xf32>
      %288 = vector.extract_strided_slice %274 {offsets = [0, 0], sizes = [8, 16], strides = [1, 1]} : vector<16x64xf32> to vector<8x16xf32>
      %289 = vector.extract_strided_slice %280 {offsets = [0, 0], sizes = [8, 16], strides = [1, 1]} : vector<16x64xf32> to vector<8x16xf32>
      %290 = vector.extract_strided_slice %281 {offsets = [0, 0], sizes = [8, 16], strides = [1, 1]} : vector<16x64xf32> to vector<8x16xf32>
      %291 = tpu.transpose %289, [1, 0] : vector<8x16xf32> -> vector<16x8xf32>
      %cst_104 = arith.constant dense<0.000000e+00> : vector<8x8xf32>
      %292 = tpu.matmul %288, %291, %cst_104 {dimension_numbers = #tpu.dot_dimension_numbers<[1], [0], [0], [1], [0, 0, 1, 1], [], []>} : vector<8x16xf32>, vector<16x8xf32>, vector<8x8xf32> -> vector<8x8xf32>
      %cst_105 = arith.constant 2.500000e-01 : f32
      %293 = vector.broadcast %cst_105 : f32 to vector<8x8xf32>
      %294 = arith.mulf %292, %293 : vector<8x8xf32>
      %cst_106 = arith.constant dense<0xFF800000> : vector<8xf32>
      %295 = vector.multi_reduction <maximumf>, %294, %cst_106 [1] : vector<8x8xf32> to vector<8xf32>
      %296 = vector.shape_cast %295 : vector<8xf32> to vector<8x1xf32>
      %297 = vector.broadcast %296 : vector<8x1xf32> to vector<8x8xf32>
      %298 = arith.subf %294, %297 : vector<8x8xf32>
      %299 = math.exp %298 : vector<8x8xf32>
      %cst_107 = arith.constant dense<0.000000e+00> : vector<8xf32>
      %300 = vector.multi_reduction <add>, %299, %cst_107 [1] : vector<8x8xf32> to vector<8xf32>
      %301 = vector.shape_cast %300 : vector<8xf32> to vector<8x1xf32>
      %302 = tpu.reciprocal %301 {approx = true} : vector<8x1xf32> -> vector<8x1xf32>
      %303 = vector.broadcast %302 : vector<8x1xf32> to vector<8x8xf32>
      %304 = arith.mulf %299, %303 : vector<8x8xf32>
      %cst_108 = arith.constant dense<0.000000e+00> : vector<8x16xf32>
      %305 = tpu.matmul %304, %290, %cst_108 {dimension_numbers = #tpu.dot_dimension_numbers<[1], [0], [0], [1], [0, 0, 1, 1], [], []>} : vector<8x8xf32>, vector<8x16xf32>, vector<8x16xf32> -> vector<8x16xf32>
      %306 = vector.extract_strided_slice %274 {offsets = [0, 16], sizes = [8, 16], strides = [1, 1]} : vector<16x64xf32> to vector<8x16xf32>
      %307 = vector.extract_strided_slice %280 {offsets = [0, 16], sizes = [8, 16], strides = [1, 1]} : vector<16x64xf32> to vector<8x16xf32>
      %308 = vector.extract_strided_slice %281 {offsets = [0, 16], sizes = [8, 16], strides = [1, 1]} : vector<16x64xf32> to vector<8x16xf32>
      %309 = tpu.transpose %307, [1, 0] : vector<8x16xf32> -> vector<16x8xf32>
      %cst_109 = arith.constant dense<0.000000e+00> : vector<8x8xf32>
      %310 = tpu.matmul %306, %309, %cst_109 {dimension_numbers = #tpu.dot_dimension_numbers<[1], [0], [0], [1], [0, 0, 1, 1], [], []>} : vector<8x16xf32>, vector<16x8xf32>, vector<8x8xf32> -> vector<8x8xf32>
      %cst_110 = arith.constant 2.500000e-01 : f32
      %311 = vector.broadcast %cst_110 : f32 to vector<8x8xf32>
      %312 = arith.mulf %310, %311 : vector<8x8xf32>
      %cst_111 = arith.constant dense<0xFF800000> : vector<8xf32>
      %313 = vector.multi_reduction <maximumf>, %312, %cst_111 [1] : vector<8x8xf32> to vector<8xf32>
      %314 = vector.shape_cast %313 : vector<8xf32> to vector<8x1xf32>
      %315 = vector.broadcast %314 : vector<8x1xf32> to vector<8x8xf32>
      %316 = arith.subf %312, %315 : vector<8x8xf32>
      %317 = math.exp %316 : vector<8x8xf32>
      %cst_112 = arith.constant dense<0.000000e+00> : vector<8xf32>
      %318 = vector.multi_reduction <add>, %317, %cst_112 [1] : vector<8x8xf32> to vector<8xf32>
      %319 = vector.shape_cast %318 : vector<8xf32> to vector<8x1xf32>
      %320 = tpu.reciprocal %319 {approx = true} : vector<8x1xf32> -> vector<8x1xf32>
      %321 = vector.broadcast %320 : vector<8x1xf32> to vector<8x8xf32>
      %322 = arith.mulf %317, %321 : vector<8x8xf32>
      %cst_113 = arith.constant dense<0.000000e+00> : vector<8x16xf32>
      %323 = tpu.matmul %322, %308, %cst_113 {dimension_numbers = #tpu.dot_dimension_numbers<[1], [0], [0], [1], [0, 0, 1, 1], [], []>} : vector<8x8xf32>, vector<8x16xf32>, vector<8x16xf32> -> vector<8x16xf32>
      %324 = vector.extract_strided_slice %274 {offsets = [0, 32], sizes = [8, 16], strides = [1, 1]} : vector<16x64xf32> to vector<8x16xf32>
      %325 = vector.extract_strided_slice %280 {offsets = [0, 32], sizes = [8, 16], strides = [1, 1]} : vector<16x64xf32> to vector<8x16xf32>
      %326 = vector.extract_strided_slice %281 {offsets = [0, 32], sizes = [8, 16], strides = [1, 1]} : vector<16x64xf32> to vector<8x16xf32>
      %327 = tpu.transpose %325, [1, 0] : vector<8x16xf32> -> vector<16x8xf32>
      %cst_114 = arith.constant dense<0.000000e+00> : vector<8x8xf32>
      %328 = tpu.matmul %324, %327, %cst_114 {dimension_numbers = #tpu.dot_dimension_numbers<[1], [0], [0], [1], [0, 0, 1, 1], [], []>} : vector<8x16xf32>, vector<16x8xf32>, vector<8x8xf32> -> vector<8x8xf32>
      %cst_115 = arith.constant 2.500000e-01 : f32
      %329 = vector.broadcast %cst_115 : f32 to vector<8x8xf32>
      %330 = arith.mulf %328, %329 : vector<8x8xf32>
      %cst_116 = arith.constant dense<0xFF800000> : vector<8xf32>
      %331 = vector.multi_reduction <maximumf>, %330, %cst_116 [1] : vector<8x8xf32> to vector<8xf32>
      %332 = vector.shape_cast %331 : vector<8xf32> to vector<8x1xf32>
      %333 = vector.broadcast %332 : vector<8x1xf32> to vector<8x8xf32>
      %334 = arith.subf %330, %333 : vector<8x8xf32>
      %335 = math.exp %334 : vector<8x8xf32>
      %cst_117 = arith.constant dense<0.000000e+00> : vector<8xf32>
      %336 = vector.multi_reduction <add>, %335, %cst_117 [1] : vector<8x8xf32> to vector<8xf32>
      %337 = vector.shape_cast %336 : vector<8xf32> to vector<8x1xf32>
      %338 = tpu.reciprocal %337 {approx = true} : vector<8x1xf32> -> vector<8x1xf32>
      %339 = vector.broadcast %338 : vector<8x1xf32> to vector<8x8xf32>
      %340 = arith.mulf %335, %339 : vector<8x8xf32>
      %cst_118 = arith.constant dense<0.000000e+00> : vector<8x16xf32>
      %341 = tpu.matmul %340, %326, %cst_118 {dimension_numbers = #tpu.dot_dimension_numbers<[1], [0], [0], [1], [0, 0, 1, 1], [], []>} : vector<8x8xf32>, vector<8x16xf32>, vector<8x16xf32> -> vector<8x16xf32>
      %342 = vector.extract_strided_slice %274 {offsets = [0, 48], sizes = [8, 16], strides = [1, 1]} : vector<16x64xf32> to vector<8x16xf32>
      %343 = vector.extract_strided_slice %280 {offsets = [0, 48], sizes = [8, 16], strides = [1, 1]} : vector<16x64xf32> to vector<8x16xf32>
      %344 = vector.extract_strided_slice %281 {offsets = [0, 48], sizes = [8, 16], strides = [1, 1]} : vector<16x64xf32> to vector<8x16xf32>
      %345 = tpu.transpose %343, [1, 0] : vector<8x16xf32> -> vector<16x8xf32>
      %cst_119 = arith.constant dense<0.000000e+00> : vector<8x8xf32>
      %346 = tpu.matmul %342, %345, %cst_119 {dimension_numbers = #tpu.dot_dimension_numbers<[1], [0], [0], [1], [0, 0, 1, 1], [], []>} : vector<8x16xf32>, vector<16x8xf32>, vector<8x8xf32> -> vector<8x8xf32>
      %cst_120 = arith.constant 2.500000e-01 : f32
      %347 = vector.broadcast %cst_120 : f32 to vector<8x8xf32>
      %348 = arith.mulf %346, %347 : vector<8x8xf32>
      %cst_121 = arith.constant dense<0xFF800000> : vector<8xf32>
      %349 = vector.multi_reduction <maximumf>, %348, %cst_121 [1] : vector<8x8xf32> to vector<8xf32>
      %350 = vector.shape_cast %349 : vector<8xf32> to vector<8x1xf32>
      %351 = vector.broadcast %350 : vector<8x1xf32> to vector<8x8xf32>
      %352 = arith.subf %348, %351 : vector<8x8xf32>
      %353 = math.exp %352 : vector<8x8xf32>
      %cst_122 = arith.constant dense<0.000000e+00> : vector<8xf32>
      %354 = vector.multi_reduction <add>, %353, %cst_122 [1] : vector<8x8xf32> to vector<8xf32>
      %355 = vector.shape_cast %354 : vector<8xf32> to vector<8x1xf32>
      %356 = tpu.reciprocal %355 {approx = true} : vector<8x1xf32> -> vector<8x1xf32>
      %357 = vector.broadcast %356 : vector<8x1xf32> to vector<8x8xf32>
      %358 = arith.mulf %353, %357 : vector<8x8xf32>
      %cst_123 = arith.constant dense<0.000000e+00> : vector<8x16xf32>
      %359 = tpu.matmul %358, %344, %cst_123 {dimension_numbers = #tpu.dot_dimension_numbers<[1], [0], [0], [1], [0, 0, 1, 1], [], []>} : vector<8x8xf32>, vector<8x16xf32>, vector<8x16xf32> -> vector<8x16xf32>
      %360 = tpu.concatenate %305, %323, %341, %359 in 1 : vector<8x16xf32>, vector<8x16xf32>, vector<8x16xf32>, vector<8x16xf32> -> vector<8x64xf32>
      %361 = vector.extract_strided_slice %274 {offsets = [8, 0], sizes = [8, 16], strides = [1, 1]} : vector<16x64xf32> to vector<8x16xf32>
      %362 = vector.extract_strided_slice %280 {offsets = [8, 0], sizes = [8, 16], strides = [1, 1]} : vector<16x64xf32> to vector<8x16xf32>
      %363 = vector.extract_strided_slice %281 {offsets = [8, 0], sizes = [8, 16], strides = [1, 1]} : vector<16x64xf32> to vector<8x16xf32>
      %364 = tpu.transpose %362, [1, 0] : vector<8x16xf32> -> vector<16x8xf32>
      %cst_124 = arith.constant dense<0.000000e+00> : vector<8x8xf32>
      %365 = tpu.matmul %361, %364, %cst_124 {dimension_numbers = #tpu.dot_dimension_numbers<[1], [0], [0], [1], [0, 0, 1, 1], [], []>} : vector<8x16xf32>, vector<16x8xf32>, vector<8x8xf32> -> vector<8x8xf32>
      %cst_125 = arith.constant 2.500000e-01 : f32
      %366 = vector.broadcast %cst_125 : f32 to vector<8x8xf32>
      %367 = arith.mulf %365, %366 : vector<8x8xf32>
      %cst_126 = arith.constant dense<0xFF800000> : vector<8xf32>
      %368 = vector.multi_reduction <maximumf>, %367, %cst_126 [1] : vector<8x8xf32> to vector<8xf32>
      %369 = vector.shape_cast %368 : vector<8xf32> to vector<8x1xf32>
      %370 = vector.broadcast %369 : vector<8x1xf32> to vector<8x8xf32>
      %371 = arith.subf %367, %370 : vector<8x8xf32>
      %372 = math.exp %371 : vector<8x8xf32>
      %cst_127 = arith.constant dense<0.000000e+00> : vector<8xf32>
      %373 = vector.multi_reduction <add>, %372, %cst_127 [1] : vector<8x8xf32> to vector<8xf32>
      %374 = vector.shape_cast %373 : vector<8xf32> to vector<8x1xf32>
      %375 = tpu.reciprocal %374 {approx = true} : vector<8x1xf32> -> vector<8x1xf32>
      %376 = vector.broadcast %375 : vector<8x1xf32> to vector<8x8xf32>
      %377 = arith.mulf %372, %376 : vector<8x8xf32>
      %cst_128 = arith.constant dense<0.000000e+00> : vector<8x16xf32>
      %378 = tpu.matmul %377, %363, %cst_128 {dimension_numbers = #tpu.dot_dimension_numbers<[1], [0], [0], [1], [0, 0, 1, 1], [], []>} : vector<8x8xf32>, vector<8x16xf32>, vector<8x16xf32> -> vector<8x16xf32>
      %379 = vector.extract_strided_slice %274 {offsets = [8, 16], sizes = [8, 16], strides = [1, 1]} : vector<16x64xf32> to vector<8x16xf32>
      %380 = vector.extract_strided_slice %280 {offsets = [8, 16], sizes = [8, 16], strides = [1, 1]} : vector<16x64xf32> to vector<8x16xf32>
      %381 = vector.extract_strided_slice %281 {offsets = [8, 16], sizes = [8, 16], strides = [1, 1]} : vector<16x64xf32> to vector<8x16xf32>
      %382 = tpu.transpose %380, [1, 0] : vector<8x16xf32> -> vector<16x8xf32>
      %cst_129 = arith.constant dense<0.000000e+00> : vector<8x8xf32>
      %383 = tpu.matmul %379, %382, %cst_129 {dimension_numbers = #tpu.dot_dimension_numbers<[1], [0], [0], [1], [0, 0, 1, 1], [], []>} : vector<8x16xf32>, vector<16x8xf32>, vector<8x8xf32> -> vector<8x8xf32>
      %cst_130 = arith.constant 2.500000e-01 : f32
      %384 = vector.broadcast %cst_130 : f32 to vector<8x8xf32>
      %385 = arith.mulf %383, %384 : vector<8x8xf32>
      %cst_131 = arith.constant dense<0xFF800000> : vector<8xf32>
      %386 = vector.multi_reduction <maximumf>, %385, %cst_131 [1] : vector<8x8xf32> to vector<8xf32>
      %387 = vector.shape_cast %386 : vector<8xf32> to vector<8x1xf32>
      %388 = vector.broadcast %387 : vector<8x1xf32> to vector<8x8xf32>
      %389 = arith.subf %385, %388 : vector<8x8xf32>
      %390 = math.exp %389 : vector<8x8xf32>
      %cst_132 = arith.constant dense<0.000000e+00> : vector<8xf32>
      %391 = vector.multi_reduction <add>, %390, %cst_132 [1] : vector<8x8xf32> to vector<8xf32>
      %392 = vector.shape_cast %391 : vector<8xf32> to vector<8x1xf32>
      %393 = tpu.reciprocal %392 {approx = true} : vector<8x1xf32> -> vector<8x1xf32>
      %394 = vector.broadcast %393 : vector<8x1xf32> to vector<8x8xf32>
      %395 = arith.mulf %390, %394 : vector<8x8xf32>
      %cst_133 = arith.constant dense<0.000000e+00> : vector<8x16xf32>
      %396 = tpu.matmul %395, %381, %cst_133 {dimension_numbers = #tpu.dot_dimension_numbers<[1], [0], [0], [1], [0, 0, 1, 1], [], []>} : vector<8x8xf32>, vector<8x16xf32>, vector<8x16xf32> -> vector<8x16xf32>
      %397 = vector.extract_strided_slice %274 {offsets = [8, 32], sizes = [8, 16], strides = [1, 1]} : vector<16x64xf32> to vector<8x16xf32>
      %398 = vector.extract_strided_slice %280 {offsets = [8, 32], sizes = [8, 16], strides = [1, 1]} : vector<16x64xf32> to vector<8x16xf32>
      %399 = vector.extract_strided_slice %281 {offsets = [8, 32], sizes = [8, 16], strides = [1, 1]} : vector<16x64xf32> to vector<8x16xf32>
      %400 = tpu.transpose %398, [1, 0] : vector<8x16xf32> -> vector<16x8xf32>
      %cst_134 = arith.constant dense<0.000000e+00> : vector<8x8xf32>
      %401 = tpu.matmul %397, %400, %cst_134 {dimension_numbers = #tpu.dot_dimension_numbers<[1], [0], [0], [1], [0, 0, 1, 1], [], []>} : vector<8x16xf32>, vector<16x8xf32>, vector<8x8xf32> -> vector<8x8xf32>
      %cst_135 = arith.constant 2.500000e-01 : f32
      %402 = vector.broadcast %cst_135 : f32 to vector<8x8xf32>
      %403 = arith.mulf %401, %402 : vector<8x8xf32>
      %cst_136 = arith.constant dense<0xFF800000> : vector<8xf32>
      %404 = vector.multi_reduction <maximumf>, %403, %cst_136 [1] : vector<8x8xf32> to vector<8xf32>
      %405 = vector.shape_cast %404 : vector<8xf32> to vector<8x1xf32>
      %406 = vector.broadcast %405 : vector<8x1xf32> to vector<8x8xf32>
      %407 = arith.subf %403, %406 : vector<8x8xf32>
      %408 = math.exp %407 : vector<8x8xf32>
      %cst_137 = arith.constant dense<0.000000e+00> : vector<8xf32>
      %409 = vector.multi_reduction <add>, %408, %cst_137 [1] : vector<8x8xf32> to vector<8xf32>
      %410 = vector.shape_cast %409 : vector<8xf32> to vector<8x1xf32>
      %411 = tpu.reciprocal %410 {approx = true} : vector<8x1xf32> -> vector<8x1xf32>
      %412 = vector.broadcast %411 : vector<8x1xf32> to vector<8x8xf32>
      %413 = arith.mulf %408, %412 : vector<8x8xf32>
      %cst_138 = arith.constant dense<0.000000e+00> : vector<8x16xf32>
      %414 = tpu.matmul %413, %399, %cst_138 {dimension_numbers = #tpu.dot_dimension_numbers<[1], [0], [0], [1], [0, 0, 1, 1], [], []>} : vector<8x8xf32>, vector<8x16xf32>, vector<8x16xf32> -> vector<8x16xf32>
      %415 = vector.extract_strided_slice %274 {offsets = [8, 48], sizes = [8, 16], strides = [1, 1]} : vector<16x64xf32> to vector<8x16xf32>
      %416 = vector.extract_strided_slice %280 {offsets = [8, 48], sizes = [8, 16], strides = [1, 1]} : vector<16x64xf32> to vector<8x16xf32>
      %417 = vector.extract_strided_slice %281 {offsets = [8, 48], sizes = [8, 16], strides = [1, 1]} : vector<16x64xf32> to vector<8x16xf32>
      %418 = tpu.transpose %416, [1, 0] : vector<8x16xf32> -> vector<16x8xf32>
      %cst_139 = arith.constant dense<0.000000e+00> : vector<8x8xf32>
      %419 = tpu.matmul %415, %418, %cst_139 {dimension_numbers = #tpu.dot_dimension_numbers<[1], [0], [0], [1], [0, 0, 1, 1], [], []>} : vector<8x16xf32>, vector<16x8xf32>, vector<8x8xf32> -> vector<8x8xf32>
      %cst_140 = arith.constant 2.500000e-01 : f32
      %420 = vector.broadcast %cst_140 : f32 to vector<8x8xf32>
      %421 = arith.mulf %419, %420 : vector<8x8xf32>
      %cst_141 = arith.constant dense<0xFF800000> : vector<8xf32>
      %422 = vector.multi_reduction <maximumf>, %421, %cst_141 [1] : vector<8x8xf32> to vector<8xf32>
      %423 = vector.shape_cast %422 : vector<8xf32> to vector<8x1xf32>
      %424 = vector.broadcast %423 : vector<8x1xf32> to vector<8x8xf32>
      %425 = arith.subf %421, %424 : vector<8x8xf32>
      %426 = math.exp %425 : vector<8x8xf32>
      %cst_142 = arith.constant dense<0.000000e+00> : vector<8xf32>
      %427 = vector.multi_reduction <add>, %426, %cst_142 [1] : vector<8x8xf32> to vector<8xf32>
      %428 = vector.shape_cast %427 : vector<8xf32> to vector<8x1xf32>
      %429 = tpu.reciprocal %428 {approx = true} : vector<8x1xf32> -> vector<8x1xf32>
      %430 = vector.broadcast %429 : vector<8x1xf32> to vector<8x8xf32>
      %431 = arith.mulf %426, %430 : vector<8x8xf32>
      %cst_143 = arith.constant dense<0.000000e+00> : vector<8x16xf32>
      %432 = tpu.matmul %431, %417, %cst_143 {dimension_numbers = #tpu.dot_dimension_numbers<[1], [0], [0], [1], [0, 0, 1, 1], [], []>} : vector<8x8xf32>, vector<8x16xf32>, vector<8x16xf32> -> vector<8x16xf32>
      %433 = tpu.concatenate %378, %396, %414, %432 in 1 : vector<8x16xf32>, vector<8x16xf32>, vector<8x16xf32>, vector<8x16xf32> -> vector<8x64xf32>
      %434 = tpu.concatenate %360, %433 in 0 : vector<8x64xf32>, vector<8x64xf32> -> vector<16x64xf32>
      %cst_144 = arith.constant dense<0.000000e+00> : vector<16x64xf32>
      %435 = tpu.matmul %434, %284, %cst_144 {dimension_numbers = #tpu.dot_dimension_numbers<[1], [0], [0], [1], [0, 0, 1, 1], [], []>} : vector<16x64xf32>, vector<64x64xf32>, vector<16x64xf32> -> vector<16x64xf32>
      %436 = vector.broadcast %287 : vector<1x64xf32> to vector<16x64xf32>
      %437 = arith.addf %435, %436 : vector<16x64xf32>
      %438 = arith.addf %263, %437 : vector<16x64xf32>
      %439 = arith.index_cast %arg40 : i32 to index
      %c0_145 = arith.constant 0 : index
      %c0_146 = arith.constant 0 : index
      %440 = vector.load %arg27[%439, %c0_145, %c0_146] : memref<8x1x64xf32, #tpu.memory_space<vmem>>, vector<1x1x64xf32>
      %441 = vector.shape_cast %440 : vector<1x1x64xf32> to vector<1x64xf32>
      %442 = arith.index_cast %arg40 : i32 to index
      %c0_147 = arith.constant 0 : index
      %c0_148 = arith.constant 0 : index
      %443 = vector.load %arg28[%442, %c0_147, %c0_148] : memref<8x1x64xf32, #tpu.memory_space<vmem>>, vector<1x1x64xf32>
      %444 = vector.shape_cast %443 : vector<1x1x64xf32> to vector<1x64xf32>
      %cst_149 = arith.constant dense<0.000000e+00> : vector<16xf32>
      %445 = vector.multi_reduction <add>, %438, %cst_149 [1] : vector<16x64xf32> to vector<16xf32>
      %446 = vector.shape_cast %445 : vector<16xf32> to vector<16x1xf32>
      %cst_150 = arith.constant 6.400000e+01 : f32
      %447 = vector.broadcast %cst_150 : f32 to vector<16x1xf32>
      %448 = arith.divf %446, %447 : vector<16x1xf32>
      %449 = vector.broadcast %448 : vector<16x1xf32> to vector<16x64xf32>
      %450 = arith.subf %438, %449 : vector<16x64xf32>
      %451 = arith.mulf %450, %450 : vector<16x64xf32>
      %cst_151 = arith.constant dense<0.000000e+00> : vector<16xf32>
      %452 = vector.multi_reduction <add>, %451, %cst_151 [1] : vector<16x64xf32> to vector<16xf32>
      %453 = vector.shape_cast %452 : vector<16xf32> to vector<16x1xf32>
      %cst_152 = arith.constant 6.400000e+01 : f32
      %454 = vector.broadcast %cst_152 : f32 to vector<16x1xf32>
      %455 = arith.divf %453, %454 : vector<16x1xf32>
      %456 = vector.broadcast %448 : vector<16x1xf32> to vector<16x64xf32>
      %457 = arith.subf %438, %456 : vector<16x64xf32>
      %cst_153 = arith.constant 9.99999974E-6 : f32
      %458 = vector.broadcast %cst_153 : f32 to vector<16x1xf32>
      %459 = arith.addf %455, %458 : vector<16x1xf32>
      %460 = math.rsqrt %459 : vector<16x1xf32>
      %461 = vector.broadcast %460 : vector<16x1xf32> to vector<16x64xf32>
      %462 = arith.mulf %457, %461 : vector<16x64xf32>
      %463 = vector.broadcast %441 : vector<1x64xf32> to vector<16x64xf32>
      %464 = arith.mulf %462, %463 : vector<16x64xf32>
      %465 = vector.broadcast %444 : vector<1x64xf32> to vector<16x64xf32>
      %466 = arith.addf %464, %465 : vector<16x64xf32>
      %467 = arith.index_cast %arg40 : i32 to index
      %c0_154 = arith.constant 0 : index
      %c0_155 = arith.constant 0 : index
      %468 = vector.load %arg29[%467, %c0_154, %c0_155] : memref<8x64x128xf32, #tpu.memory_space<vmem>>, vector<1x64x128xf32>
      %469 = vector.shape_cast %468 : vector<1x64x128xf32> to vector<64x128xf32>
      %470 = arith.index_cast %arg40 : i32 to index
      %c0_156 = arith.constant 0 : index
      %c0_157 = arith.constant 0 : index
      %471 = vector.load %arg30[%470, %c0_156, %c0_157] : memref<8x1x128xf32, #tpu.memory_space<vmem>>, vector<1x1x128xf32>
      %472 = vector.shape_cast %471 : vector<1x1x128xf32> to vector<1x128xf32>
      %473 = arith.index_cast %arg40 : i32 to index
      %c0_158 = arith.constant 0 : index
      %c0_159 = arith.constant 0 : index
      %474 = vector.load %arg31[%473, %c0_158, %c0_159] : memref<8x128x64xf32, #tpu.memory_space<vmem>>, vector<1x128x64xf32>
      %475 = vector.shape_cast %474 : vector<1x128x64xf32> to vector<128x64xf32>
      %476 = arith.index_cast %arg40 : i32 to index
      %c0_160 = arith.constant 0 : index
      %c0_161 = arith.constant 0 : index
      %477 = vector.load %arg32[%476, %c0_160, %c0_161] : memref<8x1x64xf32, #tpu.memory_space<vmem>>, vector<1x1x64xf32>
      %478 = vector.shape_cast %477 : vector<1x1x64xf32> to vector<1x64xf32>
      %cst_162 = arith.constant dense<0.000000e+00> : vector<16x128xf32>
      %479 = tpu.matmul %466, %469, %cst_162 {dimension_numbers = #tpu.dot_dimension_numbers<[1], [0], [0], [1], [0, 0, 1, 1], [], []>} : vector<16x64xf32>, vector<64x128xf32>, vector<16x128xf32> -> vector<16x128xf32>
      %480 = vector.broadcast %472 : vector<1x128xf32> to vector<16x128xf32>
      %481 = arith.addf %479, %480 : vector<16x128xf32>
      %cst_163 = arith.constant 0.000000e+00 : f32
      %482 = vector.broadcast %cst_163 : f32 to vector<16x128xf32>
      %483 = arith.maximumf %481, %482 : vector<16x128xf32>
      %cst_164 = arith.constant dense<0.000000e+00> : vector<16x64xf32>
      %484 = tpu.matmul %483, %475, %cst_164 {dimension_numbers = #tpu.dot_dimension_numbers<[1], [0], [0], [1], [0, 0, 1, 1], [], []>} : vector<16x128xf32>, vector<128x64xf32>, vector<16x64xf32> -> vector<16x64xf32>
      %485 = vector.broadcast %478 : vector<1x64xf32> to vector<16x64xf32>
      %486 = arith.addf %484, %485 : vector<16x64xf32>
      %487 = arith.addf %466, %486 : vector<16x64xf32>
      %488 = arith.index_cast %arg40 : i32 to index
      %c0_165 = arith.constant 0 : index
      %c0_166 = arith.constant 0 : index
      %489 = vector.load %arg33[%488, %c0_165, %c0_166] : memref<8x1x64xf32, #tpu.memory_space<vmem>>, vector<1x1x64xf32>
      %490 = vector.shape_cast %489 : vector<1x1x64xf32> to vector<1x64xf32>
      %491 = arith.index_cast %arg40 : i32 to index
      %c0_167 = arith.constant 0 : index
      %c0_168 = arith.constant 0 : index
      %492 = vector.load %arg34[%491, %c0_167, %c0_168] : memref<8x1x64xf32, #tpu.memory_space<vmem>>, vector<1x1x64xf32>
      %493 = vector.shape_cast %492 : vector<1x1x64xf32> to vector<1x64xf32>
      %cst_169 = arith.constant dense<0.000000e+00> : vector<16xf32>
      %494 = vector.multi_reduction <add>, %487, %cst_169 [1] : vector<16x64xf32> to vector<16xf32>
      %495 = vector.shape_cast %494 : vector<16xf32> to vector<16x1xf32>
      %cst_170 = arith.constant 6.400000e+01 : f32
      %496 = vector.broadcast %cst_170 : f32 to vector<16x1xf32>
      %497 = arith.divf %495, %496 : vector<16x1xf32>
      %498 = vector.broadcast %497 : vector<16x1xf32> to vector<16x64xf32>
      %499 = arith.subf %487, %498 : vector<16x64xf32>
      %500 = arith.mulf %499, %499 : vector<16x64xf32>
      %cst_171 = arith.constant dense<0.000000e+00> : vector<16xf32>
      %501 = vector.multi_reduction <add>, %500, %cst_171 [1] : vector<16x64xf32> to vector<16xf32>
      %502 = vector.shape_cast %501 : vector<16xf32> to vector<16x1xf32>
      %cst_172 = arith.constant 6.400000e+01 : f32
      %503 = vector.broadcast %cst_172 : f32 to vector<16x1xf32>
      %504 = arith.divf %502, %503 : vector<16x1xf32>
      %505 = vector.broadcast %497 : vector<16x1xf32> to vector<16x64xf32>
      %506 = arith.subf %487, %505 : vector<16x64xf32>
      %cst_173 = arith.constant 9.99999974E-6 : f32
      %507 = vector.broadcast %cst_173 : f32 to vector<16x1xf32>
      %508 = arith.addf %504, %507 : vector<16x1xf32>
      %509 = math.rsqrt %508 : vector<16x1xf32>
      %510 = vector.broadcast %509 : vector<16x1xf32> to vector<16x64xf32>
      %511 = arith.mulf %506, %510 : vector<16x64xf32>
      %512 = vector.broadcast %490 : vector<1x64xf32> to vector<16x64xf32>
      %513 = arith.mulf %511, %512 : vector<16x64xf32>
      %514 = vector.broadcast %493 : vector<1x64xf32> to vector<16x64xf32>
      %515 = arith.addf %513, %514 : vector<16x64xf32>
      scf.yield %515 : vector<16x64xf32>
    }
    %c8_i32_18 = arith.constant 8 : i32
    %c0_19 = arith.constant 0 : index
    %c0_20 = arith.constant 0 : index
    %34 = vector.load %arg35[%c0_19, %c0_20] : memref<1x64xf32, #tpu.memory_space<vmem>>, vector<1x64xf32>
    %c0_21 = arith.constant 0 : index
    %c0_22 = arith.constant 0 : index
    %35 = vector.load %arg36[%c0_21, %c0_22] : memref<1x64xf32, #tpu.memory_space<vmem>>, vector<1x64xf32>
    %cst_23 = arith.constant dense<0.000000e+00> : vector<16xf32>
    %36 = vector.multi_reduction <add>, %33, %cst_23 [1] : vector<16x64xf32> to vector<16xf32>
    %37 = vector.shape_cast %36 : vector<16xf32> to vector<16x1xf32>
    %cst_24 = arith.constant 6.400000e+01 : f32
    %38 = vector.broadcast %cst_24 : f32 to vector<16x1xf32>
    %39 = arith.divf %37, %38 : vector<16x1xf32>
    %40 = vector.broadcast %39 : vector<16x1xf32> to vector<16x64xf32>
    %41 = arith.subf %33, %40 : vector<16x64xf32>
    %42 = arith.mulf %41, %41 : vector<16x64xf32>
    %cst_25 = arith.constant dense<0.000000e+00> : vector<16xf32>
    %43 = vector.multi_reduction <add>, %42, %cst_25 [1] : vector<16x64xf32> to vector<16xf32>
    %44 = vector.shape_cast %43 : vector<16xf32> to vector<16x1xf32>
    %cst_26 = arith.constant 6.400000e+01 : f32
    %45 = vector.broadcast %cst_26 : f32 to vector<16x1xf32>
    %46 = arith.divf %44, %45 : vector<16x1xf32>
    %47 = vector.broadcast %39 : vector<16x1xf32> to vector<16x64xf32>
    %48 = arith.subf %33, %47 : vector<16x64xf32>
    %cst_27 = arith.constant 9.99999974E-6 : f32
    %49 = vector.broadcast %cst_27 : f32 to vector<16x1xf32>
    %50 = arith.addf %46, %49 : vector<16x1xf32>
    %51 = math.rsqrt %50 : vector<16x1xf32>
    %52 = vector.broadcast %51 : vector<16x1xf32> to vector<16x64xf32>
    %53 = arith.mulf %48, %52 : vector<16x64xf32>
    %54 = vector.broadcast %34 : vector<1x64xf32> to vector<16x64xf32>
    %55 = arith.mulf %53, %54 : vector<16x64xf32>
    %56 = vector.broadcast %35 : vector<1x64xf32> to vector<16x64xf32>
    %57 = arith.addf %55, %56 : vector<16x64xf32>
    %58 = vector.extract_strided_slice %57 {offsets = [7, 0], sizes = [1, 64], strides = [1, 1]} : vector<16x64xf32> to vector<1x64xf32>
    %59 = vector.extract_strided_slice %57 {offsets = [15, 0], sizes = [1, 64], strides = [1, 1]} : vector<16x64xf32> to vector<1x64xf32>
    %60 = tpu.concatenate %58, %59 in 0 : vector<1x64xf32>, vector<1x64xf32> -> vector<2x64xf32>
    %c0_28 = arith.constant 0 : index
    %c0_29 = arith.constant 0 : index
    %61 = vector.load %arg37[%c0_28, %c0_29] : memref<64x4xf32, #tpu.memory_space<vmem>>, vector<64x4xf32>
    %cst_30 = arith.constant dense<0.000000e+00> : vector<2x4xf32>
    %62 = tpu.matmul %60, %61, %cst_30 {dimension_numbers = #tpu.dot_dimension_numbers<[1], [0], [0], [1], [0, 0, 1, 1], [], []>} : vector<2x64xf32>, vector<64x4xf32>, vector<2x4xf32> -> vector<2x4xf32>
    %c0_31 = arith.constant 0 : index
    %c0_32 = arith.constant 0 : index
    %63 = vector.load %arg38[%c0_31, %c0_32] : memref<1x4xf32, #tpu.memory_space<vmem>>, vector<1x4xf32>
    %64 = vector.broadcast %63 : vector<1x4xf32> to vector<2x4xf32>
    %65 = arith.addf %62, %64 : vector<2x4xf32>
    %c0_33 = arith.constant 0 : index
    %c0_34 = arith.constant 0 : index
    %66 = vector.load %arg39[%c0_33, %c0_34] : memref<2x4xf32, #tpu.memory_space<vmem>>, vector<2x4xf32>
    tpu.vector_store %arg39[%c0_33, %c0_34], %65 {strides = array<i32>} : memref<2x4xf32, #tpu.memory_space<vmem>>, vector<2x4xf32>,
    return
  }
}

</mosaic_0001>

<llo_original>
// kernel: forward.1
$region0: #{forward.1}
  #allocation0 [shape = 'u32[]', space=smem, size = 0x4, offset = 0x4, fixed_abs, tag = 'smem constant byte address 0x4 - core index']
  #allocation1 [shape = 'u32[72,128]{1,0:T(1,128)}', space=vmem, size = 0x9000, scoped, tag = 'internal scratch']
  %s0 = inlined_call_operand.smem [shape: u32[40], index: -1, kind: input, shape index: {}]
  %s1 = sld [smem:[%s0]]
  %s2 = scalar_lea.smem %s0, 1
  %s3 = sld [smem:[%s2]]
  %s4 = scalar_lea.smem %s0, 2
  %s5 = sld [smem:[%s4]]
  %s6 = scalar_lea.smem %s0, 3
  %s7 = sld [smem:[%s6]]
  %s8 = scalar_lea.smem %s0, 4
  %s9 = sld [smem:[%s8]]
  %s10 = scalar_lea.smem %s0, 5
  %s11 = sld [smem:[%s10]]
  %s12 = scalar_lea.smem %s0, 6
  %s13 = sld [smem:[%s12]]
  %s14 = scalar_lea.smem %s0, 7
  %s15 = sld [smem:[%s14]]
  %s16 = scalar_lea.smem %s0, 8
  %s17 = sld [smem:[%s16]]
  %s18 = scalar_lea.smem %s0, 9
  %s19 = sld [smem:[%s18]]
  %s20 = scalar_lea.smem %s0, 10
  %s21 = sld [smem:[%s20]]
  %s22 = scalar_lea.smem %s0, 11
  %s23 = sld [smem:[%s22]]
  %s24 = scalar_lea.smem %s0, 12
  %s25 = sld [smem:[%s24]]
  %s26 = scalar_lea.smem %s0, 13
  %s27 = sld [smem:[%s26]]
  %s28 = scalar_lea.smem %s0, 14
  %s29 = sld [smem:[%s28]]
  %s30 = scalar_lea.smem %s0, 15
  %s31 = sld [smem:[%s30]]
  %s32 = scalar_lea.smem %s0, 16
  %s33 = sld [smem:[%s32]]
  %s34 = scalar_lea.smem %s0, 17
  %s35 = sld [smem:[%s34]]
  %s36 = scalar_lea.smem %s0, 18
  %s37 = sld [smem:[%s36]]
  %s38 = scalar_lea.smem %s0, 19
  %s39 = sld [smem:[%s38]]
  %s40 = scalar_lea.smem %s0, 20
  %s41 = sld [smem:[%s40]]
  %s42 = scalar_lea.smem %s0, 21
  %s43 = sld [smem:[%s42]]
  %s44 = scalar_lea.smem %s0, 22
  %s45 = sld [smem:[%s44]]
  %s46 = scalar_lea.smem %s0, 23
  %s47 = sld [smem:[%s46]]
  %s48 = scalar_lea.smem %s0, 24
  %s49 = sld [smem:[%s48]]
  %s50 = scalar_lea.smem %s0, 25
  %s51 = sld [smem:[%s50]]
  %s52 = scalar_lea.smem %s0, 26
  %s53 = sld [smem:[%s52]]
  %s54 = scalar_lea.smem %s0, 27
  %s55 = sld [smem:[%s54]]
  %s56 = scalar_lea.smem %s0, 28
  %s57 = sld [smem:[%s56]]
  %s58 = scalar_lea.smem %s0, 29
  %s59 = sld [smem:[%s58]]
  %s60 = scalar_lea.smem %s0, 30
  %s61 = sld [smem:[%s60]]
  %s62 = scalar_lea.smem %s0, 31
  %s63 = sld [smem:[%s62]]
  %s64 = scalar_lea.smem %s0, 32
  %s65 = sld [smem:[%s64]]
  %s66 = scalar_lea.smem %s0, 33
  %s67 = sld [smem:[%s66]]
  %s68 = scalar_lea.smem %s0, 34
  %s69 = sld [smem:[%s68]]
  %s70 = scalar_lea.smem %s0, 35
  %s71 = sld [smem:[%s70]]
  %s72 = scalar_lea.smem %s0, 36
  %s73 = sld [smem:[%s72]]
  %s74 = scalar_lea.smem %s0, 37
  %s75 = sld [smem:[%s74]]
  %s76 = scalar_lea.smem %s0, 38
  %s77 = sld [smem:[%s76]]
  %s78 = scalar_lea.smem %s0, 39
  %s79 = sld [smem:[%s78]]
  %s80 = sld [smem:[#allocation0]]
  $region276: #{forward.1} parent=0
    _
  %s82 = ssub.s32 1, %s80
  %s83 = scalar_select 0, %s82, %s80
  $region1: #{forward.1} parent=0
    #allocation2 [shape = 'u8[4096]{0}', space=vmem, size = 0x1000, scoped, tag = 'input window, operand 6, single buffered']
    #allocation3 [shape = 's32[1]{0}', space=sflag, size = 0x4, scoped, tag = 'scoped memory for forward.1']
    #allocation4 [shape = 's32[1]{0}', space=sflag, size = 0x4, scoped, tag = 'scoped memory for forward.1']
    #allocation5 [shape = 'u8[4096]{0}', space=vmem, size = 0x1000, scoped, tag = 'input window, operand 7, single buffered']
    #allocation6 [shape = 's32[1]{0}', space=sflag, size = 0x4, scoped, tag = 'scoped memory for forward.1']
    #allocation7 [shape = 'u8[4096]{0}', space=vmem, size = 0x1000, scoped, tag = 'input window, operand 8, single buffered']
    #allocation8 [shape = 'u8[262144]{0}', space=vmem, size = 0x40000, scoped, tag = 'input window, operand 9, single buffered']
    #allocation9 [shape = 's32[1]{0}', space=sflag, size = 0x4, scoped, tag = 'scoped memory for forward.1']
    #allocation10 [shape = 'u8[4096]{0}', space=vmem, size = 0x1000, scoped, tag = 'input window, operand 10, single buffered']
    #allocation11 [shape = 'u8[4096]{0}', space=vmem, size = 0x1000, scoped, tag = 'input window, operand 12, single buffered']
    #allocation12 [shape = 's32[1]{0}', space=sflag, size = 0x4, scoped, tag = 'scoped memory for forward.1']
    #allocation13 [shape = 'u8[4096]{0}', space=vmem, size = 0x1000, scoped, tag = 'input window, operand 13, single buffered']
    #allocation14 [shape = 'u8[4096]{0}', space=vmem, size = 0x1000, scoped, tag = 'input window, operand 14, single buffered']
    #allocation15 [shape = 's32[1]{0}', space=sflag, size = 0x4, scoped, tag = 'scoped memory for forward.1']
    #allocation16 [shape = 'u8[262144]{0}', space=vmem, size = 0x40000, scoped, tag = 'input window, operand 19, single buffered']
    #allocation17 [shape = 'u8[4096]{0}', space=vmem, size = 0x1000, scoped, tag = 'input window, operand 20, single buffered']
    #allocation18 [shape = 's32[1]{0}', space=sflag, size = 0x4, scoped, tag = 'scoped memory for forward.1']
    #allocation19 [shape = 'u8[4096]{0}', space=vmem, size = 0x1000, scoped, tag = 'input window, operand 21, single buffered']
    #allocation20 [shape = 'u8[4096]{0}', space=vmem, size = 0x1000, scoped, tag = 'input window, operand 22, single buffered']
    #allocation21 [shape = 's32[1]{0}', space=sflag, size = 0x4, scoped, tag = 'scoped memory for forward.1']
    #allocation22 [shape = 'u8[524288]{0}', space=vmem, size = 0x80000, scoped, tag = 'input window, operand 23, single buffered']
    #allocation23 [shape = 'u8[8192]{0}', space=vmem, size = 0x2000, scoped, tag = 'input window, operand 24, single buffered']
    #allocation24 [shape = 's32[1]{0}', space=sflag, size = 0x4, scoped, tag = 'scoped memory for forward.1']
    #allocation25 [shape = 'u8[262144]{0}', space=vmem, size = 0x40000, scoped, tag = 'input window, operand 25, single buffered']
    #allocation26 [shape = 'u8[4096]{0}', space=vmem, size = 0x1000, scoped, tag = 'input window, operand 26, single buffered']
    #allocation27 [shape = 's32[1]{0}', space=sflag, size = 0x4, scoped, tag = 'scoped memory for forward.1']
    #allocation28 [shape = 'u8[4096]{0}', space=vmem, size = 0x1000, scoped, tag = 'input window, operand 27, single buffered']
    #allocation29 [shape = 'u8[4096]{0}', space=vmem, size = 0x1000, scoped, tag = 'input window, operand 28, single buffered']
    #allocation30 [shape = 's32[1]{0}', space=sflag, size = 0x4, scoped, tag = 'scoped memory for forward.1']
    #allocation31 [shape = 'u8[262144]{0}', space=vmem, size = 0x40000, scoped, tag = 'input window, operand 29, single buffered']
    #allocation32 [shape = 'u8[4096]{0}', space=vmem, size = 0x1000, scoped, tag = 'input window, operand 30, single buffered']
    #allocation33 [shape = 's32[1]{0}', space=sflag, size = 0x4, scoped, tag = 'scoped memory for forward.1']
    #allocation34 [shape = 'u8[4096]{0}', space=vmem, size = 0x1000, scoped, tag = 'input window, operand 32, single buffered']
    #allocation35 [shape = 'u8[4096]{0}', space=vmem, size = 0x1000, scoped, tag = 'input window, operand 33, single buffered']
    #allocation36 [shape = 's32[1]{0}', space=sflag, size = 0x4, scoped, tag = 'scoped memory for forward.1']
    #allocation37 [shape = 'u8[4096]{0}', space=vmem, size = 0x1000, scoped, tag = 'input window, operand 34, single buffered']
    #allocation38 [shape = 'u8[512]{0}', space=vmem, size = 0x400, scoped, tag = 'input window, operand 36, single buffered']
    #allocation39 [shape = 's32[1]{0}', space=sflag, size = 0x4, scoped, tag = 'scoped memory for forward.1']
    #allocation40 [shape = 'u8[1024]{0}', space=vmem, size = 0x400, scoped, tag = 'output window, operand 0, single buffered']
    %84 = vsyncpa [#allocation3], 0
    %85 = vsyncpa [#allocation6], 0
    %86 = vsyncpa [#allocation9], 0
    %87 = vsyncpa [#allocation12], 0
    %88 = vsyncpa [#allocation15], 0
    %89 = vsyncpa [#allocation18], 0
    %90 = vsyncpa [#allocation21], 0
    %91 = vsyncpa [#allocation24], 0
    %92 = vsyncpa [#allocation27], 0
    %93 = vsyncpa [#allocation30], 0
    %94 = vsyncpa [#allocation33], 0
    %95 = vsyncpa [#allocation36], 0
    %96 = vsyncpa [#allocation39], 0
    %97 = vsyncpa [#allocation4], 0
    // Predicated region
    $region2: #{forward.1} parent=1 // pred_check
      _
    $region3: #{forward.1} parent=1 // pred_check_branch
      %99 = sbr.rel (0) target = $region5
    $region4: #{forward.1} parent=1 // pred_region
      _
    $region5: #{forward.1} parent=1 // pred_fallthru
      _
    // Predicated region
    $region6: #{forward.1} parent=1 // pred_check
      _
    $region7: #{forward.1} parent=1 // pred_check_branch
      %101 = sbr.rel (0) target = $region9
    $region8: #{forward.1} parent=1 // pred_region
      _
    $region9: #{forward.1} parent=1 // pred_fallthru
      _
    // Predicated region
    $region10: #{forward.1} parent=1 // pred_check
      _
    $region11: #{forward.1} parent=1 // pred_check_branch
      %103 = sbr.rel (0) target = $region13
    $region12: #{forward.1} parent=1 // pred_region
      _
    $region13: #{forward.1} parent=1 // pred_fallthru
      _
    // Predicated region
    $region14: #{forward.1} parent=1 // pred_check
      _
    $region15: #{forward.1} parent=1 // pred_check_branch
      %105 = sbr.rel (0) target = $region17
    $region16: #{forward.1} parent=1 // pred_region
      _
    $region17: #{forward.1} parent=1 // pred_fallthru
      _
    // Predicated region
    $region18: #{forward.1} parent=1 // pred_check
      _
    $region19: #{forward.1} parent=1 // pred_check_branch
      %107 = sbr.rel (0) target = $region21
    $region20: #{forward.1} parent=1 // pred_region
      _
    $region21: #{forward.1} parent=1 // pred_fallthru
      _
    // Predicated region
    $region22: #{forward.1} parent=1 // pred_check
      _
    $region23: #{forward.1} parent=1 // pred_check_branch
      %109 = sbr.rel (0) target = $region25
    $region24: #{forward.1} parent=1 // pred_region
      _
    $region25: #{forward.1} parent=1 // pred_fallthru
      _
    // Predicated region
    $region26: #{forward.1} parent=1 // pred_check
      _
    $region27: #{forward.1} parent=1 // pred_check_branch
      %111 = sbr.rel (0) target = $region29
    $region28: #{forward.1} parent=1 // pred_region
      %113 = vsyncadd [#allocation3], 0
      %s114 = sshll.u32 %s13, 4
      %s115 = int_to_ptr.hbm [resolvable:$true] %s114
      %s116 = sshll.u32 [#allocation2], 4
      %s117 = int_to_ptr.vmem [resolvable:$true] %s116
      %122 = dma.hbm_to_vmem [thread:$0]  %s115, 128, %s117, [#allocation3], 16, 16, 1
    $region29: #{forward.1} parent=1 // pred_fallthru
      _
    // Predicated region
    $region30: #{forward.1} parent=1 // pred_check
      _
    $region31: #{forward.1} parent=1 // pred_check_branch
      %124 = sbr.rel (0) target = $region33
    $region32: #{forward.1} parent=1 // pred_region
      %126 = vsyncadd [#allocation6], 0
      %s127 = sshll.u32 %s15, 4
      %s128 = int_to_ptr.hbm [resolvable:$true] %s127
      %s129 = sshll.u32 [#allocation5], 4
      %s130 = int_to_ptr.vmem [resolvable:$true] %s129
      %135 = dma.hbm_to_vmem [thread:$0]  %s128, 128, %s130, [#allocation6], 16, 16, 1
    $region33: #{forward.1} parent=1 // pred_fallthru
      _
    // Predicated region
    $region34: #{forward.1} parent=1 // pred_check
      _
    $region35: #{forward.1} parent=1 // pred_check_branch
      %137 = sbr.rel (0) target = $region37
    $region36: #{forward.1} parent=1 // pred_region
      %139 = vsyncadd [#allocation6], 0
      %s140 = sshll.u32 %s17, 4
      %s141 = int_to_ptr.hbm [resolvable:$true] %s140
      %s142 = sshll.u32 [#allocation7], 4
      %s143 = int_to_ptr.vmem [resolvable:$true] %s142
      %148 = dma.hbm_to_vmem [thread:$0]  %s141, 128, %s143, [#allocation6], 16, 16, 1
    $region37: #{forward.1} parent=1 // pred_fallthru
      _
    // Predicated region
    $region38: #{forward.1} parent=1 // pred_check
      _
    $region39: #{forward.1} parent=1 // pred_check_branch
      %150 = sbr.rel (0) target = $region41
    $region40: #{forward.1} parent=1 // pred_region
      %152 = vsyncadd [#allocation9], 0
      %s153 = sshll.u32 %s19, 4
      %s154 = int_to_ptr.hbm [resolvable:$true] %s153
      %s155 = sshll.u32 [#allocation8], 4
      %s156 = int_to_ptr.vmem [resolvable:$true] %s155
      %161 = dma.hbm_to_vmem [thread:$0]  %s154, 8192, %s156, [#allocation9], 128, 128, 8
    $region41: #{forward.1} parent=1 // pred_fallthru
      _
    // Predicated region
    $region42: #{forward.1} parent=1 // pred_check
      _
    $region43: #{forward.1} parent=1 // pred_check_branch
      %163 = sbr.rel (0) target = $region45
    $region44: #{forward.1} parent=1 // pred_region
      %165 = vsyncadd [#allocation9], 0
      %s166 = sshll.u32 %s21, 4
      %s167 = int_to_ptr.hbm [resolvable:$true] %s166
      %s168 = sshll.u32 [#allocation10], 4
      %s169 = int_to_ptr.vmem [resolvable:$true] %s168
      %174 = dma.hbm_to_vmem [thread:$0]  %s167, 128, %s169, [#allocation9], 16, 16, 1
    $region45: #{forward.1} parent=1 // pred_fallthru
      _
    // Predicated region
    $region46: #{forward.1} parent=1 // pred_check
      _
    $region47: #{forward.1} parent=1 // pred_check_branch
      %176 = sbr.rel (0) target = $region49
    $region48: #{forward.1} parent=1 // pred_region
      _
    $region49: #{forward.1} parent=1 // pred_fallthru
      _
    // Predicated region
    $region50: #{forward.1} parent=1 // pred_check
      _
    $region51: #{forward.1} parent=1 // pred_check_branch
      %178 = sbr.rel (0) target = $region53
    $region52: #{forward.1} parent=1 // pred_region
      %180 = vsyncadd [#allocation12], 0
      %s181 = sshll.u32 %s25, 4
      %s182 = int_to_ptr.hbm [resolvable:$true] %s181
      %s183 = sshll.u32 [#allocation11], 4
      %s184 = int_to_ptr.vmem [resolvable:$true] %s183
      %189 = dma.hbm_to_vmem [thread:$0]  %s182, 128, %s184, [#allocation12], 16, 16, 1
    $region53: #{forward.1} parent=1 // pred_fallthru
      _
    // Predicated region
    $region54: #{forward.1} parent=1 // pred_check
      _
    $region55: #{forward.1} parent=1 // pred_check_branch
      %191 = sbr.rel (0) target = $region57
    $region56: #{forward.1} parent=1 // pred_region
      %193 = vsyncadd [#allocation12], 0
      %s194 = sshll.u32 %s27, 4
      %s195 = int_to_ptr.hbm [resolvable:$true] %s194
      %s196 = sshll.u32 [#allocation13], 4
      %s197 = int_to_ptr.vmem [resolvable:$true] %s196
      %202 = dma.hbm_to_vmem [thread:$0]  %s195, 128, %s197, [#allocation12], 16, 16, 1
    $region57: #{forward.1} parent=1 // pred_fallthru
      _
    // Predicated region
    $region58: #{forward.1} parent=1 // pred_check
      _
    $region59: #{forward.1} parent=1 // pred_check_branch
      %204 = sbr.rel (0) target = $region61
    $region60: #{forward.1} parent=1 // pred_region
      %206 = vsyncadd [#allocation15], 0
      %s207 = sshll.u32 %s29, 4
      %s208 = int_to_ptr.hbm [resolvable:$true] %s207
      %s209 = sshll.u32 [#allocation14], 4
      %s210 = int_to_ptr.vmem [resolvable:$true] %s209
      %215 = dma.hbm_to_vmem [thread:$0]  %s208, 128, %s210, [#allocation15], 16, 16, 1
    $region61: #{forward.1} parent=1 // pred_fallthru
      _
    // Predicated region
    $region62: #{forward.1} parent=1 // pred_check
      _
    $region63: #{forward.1} parent=1 // pred_check_branch
      %217 = sbr.rel (0) target = $region65
    $region64: #{forward.1} parent=1 // pred_region
      _
    $region65: #{forward.1} parent=1 // pred_fallthru
      _
    // Predicated region
    $region66: #{forward.1} parent=1 // pred_check
      _
    $region67: #{forward.1} parent=1 // pred_check_branch
      %219 = sbr.rel (0) target = $region69
    $region68: #{forward.1} parent=1 // pred_region
      _
    $region69: #{forward.1} parent=1 // pred_fallthru
      _
    // Predicated region
    $region70: #{forward.1} parent=1 // pred_check
      _
    $region71: #{forward.1} parent=1 // pred_check_branch
      %221 = sbr.rel (0) target = $region73
    $region72: #{forward.1} parent=1 // pred_region
      _
    $region73: #{forward.1} parent=1 // pred_fallthru
      _
    // Predicated region
    $region74: #{forward.1} parent=1 // pred_check
      _
    $region75: #{forward.1} parent=1 // pred_check_branch
      %223 = sbr.rel (0) target = $region77
    $region76: #{forward.1} parent=1 // pred_region
      _
    $region77: #{forward.1} parent=1 // pred_fallthru
      _
    // Predicated region
    $region78: #{forward.1} parent=1 // pred_check
      _
    $region79: #{forward.1} parent=1 // pred_check_branch
      %225 = sbr.rel (0) target = $region81
    $region80: #{forward.1} parent=1 // pred_region
      %227 = vsyncadd [#allocation15], 0
      %s228 = sshll.u32 %s39, 4
      %s229 = int_to_ptr.hbm [resolvable:$true] %s228
      %s230 = sshll.u32 [#allocation16], 4
      %s231 = int_to_ptr.vmem [resolvable:$true] %s230
      %236 = dma.hbm_to_vmem [thread:$0]  %s229, 8192, %s231, [#allocation15], 128, 128, 8
    $region81: #{forward.1} parent=1 // pred_fallthru
      _
    // Predicated region
    $region82: #{forward.1} parent=1 // pred_check
      _
    $region83: #{forward.1} parent=1 // pred_check_branch
      %238 = sbr.rel (0) target = $region85
    $region84: #{forward.1} parent=1 // pred_region
      %240 = vsyncadd [#allocation18], 0
      %s241 = sshll.u32 %s41, 4
      %s242 = int_to_ptr.hbm [resolvable:$true] %s241
      %s243 = sshll.u32 [#allocation17], 4
      %s244 = int_to_ptr.vmem [resolvable:$true] %s243
      %249 = dma.hbm_to_vmem [thread:$0]  %s242, 128, %s244, [#allocation18], 16, 16, 1
    $region85: #{forward.1} parent=1 // pred_fallthru
      _
    // Predicated region
    $region86: #{forward.1} parent=1 // pred_check
      _
    $region87: #{forward.1} parent=1 // pred_check_branch
      %251 = sbr.rel (0) target = $region89
    $region88: #{forward.1} parent=1 // pred_region
      %253 = vsyncadd [#allocation18], 0
      %s254 = sshll.u32 %s43, 4
      %s255 = int_to_ptr.hbm [resolvable:$true] %s254
      %s256 = sshll.u32 [#allocation19], 4
      %s257 = int_to_ptr.vmem [resolvable:$true] %s256
      %262 = dma.hbm_to_vmem [thread:$0]  %s255, 128, %s257, [#allocation18], 16, 16, 1
    $region89: #{forward.1} parent=1 // pred_fallthru
      _
    // Predicated region
    $region90: #{forward.1} parent=1 // pred_check
      _
    $region91: #{forward.1} parent=1 // pred_check_branch
      %264 = sbr.rel (0) target = $region93
    $region92: #{forward.1} parent=1 // pred_region
      %266 = vsyncadd [#allocation21], 0
      %s267 = sshll.u32 %s45, 4
      %s268 = int_to_ptr.hbm [resolvable:$true] %s267
      %s269 = sshll.u32 [#allocation20], 4
      %s270 = int_to_ptr.vmem [resolvable:$true] %s269
      %275 = dma.hbm_to_vmem [thread:$0]  %s268, 128, %s270, [#allocation21], 16, 16, 1
    $region93: #{forward.1} parent=1 // pred_fallthru
      _
    // Predicated region
    $region94: #{forward.1} parent=1 // pred_check
      _
    $region95: #{forward.1} parent=1 // pred_check_branch
      %277 = sbr.rel (0) target = $region97
    $region96: #{forward.1} parent=1 // pred_region
      %279 = vsyncadd [#allocation21], 0
      %s280 = sshll.u32 %s47, 4
      %s281 = int_to_ptr.hbm [resolvable:$true] %s280
      %s282 = sshll.u32 [#allocation22], 4
      %s283 = int_to_ptr.vmem [resolvable:$true] %s282
      %288 = dma.hbm_to_vmem [thread:$0]  %s281, 16384, %s283, [#allocation21], 256, 256, 16
    $region97: #{forward.1} parent=1 // pred_fallthru
      _
    // Predicated region
    $region98: #{forward.1} parent=1 // pred_check
      _
    $region99: #{forward.1} parent=1 // pred_check_branch
      %290 = sbr.rel (0) target = $region101
    $region100: #{forward.1} parent=1 // pred_region
      %292 = vsyncadd [#allocation24], 0
      %s293 = sshll.u32 %s49, 4
      %s294 = int_to_ptr.hbm [resolvable:$true] %s293
      %s295 = sshll.u32 [#allocation23], 4
      %s296 = int_to_ptr.vmem [resolvable:$true] %s295
      %301 = dma.hbm_to_vmem [thread:$0]  %s294, 256, %s296, [#allocation24], 32, 32, 2
    $region101: #{forward.1} parent=1 // pred_fallthru
      _
    // Predicated region
    $region102: #{forward.1} parent=1 // pred_check
      _
    $region103: #{forward.1} parent=1 // pred_check_branch
      %303 = sbr.rel (0) target = $region105
    $region104: #{forward.1} parent=1 // pred_region
      %305 = vsyncadd [#allocation24], 0
      %s306 = sshll.u32 %s51, 4
      %s307 = int_to_ptr.hbm [resolvable:$true] %s306
      %s308 = sshll.u32 [#allocation25], 4
      %s309 = int_to_ptr.vmem [resolvable:$true] %s308
      %314 = dma.hbm_to_vmem [thread:$0]  %s307, 8192, %s309, [#allocation24], 128, 128, 8
    $region105: #{forward.1} parent=1 // pred_fallthru
      _
    // Predicated region
    $region106: #{forward.1} parent=1 // pred_check
      _
    $region107: #{forward.1} parent=1 // pred_check_branch
      %316 = sbr.rel (0) target = $region109
    $region108: #{forward.1} parent=1 // pred_region
      %318 = vsyncadd [#allocation27], 0
      %s319 = sshll.u32 %s53, 4
      %s320 = int_to_ptr.hbm [resolvable:$true] %s319
      %s321 = sshll.u32 [#allocation26], 4
      %s322 = int_to_ptr.vmem [resolvable:$true] %s321
      %327 = dma.hbm_to_vmem [thread:$0]  %s320, 128, %s322, [#allocation27], 16, 16, 1
    $region109: #{forward.1} parent=1 // pred_fallthru
      _
    // Predicated region
    $region110: #{forward.1} parent=1 // pred_check
      _
    $region111: #{forward.1} parent=1 // pred_check_branch
      %329 = sbr.rel (0) target = $region113
    $region112: #{forward.1} parent=1 // pred_region
      %331 = vsyncadd [#allocation27], 0
      %s332 = sshll.u32 %s55, 4
      %s333 = int_to_ptr.hbm [resolvable:$true] %s332
      %s334 = sshll.u32 [#allocation28], 4
      %s335 = int_to_ptr.vmem [resolvable:$true] %s334
      %340 = dma.hbm_to_vmem [thread:$0]  %s333, 128, %s335, [#allocation27], 16, 16, 1
    $region113: #{forward.1} parent=1 // pred_fallthru
      _
    // Predicated region
    $region114: #{forward.1} parent=1 // pred_check
      _
    $region115: #{forward.1} parent=1 // pred_check_branch
      %342 = sbr.rel (0) target = $region117
    $region116: #{forward.1} parent=1 // pred_region
      %344 = vsyncadd [#allocation30], 0
      %s345 = sshll.u32 %s57, 4
      %s346 = int_to_ptr.hbm [resolvable:$true] %s345
      %s347 = sshll.u32 [#allocation29], 4
      %s348 = int_to_ptr.vmem [resolvable:$true] %s347
      %353 = dma.hbm_to_vmem [thread:$0]  %s346, 128, %s348, [#allocation30], 16, 16, 1
    $region117: #{forward.1} parent=1 // pred_fallthru
      _
    // Predicated region
    $region118: #{forward.1} parent=1 // pred_check
      _
    $region119: #{forward.1} parent=1 // pred_check_branch
      %355 = sbr.rel (0) target = $region121
    $region120: #{forward.1} parent=1 // pred_region
      %357 = vsyncadd [#allocation30], 0
      %s358 = sshll.u32 %s59, 4
      %s359 = int_to_ptr.hbm [resolvable:$true] %s358
      %s360 = sshll.u32 [#allocation31], 4
      %s361 = int_to_ptr.vmem [resolvable:$true] %s360
      %366 = dma.hbm_to_vmem [thread:$0]  %s359, 8192, %s361, [#allocation30], 128, 128, 8
    $region121: #{forward.1} parent=1 // pred_fallthru
      _
    // Predicated region
    $region122: #{forward.1} parent=1 // pred_check
      _
    $region123: #{forward.1} parent=1 // pred_check_branch
      %368 = sbr.rel (0) target = $region125
    $region124: #{forward.1} parent=1 // pred_region
      %370 = vsyncadd [#allocation33], 0
      %s371 = sshll.u32 %s61, 4
      %s372 = int_to_ptr.hbm [resolvable:$true] %s371
      %s373 = sshll.u32 [#allocation32], 4
      %s374 = int_to_ptr.vmem [resolvable:$true] %s373
      %379 = dma.hbm_to_vmem [thread:$0]  %s372, 128, %s374, [#allocation33], 16, 16, 1
    $region125: #{forward.1} parent=1 // pred_fallthru
      _
    // Predicated region
    $region126: #{forward.1} parent=1 // pred_check
      _
    $region127: #{forward.1} parent=1 // pred_check_branch
      %381 = sbr.rel (0) target = $region129
    $region128: #{forward.1} parent=1 // pred_region
      _
    $region129: #{forward.1} parent=1 // pred_fallthru
      _
    // Predicated region
    $region130: #{forward.1} parent=1 // pred_check
      _
    $region131: #{forward.1} parent=1 // pred_check_branch
      %383 = sbr.rel (0) target = $region133
    $region132: #{forward.1} parent=1 // pred_region
      %385 = vsyncadd [#allocation33], 0
      %s386 = sshll.u32 %s65, 4
      %s387 = int_to_ptr.hbm [resolvable:$true] %s386
      %s388 = sshll.u32 [#allocation34], 4
      %s389 = int_to_ptr.vmem [resolvable:$true] %s388
      %394 = dma.hbm_to_vmem [thread:$0]  %s387, 128, %s389, [#allocation33], 16, 16, 1
    $region133: #{forward.1} parent=1 // pred_fallthru
      _
    // Predicated region
    $region134: #{forward.1} parent=1 // pred_check
      _
    $region135: #{forward.1} parent=1 // pred_check_branch
      %396 = sbr.rel (0) target = $region137
    $region136: #{forward.1} parent=1 // pred_region
      %398 = vsyncadd [#allocation36], 0
      %s399 = sshll.u32 %s67, 4
      %s400 = int_to_ptr.hbm [resolvable:$true] %s399
      %s401 = sshll.u32 [#allocation35], 4
      %s402 = int_to_ptr.vmem [resolvable:$true] %s401
      %407 = dma.hbm_to_vmem [thread:$0]  %s400, 128, %s402, [#allocation36], 16, 16, 1
    $region137: #{forward.1} parent=1 // pred_fallthru
      _
    // Predicated region
    $region138: #{forward.1} parent=1 // pred_check
      _
    $region139: #{forward.1} parent=1 // pred_check_branch
      %409 = sbr.rel (0) target = $region141
    $region140: #{forward.1} parent=1 // pred_region
      %411 = vsyncadd [#allocation36], 0
      %s412 = sshll.u32 %s69, 4
      %s413 = int_to_ptr.hbm [resolvable:$true] %s412
      %s414 = sshll.u32 [#allocation37], 4
      %s415 = int_to_ptr.vmem [resolvable:$true] %s414
      %420 = dma.hbm_to_vmem [thread:$0]  %s413, 128, %s415, [#allocation36], 16, 16, 1
    $region141: #{forward.1} parent=1 // pred_fallthru
      _
    // Predicated region
    $region142: #{forward.1} parent=1 // pred_check
      _
    $region143: #{forward.1} parent=1 // pred_check_branch
      %422 = sbr.rel (0) target = $region145
    $region144: #{forward.1} parent=1 // pred_region
      _
    $region145: #{forward.1} parent=1 // pred_fallthru
      _
    // Predicated region
    $region146: #{forward.1} parent=1 // pred_check
      _
    $region147: #{forward.1} parent=1 // pred_check_branch
      %424 = sbr.rel (0) target = $region149
    $region148: #{forward.1} parent=1 // pred_region
      %426 = vsyncadd [#allocation39], 0
      %s428 = sshll.u32 %s73, 4
      %s429 = int_to_ptr.hbm [resolvable:$true] %s428
      %s430 = sshll.u32 [#allocation38], 4
      %s431 = int_to_ptr.vmem [resolvable:$true] %s430
      %433 = dma.hbm_to_vmem [thread:$0]  %s429, 16, %s431, [#allocation39]
    $region149: #{forward.1} parent=1 // pred_fallthru
      _
    // Predicated region
    $region150: #{forward.1} parent=1 // pred_check
      _
    $region151: #{forward.1} parent=1 // pred_check_branch
      %435 = sbr.rel (0) target = $region153
    $region152: #{forward.1} parent=1 // pred_region
      _
    $region153: #{forward.1} parent=1 // pred_fallthru
      _
    // Predicated region
    $region154: #{forward.1} parent=1 // pred_check
      _
    $region155: #{forward.1} parent=1 // pred_check_branch
      %437 = sbr.rel (0) target = $region157
    $region156: #{forward.1} parent=1 // pred_region
      _
    $region157: #{forward.1} parent=1 // pred_fallthru
      _
    // Predicated region
    $region158: #{forward.1} parent=1 // pred_check
      _
    $region159: #{forward.1} parent=1 // pred_check_branch
      %439 = sbr.rel (0) target = $region161
    $region160: #{forward.1} parent=1 // pred_region
      %441 = dma.done [#allocation3], 128
    $region161: #{forward.1} parent=1 // pred_fallthru
      _
    // Predicated region
    $region162: #{forward.1} parent=1 // pred_check
      _
    $region163: #{forward.1} parent=1 // pred_check_branch
      %443 = sbr.rel (0) target = $region165
    $region164: #{forward.1} parent=1 // pred_region
      %445 = dma.done [#allocation6], 128
    $region165: #{forward.1} parent=1 // pred_fallthru
      _
    // Predicated region
    $region166: #{forward.1} parent=1 // pred_check
      _
    $region167: #{forward.1} parent=1 // pred_check_branch
      %447 = sbr.rel (0) target = $region169
    $region168: #{forward.1} parent=1 // pred_region
      %449 = dma.done [#allocation6], 128
    $region169: #{forward.1} parent=1 // pred_fallthru
      _
    // Predicated region
    $region170: #{forward.1} parent=1 // pred_check
      _
    $region171: #{forward.1} parent=1 // pred_check_branch
      %451 = sbr.rel (0) target = $region173
    $region172: #{forward.1} parent=1 // pred_region
      %453 = dma.done [#allocation9], 8192
    $region173: #{forward.1} parent=1 // pred_fallthru
      _
    // Predicated region
    $region174: #{forward.1} parent=1 // pred_check
      _
    $region175: #{forward.1} parent=1 // pred_check_branch
      %455 = sbr.rel (0) target = $region177
    $region176: #{forward.1} parent=1 // pred_region
      %457 = dma.done [#allocation9], 128
    $region177: #{forward.1} parent=1 // pred_fallthru
      _
    // Predicated region
    $region178: #{forward.1} parent=1 // pred_check
      _
    $region179: #{forward.1} parent=1 // pred_check_branch
      %459 = sbr.rel (0) target = $region181
    $region180: #{forward.1} parent=1 // pred_region
      %461 = dma.done [#allocation12], 128
    $region181: #{forward.1} parent=1 // pred_fallthru
      _
    // Predicated region
    $region182: #{forward.1} parent=1 // pred_check
      _
    $region183: #{forward.1} parent=1 // pred_check_branch
      %463 = sbr.rel (0) target = $region185
    $region184: #{forward.1} parent=1 // pred_region
      %465 = dma.done [#allocation12], 128
    $region185: #{forward.1} parent=1 // pred_fallthru
      _
    // Predicated region
    $region186: #{forward.1} parent=1 // pred_check
      _
    $region187: #{forward.1} parent=1 // pred_check_branch
      %467 = sbr.rel (0) target = $region189
    $region188: #{forward.1} parent=1 // pred_region
      %469 = dma.done [#allocation15], 128
    $region189: #{forward.1} parent=1 // pred_fallthru
      _
    // Predicated region
    $region190: #{forward.1} parent=1 // pred_check
      _
    $region191: #{forward.1} parent=1 // pred_check_branch
      %471 = sbr.rel (0) target = $region193
    $region192: #{forward.1} parent=1 // pred_region
      %473 = dma.done [#allocation15], 8192
    $region193: #{forward.1} parent=1 // pred_fallthru
      _
    // Predicated region
    $region194: #{forward.1} parent=1 // pred_check
      _
    $region195: #{forward.1} parent=1 // pred_check_branch
      %475 = sbr.rel (0) target = $region197
    $region196: #{forward.1} parent=1 // pred_region
      %477 = dma.done [#allocation18], 128
    $region197: #{forward.1} parent=1 // pred_fallthru
      _
    // Predicated region
    $region198: #{forward.1} parent=1 // pred_check
      _
    $region199: #{forward.1} parent=1 // pred_check_branch
      %479 = sbr.rel (0) target = $region201
    $region200: #{forward.1} parent=1 // pred_region
      %481 = dma.done [#allocation18], 128
    $region201: #{forward.1} parent=1 // pred_fallthru
      _
    // Predicated region
    $region202: #{forward.1} parent=1 // pred_check
      _
    $region203: #{forward.1} parent=1 // pred_check_branch
      %483 = sbr.rel (0) target = $region205
    $region204: #{forward.1} parent=1 // pred_region
      %485 = dma.done [#allocation21], 128
    $region205: #{forward.1} parent=1 // pred_fallthru
      _
    // Predicated region
    $region206: #{forward.1} parent=1 // pred_check
      _
    $region207: #{forward.1} parent=1 // pred_check_branch
      %487 = sbr.rel (0) target = $region209
    $region208: #{forward.1} parent=1 // pred_region
      %489 = dma.done [#allocation21], 16384
    $region209: #{forward.1} parent=1 // pred_fallthru
      _
    // Predicated region
    $region210: #{forward.1} parent=1 // pred_check
      _
    $region211: #{forward.1} parent=1 // pred_check_branch
      %491 = sbr.rel (0) target = $region213
    $region212: #{forward.1} parent=1 // pred_region
      %493 = dma.done [#allocation24], 256
    $region213: #{forward.1} parent=1 // pred_fallthru
      _
    // Predicated region
    $region214: #{forward.1} parent=1 // pred_check
      _
    $region215: #{forward.1} parent=1 // pred_check_branch
      %495 = sbr.rel (0) target = $region217
    $region216: #{forward.1} parent=1 // pred_region
      %497 = dma.done [#allocation24], 8192
    $region217: #{forward.1} parent=1 // pred_fallthru
      _
    // Predicated region
    $region218: #{forward.1} parent=1 // pred_check
      _
    $region219: #{forward.1} parent=1 // pred_check_branch
      %499 = sbr.rel (0) target = $region221
    $region220: #{forward.1} parent=1 // pred_region
      %501 = dma.done [#allocation27], 128
    $region221: #{forward.1} parent=1 // pred_fallthru
      _
    // Predicated region
    $region222: #{forward.1} parent=1 // pred_check
      _
    $region223: #{forward.1} parent=1 // pred_check_branch
      %503 = sbr.rel (0) target = $region225
    $region224: #{forward.1} parent=1 // pred_region
      %505 = dma.done [#allocation27], 128
    $region225: #{forward.1} parent=1 // pred_fallthru
      _
    // Predicated region
    $region226: #{forward.1} parent=1 // pred_check
      _
    $region227: #{forward.1} parent=1 // pred_check_branch
      %507 = sbr.rel (0) target = $region229
    $region228: #{forward.1} parent=1 // pred_region
      %509 = dma.done [#allocation30], 128
    $region229: #{forward.1} parent=1 // pred_fallthru
      _
    // Predicated region
    $region230: #{forward.1} parent=1 // pred_check
      _
    $region231: #{forward.1} parent=1 // pred_check_branch
      %511 = sbr.rel (0) target = $region233
    $region232: #{forward.1} parent=1 // pred_region
      %513 = dma.done [#allocation30], 8192
    $region233: #{forward.1} parent=1 // pred_fallthru
      _
    // Predicated region
    $region234: #{forward.1} parent=1 // pred_check
      _
    $region235: #{forward.1} parent=1 // pred_check_branch
      %515 = sbr.rel (0) target = $region237
    $region236: #{forward.1} parent=1 // pred_region
      %517 = dma.done [#allocation33], 128
    $region237: #{forward.1} parent=1 // pred_fallthru
      _
    // Predicated region
    $region238: #{forward.1} parent=1 // pred_check
      _
    $region239: #{forward.1} parent=1 // pred_check_branch
      %519 = sbr.rel (0) target = $region241
    $region240: #{forward.1} parent=1 // pred_region
      %521 = dma.done [#allocation33], 128
    $region241: #{forward.1} parent=1 // pred_fallthru
      _
    // Predicated region
    $region242: #{forward.1} parent=1 // pred_check
      _
    $region243: #{forward.1} parent=1 // pred_check_branch
      %523 = sbr.rel (0) target = $region245
    $region244: #{forward.1} parent=1 // pred_region
      %525 = dma.done [#allocation36], 128
    $region245: #{forward.1} parent=1 // pred_fallthru
      _
    // Predicated region
    $region246: #{forward.1} parent=1 // pred_check
      _
    $region247: #{forward.1} parent=1 // pred_check_branch
      %527 = sbr.rel (0) target = $region249
    $region248: #{forward.1} parent=1 // pred_region
      %529 = dma.done [#allocation36], 128
    $region249: #{forward.1} parent=1 // pred_fallthru
      _
    // Predicated region
    $region250: #{forward.1} parent=1 // pred_check
      _
    $region251: #{forward.1} parent=1 // pred_check_branch
      %531 = sbr.rel (0) target = $region253
    $region252: #{forward.1} parent=1 // pred_region
      %533 = dma.done [#allocation39], 16
    $region253: #{forward.1} parent=1 // pred_fallthru
      _
    %v534 = vld [vmem:[%s1] sm:$0xff]
    %v535 = vld [vmem:[%s1 + $0x8] sm:$0xff]
    %v536 = vld [vmem:[%s3] sm:$0xff]
    %v537 = vld [vmem:[%s3 + $0x8] sm:$0xff]
    %v538 = vld [vmem:[%s5] sm:$0x1]
    %v540 = vperm.slane %v538, 0
    %vm542 = vcmask 130048
    %v544 = vsel %vm542, %v534, 0
    %v547 = vsel %vm542, %v535, 0
    %549 = vmatpush.msra.mxu0 0.0
    %550 = vmatpush.msra.mxu0 0.0
    %551 = vmatpush.msra.mxu0 0.0
    %552 = vmatpush.msra.mxu0 0.0
    %553 = vmatpush.msra.mxu0 0.0
    %554 = vmatpush.msra.mxu0 0.0
    %555 = vmatpush.msra.mxu0 0.0
    %556 = vmatpush.msra.mxu0 0.0
    %557 = vmatpush.msra.mxu0 0.0
    %558 = vmatpush.msra.mxu0 0.0
    %559 = vmatpush.msra.mxu0 0.0
    %560 = vmatpush.msra.mxu0 0.0
    %561 = vmatpush.msra.mxu0 0.0
    %562 = vmatpush.msra.mxu0 0.0
    %563 = vmatpush.msra.mxu0 %v537
    %564 = vmatpush.msra.mxu0 %v536
    %565 = vmatmul.f32.gmra.mxu0 %v544
    %v566 = vpop.f32.mrf.mxu0
    %v567 = vadd.f32 %v540, %v566
    %568 = vmatmul.f32.gmra.mxu0 %v547
    %v569 = vpop.f32.mrf.mxu0
    %v570 = vadd.f32 %v540, %v569
    %571 = vdwg.mxu0
    loop: start=0, step=1, limit=8
    $region254: #{forward.1} parent=1 // loop_pre_header
      _
    $region255: #{forward.1} parent=1 // loop_header
      %s573 = sphi 0, %s577
      %p574 = scmp.ge.s32.totalorder %s573, 8
      %v578 = vphi %v567, %v1475
      %v579 = vphi %v570, %v1476
    $region256: #{forward.1} parent=1 // loop_header_branch
      %576 = sbr.rel (%p574) target = $region260
    $region257: #{forward.1} parent=1 // loop_body
      %s580 = smul.u32 %s573, 16
      %s581 = smul.addr %s580, 8
      %s582 = scalar_lea.vmem %s7, %s581
      %v583 = vld [vmem:[%s582] sm:$0xff]
      %v584 = vld [vmem:[%s582 + $0x8] sm:$0xff]
      %v585 = vld [vmem:[%s582 + $0x10] sm:$0xff]
      %v586 = vld [vmem:[%s582 + $0x18] sm:$0xff]
      %v587 = vld [vmem:[%s582 + $0x20] sm:$0xff]
      %v588 = vld [vmem:[%s582 + $0x28] sm:$0xff]
      %v589 = vld [vmem:[%s582 + $0x30] sm:$0xff]
      %v590 = vld [vmem:[%s582 + $0x38] sm:$0xff]
      %v591 = vld [vmem:[%s582 + $0x40] sm:$0xff]
      %v592 = vld [vmem:[%s582 + $0x48] sm:$0xff]
      %v593 = vld [vmem:[%s582 + $0x50] sm:$0xff]
      %v594 = vld [vmem:[%s582 + $0x58] sm:$0xff]
      %v595 = vld [vmem:[%s582 + $0x60] sm:$0xff]
      %v596 = vld [vmem:[%s582 + $0x68] sm:$0xff]
      %v597 = vld [vmem:[%s582 + $0x70] sm:$0xff]
      %v598 = vld [vmem:[%s582 + $0x78] sm:$0xff]
      %s599 = smul.u32 %s573, 2
      %s600 = scalar_lea.vmem %s9, %s599
      %v601 = vld [vmem:[%s600] sm:$0x3]
      %v603 = vperm.slane %v601, 0
      %v604 = vperm.slane %v601, 1
      %vm607 = vcmask 523264
      %v609 = vsel %vm607, %v578, 0
      %v612 = vsel %vm607, %v579, 0
      %614 = vmatpush.msra.mxu0 0.0
      %615 = vmatpush.msra.mxu0 0.0
      %616 = vmatpush.msra.mxu0 0.0
      %617 = vmatpush.msra.mxu0 0.0
      %618 = vmatpush.msra.mxu0 0.0
      %619 = vmatpush.msra.mxu0 0.0
      %620 = vmatpush.msra.mxu0 0.0
      %621 = vmatpush.msra.mxu0 0.0
      %622 = vmatpush.msra.mxu0 %v597
      %623 = vmatpush.msra.mxu0 %v595
      %624 = vmatpush.msra.mxu0 %v593
      %625 = vmatpush.msra.mxu0 %v591
      %626 = vmatpush.msra.mxu0 %v589
      %627 = vmatpush.msra.mxu0 %v587
      %628 = vmatpush.msra.mxu0 %v585
      %629 = vmatpush.msra.mxu0 %v583
      %630 = vmatmul.f32.gmra.mxu0 %v609
      %v631 = vpop.f32.mrf.mxu0
      %v632 = vadd.f32 %v603, %v631
      %633 = vmatmul.f32.gmra.mxu0 %v612
      %v634 = vpop.f32.mrf.mxu0
      %v635 = vadd.f32 %v603, %v634
      %636 = vdwg.mxu0
      %637 = vmatpush.msra.mxu0 0.0
      %638 = vmatpush.msra.mxu0 0.0
      %639 = vmatpush.msra.mxu0 0.0
      %640 = vmatpush.msra.mxu0 0.0
      %641 = vmatpush.msra.mxu0 0.0
      %642 = vmatpush.msra.mxu0 0.0
      %643 = vmatpush.msra.mxu0 0.0
      %644 = vmatpush.msra.mxu0 0.0
      %645 = vmatpush.msra.mxu0 %v598
      %646 = vmatpush.msra.mxu0 %v596
      %647 = vmatpush.msra.mxu0 %v594
      %648 = vmatpush.msra.mxu0 %v592
      %649 = vmatpush.msra.mxu0 %v590
      %650 = vmatpush.msra.mxu0 %v588
      %651 = vmatpush.msra.mxu0 %v586
      %652 = vmatpush.msra.mxu0 %v584
      %653 = vmatmul.f32.gmra.mxu0 %v609
      %v654 = vpop.f32.mrf.mxu0
      %v655 = vadd.f32 %v604, %v654
      %656 = vmatmul.f32.gmra.mxu0 %v612
      %v657 = vpop.f32.mrf.mxu0
      %v658 = vadd.f32 %v604, %v657
      %659 = vdwg.mxu0
      %s660 = smul.u32 %s573, 64
      %s661 = scalar_lea.vmem %s11, %s660
      %v662 = vld [vmem:[%s661] sm:$0xff]
      %v663 = vld [vmem:[%s661 + $0x8] sm:$0xff]
      %v664 = vld [vmem:[%s661 + $0x10] sm:$0xff]
      %v665 = vld [vmem:[%s661 + $0x18] sm:$0xff]
      %v666 = vld [vmem:[%s661 + $0x20] sm:$0xff]
      %v667 = vld [vmem:[%s661 + $0x28] sm:$0xff]
      %v668 = vld [vmem:[%s661 + $0x30] sm:$0xff]
      %v669 = vld [vmem:[%s661 + $0x38] sm:$0xff]
      %s670 = scalar_lea.vmem [#allocation2], %s573
      %v671 = vld [vmem:[%s670] sm:$0x1]
      %673 = vrot.lane.b32.xlu0 %v632, 64
      %v674 = vpop.permute.xlu0 %673
      %v675 = vsel %vm542, %v632, 0
      %v677 = vsel %vm542, %v674, 0
      %679 = vmatpush.xpose.msra.mxu0 0.0
      %680 = vmatpush.xpose.msra.mxu0 0.0
      %681 = vmatpush.xpose.msra.mxu0 0.0
      %682 = vmatpush.xpose.msra.mxu0 0.0
      %683 = vmatpush.xpose.msra.mxu0 0.0
      %684 = vmatpush.xpose.msra.mxu0 0.0
      %685 = vmatpush.xpose.msra.mxu0 0.0
      %686 = vmatpush.xpose.msra.mxu0 0.0
      %687 = vmatpush.xpose.msra.mxu0 0.0
      %688 = vmatpush.xpose.msra.mxu0 0.0
      %689 = vmatpush.xpose.msra.mxu0 0.0
      %690 = vmatpush.xpose.msra.mxu0 0.0
      %691 = vmatpush.xpose.msra.mxu0 0.0
      %692 = vmatpush.xpose.msra.mxu0 0.0
      %693 = vmatpush.xpose.msra.mxu0 0.0
      %694 = vmatpush.xpose.msra.mxu0 %v677
      %695 = vmatmul.f32.gmra.mxu0 %v675
      %v696 = vpop.f32.mrf.mxu0
      %v697 = vadd.f32 0.0, %v696
      %698 = vdwg.mxu0
      %v699 = vmul.f32 %v697, 0.25
      %vm700 = vcmask 64512
      %v701 = vsel %vm700, %v699, -inf
      %702 = vmax.xlane.f32.xlu0 %v701
      %v703 = vpop.xlane.xlu0 %702
      %v704 = vsub.f32 %v699, %v703
      %v705 = vmul.f32 %v704, 1.442695
      %v706 = vpow.pop %v705
      %v707 = vsel %vm700, %v706, 0.0
      %708 = vadd.xlane.f32.xlu0 %v707
      %v709 = vpop.xlane.xlu0 %708
      %v710 = vrcp.pop %v709
      %v711 = vmul.f32 %v706, %v710
      %v713 = vsel %vm700, %v711, 0
      %715 = vmatpush.msra.mxu0 0.0
      %716 = vmatpush.msra.mxu0 0.0
      %717 = vmatpush.msra.mxu0 0.0
      %718 = vmatpush.msra.mxu0 0.0
      %719 = vmatpush.msra.mxu0 0.0
      %720 = vmatpush.msra.mxu0 0.0
      %721 = vmatpush.msra.mxu0 0.0
      %722 = vmatpush.msra.mxu0 0.0
      %723 = vmatpush.msra.mxu0 0.0
      %724 = vmatpush.msra.mxu0 0.0
      %725 = vmatpush.msra.mxu0 0.0
      %726 = vmatpush.msra.mxu0 0.0
      %727 = vmatpush.msra.mxu0 0.0
      %728 = vmatpush.msra.mxu0 0.0
      %729 = vmatpush.msra.mxu0 0.0
      %730 = vmatpush.msra.mxu0 %v655
      %731 = vmatmul.f32.gmra.mxu0 %v713
      %v732 = vpop.f32.mrf.mxu0
      %v733 = vadd.f32 0.0, %v732
      %734 = vdwg.mxu0
      %735 = vrot.lane.b32.xlu0 %v632, 112
      %v736 = vpop.permute.xlu0 %735
      %737 = vrot.lane.b32.xlu0 %v632, 48
      %v738 = vpop.permute.xlu0 %737
      %v739 = vsel %vm542, %v736, 0
      %v741 = vsel %vm542, %v738, 0
      %743 = vmatpush.xpose.msra.mxu0 0.0
      %744 = vmatpush.xpose.msra.mxu0 0.0
      %745 = vmatpush.xpose.msra.mxu0 0.0
      %746 = vmatpush.xpose.msra.mxu0 0.0
      %747 = vmatpush.xpose.msra.mxu0 0.0
      %748 = vmatpush.xpose.msra.mxu0 0.0
      %749 = vmatpush.xpose.msra.mxu0 0.0
      %750 = vmatpush.xpose.msra.mxu0 0.0
      %751 = vmatpush.xpose.msra.mxu0 0.0
      %752 = vmatpush.xpose.msra.mxu0 0.0
      %753 = vmatpush.xpose.msra.mxu0 0.0
      %754 = vmatpush.xpose.msra.mxu0 0.0
      %755 = vmatpush.xpose.msra.mxu0 0.0
      %756 = vmatpush.xpose.msra.mxu0 0.0
      %757 = vmatpush.xpose.msra.mxu0 0.0
      %758 = vmatpush.xpose.msra.mxu0 %v741
      %759 = vmatmul.f32.gmra.mxu0 %v739
      %v760 = vpop.f32.mrf.mxu0
      %v761 = vadd.f32 0.0, %v760
      %762 = vdwg.mxu0
      %v763 = vmul.f32 %v761, 0.25
      %v764 = vsel %vm700, %v763, -inf
      %765 = vmax.xlane.f32.xlu0 %v764
      %v766 = vpop.xlane.xlu0 %765
      %v767 = vsub.f32 %v763, %v766
      %v768 = vmul.f32 %v767, 1.442695
      %v769 = vpow.pop %v768
      %v770 = vsel %vm700, %v769, 0.0
      %771 = vadd.xlane.f32.xlu0 %v770
      %v772 = vpop.xlane.xlu0 %771
      %v773 = vrcp.pop %v772
      %v774 = vmul.f32 %v769, %v773
      %776 = vrot.lane.b32.xlu0 %v655, 112
      %v777 = vpop.permute.xlu0 %776
      %v780 = vsel %vm700, %v774, 0
      %782 = vmatpush.msra.mxu0 0.0
      %783 = vmatpush.msra.mxu0 0.0
      %784 = vmatpush.msra.mxu0 0.0
      %785 = vmatpush.msra.mxu0 0.0
      %786 = vmatpush.msra.mxu0 0.0
      %787 = vmatpush.msra.mxu0 0.0
      %788 = vmatpush.msra.mxu0 0.0
      %789 = vmatpush.msra.mxu0 0.0
      %790 = vmatpush.msra.mxu0 0.0
      %791 = vmatpush.msra.mxu0 0.0
      %792 = vmatpush.msra.mxu0 0.0
      %793 = vmatpush.msra.mxu0 0.0
      %794 = vmatpush.msra.mxu0 0.0
      %795 = vmatpush.msra.mxu0 0.0
      %796 = vmatpush.msra.mxu0 0.0
      %797 = vmatpush.msra.mxu0 %v777
      %798 = vmatmul.f32.gmra.mxu0 %v780
      %v799 = vpop.f32.mrf.mxu0
      %v800 = vadd.f32 0.0, %v799
      %801 = vdwg.mxu0
      %802 = vrot.lane.b32.xlu0 %v632, 96
      %v803 = vpop.permute.xlu0 %802
      %804 = vrot.lane.b32.xlu0 %v632, 32
      %v805 = vpop.permute.xlu0 %804
      %v806 = vsel %vm542, %v803, 0
      %v808 = vsel %vm542, %v805, 0
      %810 = vmatpush.xpose.msra.mxu0 0.0
      %811 = vmatpush.xpose.msra.mxu0 0.0
      %812 = vmatpush.xpose.msra.mxu0 0.0
      %813 = vmatpush.xpose.msra.mxu0 0.0
      %814 = vmatpush.xpose.msra.mxu0 0.0
      %815 = vmatpush.xpose.msra.mxu0 0.0
      %816 = vmatpush.xpose.msra.mxu0 0.0
      %817 = vmatpush.xpose.msra.mxu0 0.0
      %818 = vmatpush.xpose.msra.mxu0 0.0
      %819 = vmatpush.xpose.msra.mxu0 0.0
      %820 = vmatpush.xpose.msra.mxu0 0.0
      %821 = vmatpush.xpose.msra.mxu0 0.0
      %822 = vmatpush.xpose.msra.mxu0 0.0
      %823 = vmatpush.xpose.msra.mxu0 0.0
      %824 = vmatpush.xpose.msra.mxu0 0.0
      %825 = vmatpush.xpose.msra.mxu0 %v808
      %826 = vmatmul.f32.gmra.mxu0 %v806
      %v827 = vpop.f32.mrf.mxu0
      %v828 = vadd.f32 0.0, %v827
      %829 = vdwg.mxu0
      %v830 = vmul.f32 %v828, 0.25
      %v831 = vsel %vm700, %v830, -inf
      %832 = vmax.xlane.f32.xlu0 %v831
      %v833 = vpop.xlane.xlu0 %832
      %v834 = vsub.f32 %v830, %v833
      %v835 = vmul.f32 %v834, 1.442695
      %v836 = vpow.pop %v835
      %v837 = vsel %vm700, %v836, 0.0
      %838 = vadd.xlane.f32.xlu0 %v837
      %v839 = vpop.xlane.xlu0 %838
      %v840 = vrcp.pop %v839
      %v841 = vmul.f32 %v836, %v840
      %842 = vrot.lane.b32.xlu0 %v655, 96
      %v843 = vpop.permute.xlu0 %842
      %v846 = vsel %vm700, %v841, 0
      %848 = vmatpush.msra.mxu0 0.0
      %849 = vmatpush.msra.mxu0 0.0
      %850 = vmatpush.msra.mxu0 0.0
      %851 = vmatpush.msra.mxu0 0.0
      %852 = vmatpush.msra.mxu0 0.0
      %853 = vmatpush.msra.mxu0 0.0
      %854 = vmatpush.msra.mxu0 0.0
      %855 = vmatpush.msra.mxu0 0.0
      %856 = vmatpush.msra.mxu0 0.0
      %857 = vmatpush.msra.mxu0 0.0
      %858 = vmatpush.msra.mxu0 0.0
      %859 = vmatpush.msra.mxu0 0.0
      %860 = vmatpush.msra.mxu0 0.0
      %861 = vmatpush.msra.mxu0 0.0
      %862 = vmatpush.msra.mxu0 0.0
      %863 = vmatpush.msra.mxu0 %v843
      %864 = vmatmul.f32.gmra.mxu0 %v846
      %v865 = vpop.f32.mrf.mxu0
      %v866 = vadd.f32 0.0, %v865
      %867 = vdwg.mxu0
      %868 = vrot.lane.b32.xlu0 %v632, 80
      %v869 = vpop.permute.xlu0 %868
      %870 = vrot.lane.b32.xlu0 %v632, 16
      %v871 = vpop.permute.xlu0 %870
      %v872 = vsel %vm542, %v869, 0
      %v874 = vsel %vm542, %v871, 0
      %876 = vmatpush.xpose.msra.mxu0 0.0
      %877 = vmatpush.xpose.msra.mxu0 0.0
      %878 = vmatpush.xpose.msra.mxu0 0.0
      %879 = vmatpush.xpose.msra.mxu0 0.0
      %880 = vmatpush.xpose.msra.mxu0 0.0
      %881 = vmatpush.xpose.msra.mxu0 0.0
      %882 = vmatpush.xpose.msra.mxu0 0.0
      %883 = vmatpush.xpose.msra.mxu0 0.0
      %884 = vmatpush.xpose.msra.mxu0 0.0
      %885 = vmatpush.xpose.msra.mxu0 0.0
      %886 = vmatpush.xpose.msra.mxu0 0.0
      %887 = vmatpush.xpose.msra.mxu0 0.0
      %888 = vmatpush.xpose.msra.mxu0 0.0
      %889 = vmatpush.xpose.msra.mxu0 0.0
      %890 = vmatpush.xpose.msra.mxu0 0.0
      %891 = vmatpush.xpose.msra.mxu0 %v874
      %892 = vmatmul.f32.gmra.mxu0 %v872
      %v893 = vpop.f32.mrf.mxu0
      %v894 = vadd.f32 0.0, %v893
      %895 = vdwg.mxu0
      %v896 = vmul.f32 %v894, 0.25
      %v897 = vsel %vm700, %v896, -inf
      %898 = vmax.xlane.f32.xlu0 %v897
      %v899 = vpop.xlane.xlu0 %898
      %v900 = vsub.f32 %v896, %v899
      %v901 = vmul.f32 %v900, 1.442695
      %v902 = vpow.pop %v901
      %v903 = vsel %vm700, %v902, 0.0
      %904 = vadd.xlane.f32.xlu0 %v903
      %v905 = vpop.xlane.xlu0 %904
      %v906 = vrcp.pop %v905
      %v907 = vmul.f32 %v902, %v906
      %908 = vrot.lane.b32.xlu0 %v655, 80
      %v909 = vpop.permute.xlu0 %908
      %v912 = vsel %vm700, %v907, 0
      %914 = vmatpush.msra.mxu0 0.0
      %915 = vmatpush.msra.mxu0 0.0
      %916 = vmatpush.msra.mxu0 0.0
      %917 = vmatpush.msra.mxu0 0.0
      %918 = vmatpush.msra.mxu0 0.0
      %919 = vmatpush.msra.mxu0 0.0
      %920 = vmatpush.msra.mxu0 0.0
      %921 = vmatpush.msra.mxu0 0.0
      %922 = vmatpush.msra.mxu0 0.0
      %923 = vmatpush.msra.mxu0 0.0
      %924 = vmatpush.msra.mxu0 0.0
      %925 = vmatpush.msra.mxu0 0.0
      %926 = vmatpush.msra.mxu0 0.0
      %927 = vmatpush.msra.mxu0 0.0
      %928 = vmatpush.msra.mxu0 0.0
      %929 = vmatpush.msra.mxu0 %v909
      %930 = vmatmul.f32.gmra.mxu0 %v912
      %v931 = vpop.f32.mrf.mxu0
      %v932 = vadd.f32 0.0, %v931
      %933 = vdwg.mxu0
      %935 = vrot.lane.b32.xlu0 %v800, 16
      %v936 = vpop.permute.xlu0 %935
      %939 = vrot.lane.b32.xlu0 %v866, 32
      %v940 = vpop.permute.xlu0 %939
      %943 = vrot.lane.b32.xlu0 %v932, 48
      %v944 = vpop.permute.xlu0 %943
      %v946 = vsel %vm542, %v733, %v936
      %vm947 = vcmask 261120
      %v948 = vsel %vm947, %v946, %v940
      %vm949 = vcmask 392192
      %v950 = vsel %vm949, %v948, %v944
      %952 = vrot.lane.b32.xlu0 %v635, 64
      %v953 = vpop.permute.xlu0 %952
      %v954 = vsel %vm542, %v635, 0
      %v956 = vsel %vm542, %v953, 0
      %958 = vmatpush.xpose.msra.mxu0 0.0
      %959 = vmatpush.xpose.msra.mxu0 0.0
      %960 = vmatpush.xpose.msra.mxu0 0.0
      %961 = vmatpush.xpose.msra.mxu0 0.0
      %962 = vmatpush.xpose.msra.mxu0 0.0
      %963 = vmatpush.xpose.msra.mxu0 0.0
      %964 = vmatpush.xpose.msra.mxu0 0.0
      %965 = vmatpush.xpose.msra.mxu0 0.0
      %966 = vmatpush.xpose.msra.mxu0 0.0
      %967 = vmatpush.xpose.msra.mxu0 0.0
      %968 = vmatpush.xpose.msra.mxu0 0.0
      %969 = vmatpush.xpose.msra.mxu0 0.0
      %970 = vmatpush.xpose.msra.mxu0 0.0
      %971 = vmatpush.xpose.msra.mxu0 0.0
      %972 = vmatpush.xpose.msra.mxu0 0.0
      %973 = vmatpush.xpose.msra.mxu0 %v956
      %974 = vmatmul.f32.gmra.mxu0 %v954
      %v975 = vpop.f32.mrf.mxu0
      %v976 = vadd.f32 0.0, %v975
      %977 = vdwg.mxu0
      %v978 = vmul.f32 %v976, 0.25
      %v979 = vsel %vm700, %v978, -inf
      %980 = vmax.xlane.f32.xlu0 %v979
      %v981 = vpop.xlane.xlu0 %980
      %v982 = vsub.f32 %v978, %v981
      %v983 = vmul.f32 %v982, 1.442695
      %v984 = vpow.pop %v983
      %v985 = vsel %vm700, %v984, 0.0
      %986 = vadd.xlane.f32.xlu0 %v985
      %v987 = vpop.xlane.xlu0 %986
      %v988 = vrcp.pop %v987
      %v989 = vmul.f32 %v984, %v988
      %v991 = vsel %vm700, %v989, 0
      %993 = vmatpush.msra.mxu0 0.0
      %994 = vmatpush.msra.mxu0 0.0
      %995 = vmatpush.msra.mxu0 0.0
      %996 = vmatpush.msra.mxu0 0.0
      %997 = vmatpush.msra.mxu0 0.0
      %998 = vmatpush.msra.mxu0 0.0
      %999 = vmatpush.msra.mxu0 0.0
      %1000 = vmatpush.msra.mxu0 0.0
      %1001 = vmatpush.msra.mxu0 0.0
      %1002 = vmatpush.msra.mxu0 0.0
      %1003 = vmatpush.msra.mxu0 0.0
      %1004 = vmatpush.msra.mxu0 0.0
      %1005 = vmatpush.msra.mxu0 0.0
      %1006 = vmatpush.msra.mxu0 0.0
      %1007 = vmatpush.msra.mxu0 0.0
      %1008 = vmatpush.msra.mxu0 %v658
      %1009 = vmatmul.f32.gmra.mxu0 %v991
      %v1010 = vpop.f32.mrf.mxu0
      %v1011 = vadd.f32 0.0, %v1010
      %1012 = vdwg.mxu0
      %1013 = vrot.lane.b32.xlu0 %v635, 112
      %v1014 = vpop.permute.xlu0 %1013
      %1015 = vrot.lane.b32.xlu0 %v635, 48
      %v1016 = vpop.permute.xlu0 %1015
      %v1017 = vsel %vm542, %v1014, 0
      %v1019 = vsel %vm542, %v1016, 0
      %1021 = vmatpush.xpose.msra.mxu0 0.0
      %1022 = vmatpush.xpose.msra.mxu0 0.0
      %1023 = vmatpush.xpose.msra.mxu0 0.0
      %1024 = vmatpush.xpose.msra.mxu0 0.0
      %1025 = vmatpush.xpose.msra.mxu0 0.0
      %1026 = vmatpush.xpose.msra.mxu0 0.0
      %1027 = vmatpush.xpose.msra.mxu0 0.0
      %1028 = vmatpush.xpose.msra.mxu0 0.0
      %1029 = vmatpush.xpose.msra.mxu0 0.0
      %1030 = vmatpush.xpose.msra.mxu0 0.0
      %1031 = vmatpush.xpose.msra.mxu0 0.0
      %1032 = vmatpush.xpose.msra.mxu0 0.0
      %1033 = vmatpush.xpose.msra.mxu0 0.0
      %1034 = vmatpush.xpose.msra.mxu0 0.0
      %1035 = vmatpush.xpose.msra.mxu0 0.0
      %1036 = vmatpush.xpose.msra.mxu0 %v1019
      %1037 = vmatmul.f32.gmra.mxu0 %v1017
      %v1038 = vpop.f32.mrf.mxu0
      %v1039 = vadd.f32 0.0, %v1038
      %1040 = vdwg.mxu0
      %v1041 = vmul.f32 %v1039, 0.25
      %v1042 = vsel %vm700, %v1041, -inf
      %1043 = vmax.xlane.f32.xlu0 %v1042
      %v1044 = vpop.xlane.xlu0 %1043
      %v1045 = vsub.f32 %v1041, %v1044
      %v1046 = vmul.f32 %v1045, 1.442695
      %v1047 = vpow.pop %v1046
      %v1048 = vsel %vm700, %v1047, 0.0
      %1049 = vadd.xlane.f32.xlu0 %v1048
      %v1050 = vpop.xlane.xlu0 %1049
      %v1051 = vrcp.pop %v1050
      %v1052 = vmul.f32 %v1047, %v1051
      %1054 = vrot.lane.b32.xlu0 %v658, 112
      %v1055 = vpop.permute.xlu0 %1054
      %v1058 = vsel %vm700, %v1052, 0
      %1060 = vmatpush.msra.mxu0 0.0
      %1061 = vmatpush.msra.mxu0 0.0
      %1062 = vmatpush.msra.mxu0 0.0
      %1063 = vmatpush.msra.mxu0 0.0
      %1064 = vmatpush.msra.mxu0 0.0
      %1065 = vmatpush.msra.mxu0 0.0
      %1066 = vmatpush.msra.mxu0 0.0
      %1067 = vmatpush.msra.mxu0 0.0
      %1068 = vmatpush.msra.mxu0 0.0
      %1069 = vmatpush.msra.mxu0 0.0
      %1070 = vmatpush.msra.mxu0 0.0
      %1071 = vmatpush.msra.mxu0 0.0
      %1072 = vmatpush.msra.mxu0 0.0
      %1073 = vmatpush.msra.mxu0 0.0
      %1074 = vmatpush.msra.mxu0 0.0
      %1075 = vmatpush.msra.mxu0 %v1055
      %1076 = vmatmul.f32.gmra.mxu0 %v1058
      %v1077 = vpop.f32.mrf.mxu0
      %v1078 = vadd.f32 0.0, %v1077
      %1079 = vdwg.mxu0
      %1080 = vrot.lane.b32.xlu0 %v635, 96
      %v1081 = vpop.permute.xlu0 %1080
      %1082 = vrot.lane.b32.xlu0 %v635, 32
      %v1083 = vpop.permute.xlu0 %1082
      %v1084 = vsel %vm542, %v1081, 0
      %v1086 = vsel %vm542, %v1083, 0
      %1088 = vmatpush.xpose.msra.mxu0 0.0
      %1089 = vmatpush.xpose.msra.mxu0 0.0
      %1090 = vmatpush.xpose.msra.mxu0 0.0
      %1091 = vmatpush.xpose.msra.mxu0 0.0
      %1092 = vmatpush.xpose.msra.mxu0 0.0
      %1093 = vmatpush.xpose.msra.mxu0 0.0
      %1094 = vmatpush.xpose.msra.mxu0 0.0
      %1095 = vmatpush.xpose.msra.mxu0 0.0
      %1096 = vmatpush.xpose.msra.mxu0 0.0
      %1097 = vmatpush.xpose.msra.mxu0 0.0
      %1098 = vmatpush.xpose.msra.mxu0 0.0
      %1099 = vmatpush.xpose.msra.mxu0 0.0
      %1100 = vmatpush.xpose.msra.mxu0 0.0
      %1101 = vmatpush.xpose.msra.mxu0 0.0
      %1102 = vmatpush.xpose.msra.mxu0 0.0
      %1103 = vmatpush.xpose.msra.mxu0 %v1086
      %1104 = vmatmul.f32.gmra.mxu0 %v1084
      %v1105 = vpop.f32.mrf.mxu0
      %v1106 = vadd.f32 0.0, %v1105
      %1107 = vdwg.mxu0
      %v1108 = vmul.f32 %v1106, 0.25
      %v1109 = vsel %vm700, %v1108, -inf
      %1110 = vmax.xlane.f32.xlu0 %v1109
      %v1111 = vpop.xlane.xlu0 %1110
      %v1112 = vsub.f32 %v1108, %v1111
      %v1113 = vmul.f32 %v1112, 1.442695
      %v1114 = vpow.pop %v1113
      %v1115 = vsel %vm700, %v1114, 0.0
      %1116 = vadd.xlane.f32.xlu0 %v1115
      %v1117 = vpop.xlane.xlu0 %1116
      %v1118 = vrcp.pop %v1117
      %v1119 = vmul.f32 %v1114, %v1118
      %1120 = vrot.lane.b32.xlu0 %v658, 96
      %v1121 = vpop.permute.xlu0 %1120
      %v1124 = vsel %vm700, %v1119, 0
      %1126 = vmatpush.msra.mxu0 0.0
      %1127 = vmatpush.msra.mxu0 0.0
      %1128 = vmatpush.msra.mxu0 0.0
      %1129 = vmatpush.msra.mxu0 0.0
      %1130 = vmatpush.msra.mxu0 0.0
      %1131 = vmatpush.msra.mxu0 0.0
      %1132 = vmatpush.msra.mxu0 0.0
      %1133 = vmatpush.msra.mxu0 0.0
      %1134 = vmatpush.msra.mxu0 0.0
      %1135 = vmatpush.msra.mxu0 0.0
      %1136 = vmatpush.msra.mxu0 0.0
      %1137 = vmatpush.msra.mxu0 0.0
      %1138 = vmatpush.msra.mxu0 0.0
      %1139 = vmatpush.msra.mxu0 0.0
      %1140 = vmatpush.msra.mxu0 0.0
      %1141 = vmatpush.msra.mxu0 %v1121
      %1142 = vmatmul.f32.gmra.mxu0 %v1124
      %v1143 = vpop.f32.mrf.mxu0
      %v1144 = vadd.f32 0.0, %v1143
      %1145 = vdwg.mxu0
      %1146 = vrot.lane.b32.xlu0 %v635, 80
      %v1147 = vpop.permute.xlu0 %1146
      %1148 = vrot.lane.b32.xlu0 %v635, 16
      %v1149 = vpop.permute.xlu0 %1148
      %v1150 = vsel %vm542, %v1147, 0
      %v1152 = vsel %vm542, %v1149, 0
      %1154 = vmatpush.xpose.msra.mxu0 0.0
      %1155 = vmatpush.xpose.msra.mxu0 0.0
      %1156 = vmatpush.xpose.msra.mxu0 0.0
      %1157 = vmatpush.xpose.msra.mxu0 0.0
      %1158 = vmatpush.xpose.msra.mxu0 0.0
      %1159 = vmatpush.xpose.msra.mxu0 0.0
      %1160 = vmatpush.xpose.msra.mxu0 0.0
      %1161 = vmatpush.xpose.msra.mxu0 0.0
      %1162 = vmatpush.xpose.msra.mxu0 0.0
      %1163 = vmatpush.xpose.msra.mxu0 0.0
      %1164 = vmatpush.xpose.msra.mxu0 0.0
      %1165 = vmatpush.xpose.msra.mxu0 0.0
      %1166 = vmatpush.xpose.msra.mxu0 0.0
      %1167 = vmatpush.xpose.msra.mxu0 0.0
      %1168 = vmatpush.xpose.msra.mxu0 0.0
      %1169 = vmatpush.xpose.msra.mxu0 %v1152
      %1170 = vmatmul.f32.gmra.mxu0 %v1150
      %v1171 = vpop.f32.mrf.mxu0
      %v1172 = vadd.f32 0.0, %v1171
      %1173 = vdwg.mxu0
      %v1174 = vmul.f32 %v1172, 0.25
      %v1175 = vsel %vm700, %v1174, -inf
      %1176 = vmax.xlane.f32.xlu0 %v1175
      %v1177 = vpop.xlane.xlu0 %1176
      %v1178 = vsub.f32 %v1174, %v1177
      %v1179 = vmul.f32 %v1178, 1.442695
      %v1180 = vpow.pop %v1179
      %v1181 = vsel %vm700, %v1180, 0.0
      %1182 = vadd.xlane.f32.xlu0 %v1181
      %v1183 = vpop.xlane.xlu0 %1182
      %v1184 = vrcp.pop %v1183
      %v1185 = vmul.f32 %v1180, %v1184
      %1186 = vrot.lane.b32.xlu0 %v658, 80
      %v1187 = vpop.permute.xlu0 %1186
      %v1190 = vsel %vm700, %v1185, 0
      %1192 = vmatpush.msra.mxu0 0.0
      %1193 = vmatpush.msra.mxu0 0.0
      %1194 = vmatpush.msra.mxu0 0.0
      %1195 = vmatpush.msra.mxu0 0.0
      %1196 = vmatpush.msra.mxu0 0.0
      %1197 = vmatpush.msra.mxu0 0.0
      %1198 = vmatpush.msra.mxu0 0.0
      %1199 = vmatpush.msra.mxu0 0.0
      %1200 = vmatpush.msra.mxu0 0.0
      %1201 = vmatpush.msra.mxu0 0.0
      %1202 = vmatpush.msra.mxu0 0.0
      %1203 = vmatpush.msra.mxu0 0.0
      %1204 = vmatpush.msra.mxu0 0.0
      %1205 = vmatpush.msra.mxu0 0.0
      %1206 = vmatpush.msra.mxu0 0.0
      %1207 = vmatpush.msra.mxu0 %v1187
      %1208 = vmatmul.f32.gmra.mxu0 %v1190
      %v1209 = vpop.f32.mrf.mxu0
      %v1210 = vadd.f32 0.0, %v1209
      %1211 = vdwg.mxu0
      %1213 = vrot.lane.b32.xlu0 %v1078, 16
      %v1214 = vpop.permute.xlu0 %1213
      %1217 = vrot.lane.b32.xlu0 %v1144, 32
      %v1218 = vpop.permute.xlu0 %1217
      %1221 = vrot.lane.b32.xlu0 %v1210, 48
      %v1222 = vpop.permute.xlu0 %1221
      %v1224 = vsel %vm542, %v1011, %v1214
      %v1225 = vsel %vm947, %v1224, %v1218
      %v1226 = vsel %vm949, %v1225, %v1222
      %v1228 = vperm.slane %v671, 0
      %v1231 = vsel %vm607, %v950, 0
      %v1234 = vsel %vm607, %v1226, 0
      %1236 = vmatpush.msra.mxu0 0.0
      %1237 = vmatpush.msra.mxu0 0.0
      %1238 = vmatpush.msra.mxu0 0.0
      %1239 = vmatpush.msra.mxu0 0.0
      %1240 = vmatpush.msra.mxu0 0.0
      %1241 = vmatpush.msra.mxu0 0.0
      %1242 = vmatpush.msra.mxu0 0.0
      %1243 = vmatpush.msra.mxu0 0.0
      %1244 = vmatpush.msra.mxu0 %v669
      %1245 = vmatpush.msra.mxu0 %v668
      %1246 = vmatpush.msra.mxu0 %v667
      %1247 = vmatpush.msra.mxu0 %v666
      %1248 = vmatpush.msra.mxu0 %v665
      %1249 = vmatpush.msra.mxu0 %v664
      %1250 = vmatpush.msra.mxu0 %v663
      %1251 = vmatpush.msra.mxu0 %v662
      %1252 = vmatmul.f32.gmra.mxu0 %v1231
      %v1253 = vpop.f32.mrf.mxu0
      %v1254 = vadd.f32 %v1228, %v1253
      %1255 = vmatmul.f32.gmra.mxu0 %v1234
      %v1256 = vpop.f32.mrf.mxu0
      %v1257 = vadd.f32 %v1228, %v1256
      %1258 = vdwg.mxu0
      %v1259 = vadd.f32 %v578, %v1254
      %v1260 = vadd.f32 %v579, %v1257
      %s1261 = scalar_lea.vmem [#allocation5], %s573
      %v1262 = vld [vmem:[%s1261] sm:$0x1]
      %s1263 = scalar_lea.vmem [#allocation7], %s573
      %v1264 = vld [vmem:[%s1263] sm:$0x1]
      %v1265 = vsel %vm607, %v1259, 0.0
      %1266 = vadd.xlane.f32.xlu0 %v1265
      %v1267 = vpop.xlane.xlu0 %1266
      %v1268 = vsel %vm607, %v1260, 0.0
      %1269 = vadd.xlane.f32.xlu0 %v1268
      %v1270 = vpop.xlane.xlu0 %1269
      %v1271 = vrcp.pop 64.0
      %v1272 = vmul.f32 64.0, %v1271
      %v1273 = vsub.f32 1.0, %v1272
      %v1274 = vmul.f32 %v1271, %v1273
      %v1275 = vadd.f32 %v1271, %v1274
      %vm1276 = vweird.f32 %v1271
      %v1277 = vsel %vm1276, %v1271, %v1275
      %v1278 = vmul.f32 %v1267, %v1277
      %v1279 = vmul.f32 %v1270, %v1277
      %v1280 = vsub.f32 %v1259, %v1278
      %v1281 = vsub.f32 %v1260, %v1279
      %v1282 = vmul.f32 %v1280, %v1280
      %v1283 = vmul.f32 %v1281, %v1281
      %v1284 = vsel %vm607, %v1282, 0.0
      %1285 = vadd.xlane.f32.xlu0 %v1284
      %v1286 = vpop.xlane.xlu0 %1285
      %v1287 = vsel %vm607, %v1283, 0.0
      %1288 = vadd.xlane.f32.xlu0 %v1287
      %v1289 = vpop.xlane.xlu0 %1288
      %v1290 = vmul.f32 %v1286, %v1277
      %v1291 = vmul.f32 %v1289, %v1277
      %v1292 = vadd.f32 %v1290, 1e-05
      %v1293 = vadd.f32 %v1291, 1e-05
      %v1294 = vrsqrt.pop %v1292
      %v1295 = vmul.f32 %v1294, %v1292
      %v1296 = vmul.f32 %v1295, %v1294
      %v1297 = vmul.f32 0.5, %v1296
      %v1298 = vsub.f32 1.5, %v1297
      %v1299 = vmul.f32 %v1294, %v1298
      %vm1300 = vweird.f32 %v1292
      %vm1301 = vweird.f32 %v1294
      %vm1302 = vmor %vm1300, %vm1301
      %v1303 = vsel %vm1302, %v1294, %v1299
      %v1304 = vrsqrt.pop %v1293
      %v1305 = vmul.f32 %v1304, %v1293
      %v1306 = vmul.f32 %v1305, %v1304
      %v1307 = vmul.f32 0.5, %v1306
      %v1308 = vsub.f32 1.5, %v1307
      %v1309 = vmul.f32 %v1304, %v1308
      %vm1310 = vweird.f32 %v1293
      %vm1311 = vweird.f32 %v1304
      %vm1312 = vmor %vm1310, %vm1311
      %v1313 = vsel %vm1312, %v1304, %v1309
      %v1314 = vmul.f32 %v1280, %v1303
      %v1315 = vmul.f32 %v1281, %v1313
      %v1317 = vperm.slane %v1262, 0
      %v1319 = vmul.f32 %v1314, %v1317
      %v1320 = vmul.f32 %v1315, %v1317
      %v1322 = vperm.slane %v1264, 0
      %v1324 = vadd.f32 %v1319, %v1322
      %v1325 = vadd.f32 %v1320, %v1322
      %s1326 = scalar_lea.vmem [#allocation8], %s660
      %v1327 = vld [vmem:[%s1326] sm:$0xff]
      %v1328 = vld [vmem:[%s1326 + $0x8] sm:$0xff]
      %v1329 = vld [vmem:[%s1326 + $0x10] sm:$0xff]
      %v1330 = vld [vmem:[%s1326 + $0x18] sm:$0xff]
      %v1331 = vld [vmem:[%s1326 + $0x20] sm:$0xff]
      %v1332 = vld [vmem:[%s1326 + $0x28] sm:$0xff]
      %v1333 = vld [vmem:[%s1326 + $0x30] sm:$0xff]
      %v1334 = vld [vmem:[%s1326 + $0x38] sm:$0xff]
      %s1335 = scalar_lea.vmem [#allocation10], %s573
      %v1336 = vld [vmem:[%s1335] sm:$0x1]
      %s1337 = smul.u32 %s573, 128
      %s1338 = scalar_lea.vmem %s23, %s1337
      %v1339 = vld [vmem:[%s1338] sm:$0xff]
      %v1340 = vld [vmem:[%s1338 + $0x8] sm:$0xff]
      %v1341 = vld [vmem:[%s1338 + $0x10] sm:$0xff]
      %v1342 = vld [vmem:[%s1338 + $0x18] sm:$0xff]
      %v1343 = vld [vmem:[%s1338 + $0x20] sm:$0xff]
      %v1344 = vld [vmem:[%s1338 + $0x28] sm:$0xff]
      %v1345 = vld [vmem:[%s1338 + $0x30] sm:$0xff]
      %v1346 = vld [vmem:[%s1338 + $0x38] sm:$0xff]
      %v1347 = vld [vmem:[%s1338 + $0x40] sm:$0xff]
      %v1348 = vld [vmem:[%s1338 + $0x48] sm:$0xff]
      %v1349 = vld [vmem:[%s1338 + $0x50] sm:$0xff]
      %v1350 = vld [vmem:[%s1338 + $0x58] sm:$0xff]
      %v1351 = vld [vmem:[%s1338 + $0x60] sm:$0xff]
      %v1352 = vld [vmem:[%s1338 + $0x68] sm:$0xff]
      %v1353 = vld [vmem:[%s1338 + $0x70] sm:$0xff]
      %v1354 = vld [vmem:[%s1338 + $0x78] sm:$0xff]
      %s1355 = scalar_lea.vmem [#allocation11], %s573
      %v1356 = vld [vmem:[%s1355] sm:$0x1]
      %v1358 = vperm.slane %v1336, 0
      %v1361 = vsel %vm607, %v1324, 0
      %v1364 = vsel %vm607, %v1325, 0
      %1366 = vmatpush.msra.mxu0 0.0
      %1367 = vmatpush.msra.mxu0 0.0
      %1368 = vmatpush.msra.mxu0 0.0
      %1369 = vmatpush.msra.mxu0 0.0
      %1370 = vmatpush.msra.mxu0 0.0
      %1371 = vmatpush.msra.mxu0 0.0
      %1372 = vmatpush.msra.mxu0 0.0
      %1373 = vmatpush.msra.mxu0 0.0
      %1374 = vmatpush.msra.mxu0 %v1334
      %1375 = vmatpush.msra.mxu0 %v1333
      %1376 = vmatpush.msra.mxu0 %v1332
      %1377 = vmatpush.msra.mxu0 %v1331
      %1378 = vmatpush.msra.mxu0 %v1330
      %1379 = vmatpush.msra.mxu0 %v1329
      %1380 = vmatpush.msra.mxu0 %v1328
      %1381 = vmatpush.msra.mxu0 %v1327
      %1382 = vmatmul.f32.gmra.mxu0 %v1361
      %v1383 = vpop.f32.mrf.mxu0
      %v1384 = vadd.f32 %v1358, %v1383
      %1385 = vmatmul.f32.gmra.mxu0 %v1364
      %v1386 = vpop.f32.mrf.mxu0
      %v1387 = vadd.f32 %v1358, %v1386
      %1388 = vdwg.mxu0
      %v1389 = vmax.f32 %v1384, 0.0
      %v1390 = vmax.f32 %v1387, 0.0
      %v1392 = vperm.slane %v1356, 0
      %1394 = vmatpush.msra.mxu0 %v1354
      %1395 = vmatpush.msra.mxu0 %v1353
      %1396 = vmatpush.msra.mxu0 %v1352
      %1397 = vmatpush.msra.mxu0 %v1351
      %1398 = vmatpush.msra.mxu0 %v1350
      %1399 = vmatpush.msra.mxu0 %v1349
      %1400 = vmatpush.msra.mxu0 %v1348
      %1401 = vmatpush.msra.mxu0 %v1347
      %1402 = vmatpush.msra.mxu0 %v1346
      %1403 = vmatpush.msra.mxu0 %v1345
      %1404 = vmatpush.msra.mxu0 %v1344
      %1405 = vmatpush.msra.mxu0 %v1343
      %1406 = vmatpush.msra.mxu0 %v1342
      %1407 = vmatpush.msra.mxu0 %v1341
      %1408 = vmatpush.msra.mxu0 %v1340
      %1409 = vmatpush.msra.mxu0 %v1339
      %1410 = vmatmul.f32.gmra.mxu0 %v1389
      %v1411 = vpop.f32.mrf.mxu0
      %v1412 = vadd.f32 %v1392, %v1411
      %1413 = vmatmul.f32.gmra.mxu0 %v1390
      %v1414 = vpop.f32.mrf.mxu0
      %v1415 = vadd.f32 %v1392, %v1414
      %1416 = vdwg.mxu0
      %v1417 = vadd.f32 %v1324, %v1412
      %v1418 = vadd.f32 %v1325, %v1415
      %s1419 = scalar_lea.vmem [#allocation13], %s573
      %v1420 = vld [vmem:[%s1419] sm:$0x1]
      %s1421 = scalar_lea.vmem [#allocation14], %s573
      %v1422 = vld [vmem:[%s1421] sm:$0x1]
      %v1423 = vsel %vm607, %v1417, 0.0
      %1424 = vadd.xlane.f32.xlu0 %v1423
      %v1425 = vpop.xlane.xlu0 %1424
      %v1426 = vsel %vm607, %v1418, 0.0
      %1427 = vadd.xlane.f32.xlu0 %v1426
      %v1428 = vpop.xlane.xlu0 %1427
      %v1429 = vmul.f32 %v1425, %v1277
      %v1430 = vmul.f32 %v1428, %v1277
      %v1431 = vsub.f32 %v1417, %v1429
      %v1432 = vsub.f32 %v1418, %v1430
      %v1433 = vmul.f32 %v1431, %v1431
      %v1434 = vmul.f32 %v1432, %v1432
      %v1435 = vsel %vm607, %v1433, 0.0
      %1436 = vadd.xlane.f32.xlu0 %v1435
      %v1437 = vpop.xlane.xlu0 %1436
      %v1438 = vsel %vm607, %v1434, 0.0
      %1439 = vadd.xlane.f32.xlu0 %v1438
      %v1440 = vpop.xlane.xlu0 %1439
      %v1441 = vmul.f32 %v1437, %v1277
      %v1442 = vmul.f32 %v1440, %v1277
      %v1443 = vadd.f32 %v1441, 1e-05
      %v1444 = vadd.f32 %v1442, 1e-05
      %v1445 = vrsqrt.pop %v1443
      %v1446 = vmul.f32 %v1445, %v1443
      %v1447 = vmul.f32 %v1446, %v1445
      %v1448 = vmul.f32 0.5, %v1447
      %v1449 = vsub.f32 1.5, %v1448
      %v1450 = vmul.f32 %v1445, %v1449
      %vm1451 = vweird.f32 %v1443
      %vm1452 = vweird.f32 %v1445
      %vm1453 = vmor %vm1451, %vm1452
      %v1454 = vsel %vm1453, %v1445, %v1450
      %v1455 = vrsqrt.pop %v1444
      %v1456 = vmul.f32 %v1455, %v1444
      %v1457 = vmul.f32 %v1456, %v1455
      %v1458 = vmul.f32 0.5, %v1457
      %v1459 = vsub.f32 1.5, %v1458
      %v1460 = vmul.f32 %v1455, %v1459
      %vm1461 = vweird.f32 %v1444
      %vm1462 = vweird.f32 %v1455
      %vm1463 = vmor %vm1461, %vm1462
      %v1464 = vsel %vm1463, %v1455, %v1460
      %v1465 = vmul.f32 %v1431, %v1454
      %v1466 = vmul.f32 %v1432, %v1464
      %v1468 = vperm.slane %v1420, 0
      %v1470 = vmul.f32 %v1465, %v1468
      %v1471 = vmul.f32 %v1466, %v1468
      %v1473 = vperm.slane %v1422, 0
      %v1475 = vadd.f32 %v1470, %v1473
      %v1476 = vadd.f32 %v1471, %v1473
    $region258: #{forward.1} parent=1 // loop_footer
      %s577 = sadd.s32 1, %s573
    $region259: #{forward.1} parent=1 // loop_footer_branch
      %572 = sbr.rel target = $region255
    $region260: #{forward.1} parent=1 // loop_exit
      _
    %v1477 = vld [vmem:[%s31] sm:$0x1]
    %v1478 = vld [vmem:[%s33] sm:$0x1]
    %vm1479 = vcmask 523264
    %v1480 = vsel %vm1479, %v578, 0.0
    %1481 = vadd.xlane.f32.xlu0 %v1480
    %v1482 = vpop.xlane.xlu0 %1481
    %v1483 = vsel %vm1479, %v579, 0.0
    %1484 = vadd.xlane.f32.xlu0 %v1483
    %v1485 = vpop.xlane.xlu0 %1484
    %v1486 = vrcp.pop 64.0
    %v1487 = vmul.f32 64.0, %v1486
    %v1488 = vsub.f32 1.0, %v1487
    %v1489 = vmul.f32 %v1486, %v1488
    %v1490 = vadd.f32 %v1486, %v1489
    %vm1491 = vweird.f32 %v1486
    %v1492 = vsel %vm1491, %v1486, %v1490
    %v1493 = vmul.f32 %v1482, %v1492
    %v1494 = vmul.f32 %v1485, %v1492
    %v1495 = vsub.f32 %v578, %v1493
    %v1496 = vsub.f32 %v579, %v1494
    %v1497 = vmul.f32 %v1495, %v1495
    %v1498 = vmul.f32 %v1496, %v1496
    %v1499 = vsel %vm1479, %v1497, 0.0
    %1500 = vadd.xlane.f32.xlu0 %v1499
    %v1501 = vpop.xlane.xlu0 %1500
    %v1502 = vsel %vm1479, %v1498, 0.0
    %1503 = vadd.xlane.f32.xlu0 %v1502
    %v1504 = vpop.xlane.xlu0 %1503
    %v1505 = vmul.f32 %v1501, %v1492
    %v1506 = vmul.f32 %v1504, %v1492
    %v1507 = vadd.f32 %v1505, 1e-05
    %v1508 = vadd.f32 %v1506, 1e-05
    %v1509 = vrsqrt.pop %v1507
    %v1510 = vmul.f32 %v1509, %v1507
    %v1511 = vmul.f32 %v1510, %v1509
    %v1512 = vmul.f32 0.5, %v1511
    %v1513 = vsub.f32 1.5, %v1512
    %v1514 = vmul.f32 %v1509, %v1513
    %vm1515 = vweird.f32 %v1507
    %vm1516 = vweird.f32 %v1509
    %vm1517 = vmor %vm1515, %vm1516
    %v1518 = vsel %vm1517, %v1509, %v1514
    %v1519 = vrsqrt.pop %v1508
    %v1520 = vmul.f32 %v1519, %v1508
    %v1521 = vmul.f32 %v1520, %v1519
    %v1522 = vmul.f32 0.5, %v1521
    %v1523 = vsub.f32 1.5, %v1522
    %v1524 = vmul.f32 %v1519, %v1523
    %vm1525 = vweird.f32 %v1508
    %vm1526 = vweird.f32 %v1519
    %vm1527 = vmor %vm1525, %vm1526
    %v1528 = vsel %vm1527, %v1519, %v1524
    %v1529 = vmul.f32 %v1495, %v1518
    %v1530 = vmul.f32 %v1496, %v1528
    %v1532 = vperm.slane %v1477, 0
    %v1534 = vmul.f32 %v1529, %v1532
    %v1535 = vmul.f32 %v1530, %v1532
    %v1537 = vperm.slane %v1478, 0
    %v1539 = vadd.f32 %v1534, %v1537
    %v1540 = vadd.f32 %v1535, %v1537
    loop: start=0, step=1, limit=8
    $region261: #{forward.1} parent=1 // loop_pre_header
      _
    $region262: #{forward.1} parent=1 // loop_header
      %s1542 = sphi 0, %s1546
      %p1543 = scmp.ge.s32.totalorder %s1542, 8
      %v1547 = vphi %v567, %v3245
      %v1548 = vphi %v570, %v3246
    $region263: #{forward.1} parent=1 // loop_header_branch
      %1545 = sbr.rel (%p1543) target = $region267
    $region264: #{forward.1} parent=1 // loop_body
      %s1549 = smul.u32 %s1542, 16
      %s1550 = smul.addr %s1549, 8
      %s1551 = scalar_lea.vmem %s35, %s1550
      %v1552 = vld [vmem:[%s1551] sm:$0xff]
      %v1553 = vld [vmem:[%s1551 + $0x8] sm:$0xff]
      %v1554 = vld [vmem:[%s1551 + $0x10] sm:$0xff]
      %v1555 = vld [vmem:[%s1551 + $0x18] sm:$0xff]
      %v1556 = vld [vmem:[%s1551 + $0x20] sm:$0xff]
      %v1557 = vld [vmem:[%s1551 + $0x28] sm:$0xff]
      %v1558 = vld [vmem:[%s1551 + $0x30] sm:$0xff]
      %v1559 = vld [vmem:[%s1551 + $0x38] sm:$0xff]
      %v1560 = vld [vmem:[%s1551 + $0x40] sm:$0xff]
      %v1561 = vld [vmem:[%s1551 + $0x48] sm:$0xff]
      %v1562 = vld [vmem:[%s1551 + $0x50] sm:$0xff]
      %v1563 = vld [vmem:[%s1551 + $0x58] sm:$0xff]
      %v1564 = vld [vmem:[%s1551 + $0x60] sm:$0xff]
      %v1565 = vld [vmem:[%s1551 + $0x68] sm:$0xff]
      %v1566 = vld [vmem:[%s1551 + $0x70] sm:$0xff]
      %v1567 = vld [vmem:[%s1551 + $0x78] sm:$0xff]
      %s1568 = smul.u32 %s1542, 2
      %s1569 = scalar_lea.vmem %s37, %s1568
      %v1570 = vld [vmem:[%s1569] sm:$0x3]
      %v1572 = vperm.slane %v1570, 0
      %v1573 = vperm.slane %v1570, 1
      %v1577 = vsel %vm1479, %v1547, 0
      %v1580 = vsel %vm1479, %v1548, 0
      %1582 = vmatpush.msra.mxu0 0.0
      %1583 = vmatpush.msra.mxu0 0.0
      %1584 = vmatpush.msra.mxu0 0.0
      %1585 = vmatpush.msra.mxu0 0.0
      %1586 = vmatpush.msra.mxu0 0.0
      %1587 = vmatpush.msra.mxu0 0.0
      %1588 = vmatpush.msra.mxu0 0.0
      %1589 = vmatpush.msra.mxu0 0.0
      %1590 = vmatpush.msra.mxu0 %v1566
      %1591 = vmatpush.msra.mxu0 %v1564
      %1592 = vmatpush.msra.mxu0 %v1562
      %1593 = vmatpush.msra.mxu0 %v1560
      %1594 = vmatpush.msra.mxu0 %v1558
      %1595 = vmatpush.msra.mxu0 %v1556
      %1596 = vmatpush.msra.mxu0 %v1554
      %1597 = vmatpush.msra.mxu0 %v1552
      %1598 = vmatmul.f32.gmra.mxu0 %v1577
      %v1599 = vpop.f32.mrf.mxu0
      %v1600 = vadd.f32 %v1572, %v1599
      %1601 = vmatmul.f32.gmra.mxu0 %v1580
      %v1602 = vpop.f32.mrf.mxu0
      %v1603 = vadd.f32 %v1572, %v1602
      %1604 = vdwg.mxu0
      %1605 = vmatpush.msra.mxu0 0.0
      %1606 = vmatpush.msra.mxu0 0.0
      %1607 = vmatpush.msra.mxu0 0.0
      %1608 = vmatpush.msra.mxu0 0.0
      %1609 = vmatpush.msra.mxu0 0.0
      %1610 = vmatpush.msra.mxu0 0.0
      %1611 = vmatpush.msra.mxu0 0.0
      %1612 = vmatpush.msra.mxu0 0.0
      %1613 = vmatpush.msra.mxu0 %v1567
      %1614 = vmatpush.msra.mxu0 %v1565
      %1615 = vmatpush.msra.mxu0 %v1563
      %1616 = vmatpush.msra.mxu0 %v1561
      %1617 = vmatpush.msra.mxu0 %v1559
      %1618 = vmatpush.msra.mxu0 %v1557
      %1619 = vmatpush.msra.mxu0 %v1555
      %1620 = vmatpush.msra.mxu0 %v1553
      %1621 = vmatmul.f32.gmra.mxu0 %v1577
      %v1622 = vpop.f32.mrf.mxu0
      %v1623 = vadd.f32 %v1573, %v1622
      %1624 = vmatmul.f32.gmra.mxu0 %v1580
      %v1625 = vpop.f32.mrf.mxu0
      %v1626 = vadd.f32 %v1573, %v1625
      %1627 = vdwg.mxu0
      %s1628 = smul.u32 %s1542, 64
      %s1629 = scalar_lea.vmem [#allocation16], %s1628
      %v1630 = vld [vmem:[%s1629] sm:$0xff]
      %v1631 = vld [vmem:[%s1629 + $0x8] sm:$0xff]
      %v1632 = vld [vmem:[%s1629 + $0x10] sm:$0xff]
      %v1633 = vld [vmem:[%s1629 + $0x18] sm:$0xff]
      %v1634 = vld [vmem:[%s1629 + $0x20] sm:$0xff]
      %v1635 = vld [vmem:[%s1629 + $0x28] sm:$0xff]
      %v1636 = vld [vmem:[%s1629 + $0x30] sm:$0xff]
      %v1637 = vld [vmem:[%s1629 + $0x38] sm:$0xff]
      %s1638 = scalar_lea.vmem [#allocation17], %s1542
      %v1639 = vld [vmem:[%s1638] sm:$0x1]
      %1641 = vrot.lane.b32.xlu0 %v1600, 64
      %v1642 = vpop.permute.xlu0 %1641
      %v1643 = vsel %vm542, %v1600, 0
      %v1645 = vsel %vm542, %v1642, 0
      %1647 = vmatpush.xpose.msra.mxu0 0.0
      %1648 = vmatpush.xpose.msra.mxu0 0.0
      %1649 = vmatpush.xpose.msra.mxu0 0.0
      %1650 = vmatpush.xpose.msra.mxu0 0.0
      %1651 = vmatpush.xpose.msra.mxu0 0.0
      %1652 = vmatpush.xpose.msra.mxu0 0.0
      %1653 = vmatpush.xpose.msra.mxu0 0.0
      %1654 = vmatpush.xpose.msra.mxu0 0.0
      %1655 = vmatpush.xpose.msra.mxu0 0.0
      %1656 = vmatpush.xpose.msra.mxu0 0.0
      %1657 = vmatpush.xpose.msra.mxu0 0.0
      %1658 = vmatpush.xpose.msra.mxu0 0.0
      %1659 = vmatpush.xpose.msra.mxu0 0.0
      %1660 = vmatpush.xpose.msra.mxu0 0.0
      %1661 = vmatpush.xpose.msra.mxu0 0.0
      %1662 = vmatpush.xpose.msra.mxu0 %v1645
      %1663 = vmatmul.f32.gmra.mxu0 %v1643
      %v1664 = vpop.f32.mrf.mxu0
      %v1665 = vadd.f32 0.0, %v1664
      %1666 = vdwg.mxu0
      %v1667 = vmul.f32 %v1665, 0.25
      %vm1668 = vcmask 64512
      %v1669 = vsel %vm1668, %v1667, -inf
      %1670 = vmax.xlane.f32.xlu0 %v1669
      %v1671 = vpop.xlane.xlu0 %1670
      %v1672 = vsub.f32 %v1667, %v1671
      %v1673 = vmul.f32 %v1672, 1.442695
      %v1674 = vpow.pop %v1673
      %v1675 = vsel %vm1668, %v1674, 0.0
      %1676 = vadd.xlane.f32.xlu0 %v1675
      %v1677 = vpop.xlane.xlu0 %1676
      %v1678 = vrcp.pop %v1677
      %v1679 = vmul.f32 %v1674, %v1678
      %v1681 = vsel %vm1668, %v1679, 0
      %1683 = vmatpush.msra.mxu0 0.0
      %1684 = vmatpush.msra.mxu0 0.0
      %1685 = vmatpush.msra.mxu0 0.0
      %1686 = vmatpush.msra.mxu0 0.0
      %1687 = vmatpush.msra.mxu0 0.0
      %1688 = vmatpush.msra.mxu0 0.0
      %1689 = vmatpush.msra.mxu0 0.0
      %1690 = vmatpush.msra.mxu0 0.0
      %1691 = vmatpush.msra.mxu0 0.0
      %1692 = vmatpush.msra.mxu0 0.0
      %1693 = vmatpush.msra.mxu0 0.0
      %1694 = vmatpush.msra.mxu0 0.0
      %1695 = vmatpush.msra.mxu0 0.0
      %1696 = vmatpush.msra.mxu0 0.0
      %1697 = vmatpush.msra.mxu0 0.0
      %1698 = vmatpush.msra.mxu0 %v1623
      %1699 = vmatmul.f32.gmra.mxu0 %v1681
      %v1700 = vpop.f32.mrf.mxu0
      %v1701 = vadd.f32 0.0, %v1700
      %1702 = vdwg.mxu0
      %1703 = vrot.lane.b32.xlu0 %v1600, 112
      %v1704 = vpop.permute.xlu0 %1703
      %1705 = vrot.lane.b32.xlu0 %v1600, 48
      %v1706 = vpop.permute.xlu0 %1705
      %v1707 = vsel %vm542, %v1704, 0
      %v1709 = vsel %vm542, %v1706, 0
      %1711 = vmatpush.xpose.msra.mxu0 0.0
      %1712 = vmatpush.xpose.msra.mxu0 0.0
      %1713 = vmatpush.xpose.msra.mxu0 0.0
      %1714 = vmatpush.xpose.msra.mxu0 0.0
      %1715 = vmatpush.xpose.msra.mxu0 0.0
      %1716 = vmatpush.xpose.msra.mxu0 0.0
      %1717 = vmatpush.xpose.msra.mxu0 0.0
      %1718 = vmatpush.xpose.msra.mxu0 0.0
      %1719 = vmatpush.xpose.msra.mxu0 0.0
      %1720 = vmatpush.xpose.msra.mxu0 0.0
      %1721 = vmatpush.xpose.msra.mxu0 0.0
      %1722 = vmatpush.xpose.msra.mxu0 0.0
      %1723 = vmatpush.xpose.msra.mxu0 0.0
      %1724 = vmatpush.xpose.msra.mxu0 0.0
      %1725 = vmatpush.xpose.msra.mxu0 0.0
      %1726 = vmatpush.xpose.msra.mxu0 %v1709
      %1727 = vmatmul.f32.gmra.mxu0 %v1707
      %v1728 = vpop.f32.mrf.mxu0
      %v1729 = vadd.f32 0.0, %v1728
      %1730 = vdwg.mxu0
      %v1731 = vmul.f32 %v1729, 0.25
      %v1732 = vsel %vm1668, %v1731, -inf
      %1733 = vmax.xlane.f32.xlu0 %v1732
      %v1734 = vpop.xlane.xlu0 %1733
      %v1735 = vsub.f32 %v1731, %v1734
      %v1736 = vmul.f32 %v1735, 1.442695
      %v1737 = vpow.pop %v1736
      %v1738 = vsel %vm1668, %v1737, 0.0
      %1739 = vadd.xlane.f32.xlu0 %v1738
      %v1740 = vpop.xlane.xlu0 %1739
      %v1741 = vrcp.pop %v1740
      %v1742 = vmul.f32 %v1737, %v1741
      %1744 = vrot.lane.b32.xlu0 %v1623, 112
      %v1745 = vpop.permute.xlu0 %1744
      %v1748 = vsel %vm1668, %v1742, 0
      %1750 = vmatpush.msra.mxu0 0.0
      %1751 = vmatpush.msra.mxu0 0.0
      %1752 = vmatpush.msra.mxu0 0.0
      %1753 = vmatpush.msra.mxu0 0.0
      %1754 = vmatpush.msra.mxu0 0.0
      %1755 = vmatpush.msra.mxu0 0.0
      %1756 = vmatpush.msra.mxu0 0.0
      %1757 = vmatpush.msra.mxu0 0.0
      %1758 = vmatpush.msra.mxu0 0.0
      %1759 = vmatpush.msra.mxu0 0.0
      %1760 = vmatpush.msra.mxu0 0.0
      %1761 = vmatpush.msra.mxu0 0.0
      %1762 = vmatpush.msra.mxu0 0.0
      %1763 = vmatpush.msra.mxu0 0.0
      %1764 = vmatpush.msra.mxu0 0.0
      %1765 = vmatpush.msra.mxu0 %v1745
      %1766 = vmatmul.f32.gmra.mxu0 %v1748
      %v1767 = vpop.f32.mrf.mxu0
      %v1768 = vadd.f32 0.0, %v1767
      %1769 = vdwg.mxu0
      %1770 = vrot.lane.b32.xlu0 %v1600, 96
      %v1771 = vpop.permute.xlu0 %1770
      %1772 = vrot.lane.b32.xlu0 %v1600, 32
      %v1773 = vpop.permute.xlu0 %1772
      %v1774 = vsel %vm542, %v1771, 0
      %v1776 = vsel %vm542, %v1773, 0
      %1778 = vmatpush.xpose.msra.mxu0 0.0
      %1779 = vmatpush.xpose.msra.mxu0 0.0
      %1780 = vmatpush.xpose.msra.mxu0 0.0
      %1781 = vmatpush.xpose.msra.mxu0 0.0
      %1782 = vmatpush.xpose.msra.mxu0 0.0
      %1783 = vmatpush.xpose.msra.mxu0 0.0
      %1784 = vmatpush.xpose.msra.mxu0 0.0
      %1785 = vmatpush.xpose.msra.mxu0 0.0
      %1786 = vmatpush.xpose.msra.mxu0 0.0
      %1787 = vmatpush.xpose.msra.mxu0 0.0
      %1788 = vmatpush.xpose.msra.mxu0 0.0
      %1789 = vmatpush.xpose.msra.mxu0 0.0
      %1790 = vmatpush.xpose.msra.mxu0 0.0
      %1791 = vmatpush.xpose.msra.mxu0 0.0
      %1792 = vmatpush.xpose.msra.mxu0 0.0
      %1793 = vmatpush.xpose.msra.mxu0 %v1776
      %1794 = vmatmul.f32.gmra.mxu0 %v1774
      %v1795 = vpop.f32.mrf.mxu0
      %v1796 = vadd.f32 0.0, %v1795
      %1797 = vdwg.mxu0
      %v1798 = vmul.f32 %v1796, 0.25
      %v1799 = vsel %vm1668, %v1798, -inf
      %1800 = vmax.xlane.f32.xlu0 %v1799
      %v1801 = vpop.xlane.xlu0 %1800
      %v1802 = vsub.f32 %v1798, %v1801
      %v1803 = vmul.f32 %v1802, 1.442695
      %v1804 = vpow.pop %v1803
      %v1805 = vsel %vm1668, %v1804, 0.0
      %1806 = vadd.xlane.f32.xlu0 %v1805
      %v1807 = vpop.xlane.xlu0 %1806
      %v1808 = vrcp.pop %v1807
      %v1809 = vmul.f32 %v1804, %v1808
      %1810 = vrot.lane.b32.xlu0 %v1623, 96
      %v1811 = vpop.permute.xlu0 %1810
      %v1814 = vsel %vm1668, %v1809, 0
      %1816 = vmatpush.msra.mxu0 0.0
      %1817 = vmatpush.msra.mxu0 0.0
      %1818 = vmatpush.msra.mxu0 0.0
      %1819 = vmatpush.msra.mxu0 0.0
      %1820 = vmatpush.msra.mxu0 0.0
      %1821 = vmatpush.msra.mxu0 0.0
      %1822 = vmatpush.msra.mxu0 0.0
      %1823 = vmatpush.msra.mxu0 0.0
      %1824 = vmatpush.msra.mxu0 0.0
      %1825 = vmatpush.msra.mxu0 0.0
      %1826 = vmatpush.msra.mxu0 0.0
      %1827 = vmatpush.msra.mxu0 0.0
      %1828 = vmatpush.msra.mxu0 0.0
      %1829 = vmatpush.msra.mxu0 0.0
      %1830 = vmatpush.msra.mxu0 0.0
      %1831 = vmatpush.msra.mxu0 %v1811
      %1832 = vmatmul.f32.gmra.mxu0 %v1814
      %v1833 = vpop.f32.mrf.mxu0
      %v1834 = vadd.f32 0.0, %v1833
      %1835 = vdwg.mxu0
      %1836 = vrot.lane.b32.xlu0 %v1600, 80
      %v1837 = vpop.permute.xlu0 %1836
      %1838 = vrot.lane.b32.xlu0 %v1600, 16
      %v1839 = vpop.permute.xlu0 %1838
      %v1840 = vsel %vm542, %v1837, 0
      %v1842 = vsel %vm542, %v1839, 0
      %1844 = vmatpush.xpose.msra.mxu0 0.0
      %1845 = vmatpush.xpose.msra.mxu0 0.0
      %1846 = vmatpush.xpose.msra.mxu0 0.0
      %1847 = vmatpush.xpose.msra.mxu0 0.0
      %1848 = vmatpush.xpose.msra.mxu0 0.0
      %1849 = vmatpush.xpose.msra.mxu0 0.0
      %1850 = vmatpush.xpose.msra.mxu0 0.0
      %1851 = vmatpush.xpose.msra.mxu0 0.0
      %1852 = vmatpush.xpose.msra.mxu0 0.0
      %1853 = vmatpush.xpose.msra.mxu0 0.0
      %1854 = vmatpush.xpose.msra.mxu0 0.0
      %1855 = vmatpush.xpose.msra.mxu0 0.0
      %1856 = vmatpush.xpose.msra.mxu0 0.0
      %1857 = vmatpush.xpose.msra.mxu0 0.0
      %1858 = vmatpush.xpose.msra.mxu0 0.0
      %1859 = vmatpush.xpose.msra.mxu0 %v1842
      %1860 = vmatmul.f32.gmra.mxu0 %v1840
      %v1861 = vpop.f32.mrf.mxu0
      %v1862 = vadd.f32 0.0, %v1861
      %1863 = vdwg.mxu0
      %v1864 = vmul.f32 %v1862, 0.25
      %v1865 = vsel %vm1668, %v1864, -inf
      %1866 = vmax.xlane.f32.xlu0 %v1865
      %v1867 = vpop.xlane.xlu0 %1866
      %v1868 = vsub.f32 %v1864, %v1867
      %v1869 = vmul.f32 %v1868, 1.442695
      %v1870 = vpow.pop %v1869
      %v1871 = vsel %vm1668, %v1870, 0.0
      %1872 = vadd.xlane.f32.xlu0 %v1871
      %v1873 = vpop.xlane.xlu0 %1872
      %v1874 = vrcp.pop %v1873
      %v1875 = vmul.f32 %v1870, %v1874
      %1876 = vrot.lane.b32.xlu0 %v1623, 80
      %v1877 = vpop.permute.xlu0 %1876
      %v1880 = vsel %vm1668, %v1875, 0
      %1882 = vmatpush.msra.mxu0 0.0
      %1883 = vmatpush.msra.mxu0 0.0
      %1884 = vmatpush.msra.mxu0 0.0
      %1885 = vmatpush.msra.mxu0 0.0
      %1886 = vmatpush.msra.mxu0 0.0
      %1887 = vmatpush.msra.mxu0 0.0
      %1888 = vmatpush.msra.mxu0 0.0
      %1889 = vmatpush.msra.mxu0 0.0
      %1890 = vmatpush.msra.mxu0 0.0
      %1891 = vmatpush.msra.mxu0 0.0
      %1892 = vmatpush.msra.mxu0 0.0
      %1893 = vmatpush.msra.mxu0 0.0
      %1894 = vmatpush.msra.mxu0 0.0
      %1895 = vmatpush.msra.mxu0 0.0
      %1896 = vmatpush.msra.mxu0 0.0
      %1897 = vmatpush.msra.mxu0 %v1877
      %1898 = vmatmul.f32.gmra.mxu0 %v1880
      %v1899 = vpop.f32.mrf.mxu0
      %v1900 = vadd.f32 0.0, %v1899
      %1901 = vdwg.mxu0
      %1903 = vrot.lane.b32.xlu0 %v1768, 16
      %v1904 = vpop.permute.xlu0 %1903
      %1907 = vrot.lane.b32.xlu0 %v1834, 32
      %v1908 = vpop.permute.xlu0 %1907
      %1911 = vrot.lane.b32.xlu0 %v1900, 48
      %v1912 = vpop.permute.xlu0 %1911
      %v1914 = vsel %vm542, %v1701, %v1904
      %vm1915 = vcmask 261120
      %v1916 = vsel %vm1915, %v1914, %v1908
      %vm1917 = vcmask 392192
      %v1918 = vsel %vm1917, %v1916, %v1912
      %1920 = vrot.lane.b32.xlu0 %v1603, 64
      %v1921 = vpop.permute.xlu0 %1920
      %v1922 = vsel %vm542, %v1603, 0
      %v1924 = vsel %vm542, %v1921, 0
      %1926 = vmatpush.xpose.msra.mxu0 0.0
      %1927 = vmatpush.xpose.msra.mxu0 0.0
      %1928 = vmatpush.xpose.msra.mxu0 0.0
      %1929 = vmatpush.xpose.msra.mxu0 0.0
      %1930 = vmatpush.xpose.msra.mxu0 0.0
      %1931 = vmatpush.xpose.msra.mxu0 0.0
      %1932 = vmatpush.xpose.msra.mxu0 0.0
      %1933 = vmatpush.xpose.msra.mxu0 0.0
      %1934 = vmatpush.xpose.msra.mxu0 0.0
      %1935 = vmatpush.xpose.msra.mxu0 0.0
      %1936 = vmatpush.xpose.msra.mxu0 0.0
      %1937 = vmatpush.xpose.msra.mxu0 0.0
      %1938 = vmatpush.xpose.msra.mxu0 0.0
      %1939 = vmatpush.xpose.msra.mxu0 0.0
      %1940 = vmatpush.xpose.msra.mxu0 0.0
      %1941 = vmatpush.xpose.msra.mxu0 %v1924
      %1942 = vmatmul.f32.gmra.mxu0 %v1922
      %v1943 = vpop.f32.mrf.mxu0
      %v1944 = vadd.f32 0.0, %v1943
      %1945 = vdwg.mxu0
      %v1946 = vmul.f32 %v1944, 0.25
      %v1947 = vsel %vm1668, %v1946, -inf
      %1948 = vmax.xlane.f32.xlu0 %v1947
      %v1949 = vpop.xlane.xlu0 %1948
      %v1950 = vsub.f32 %v1946, %v1949
      %v1951 = vmul.f32 %v1950, 1.442695
      %v1952 = vpow.pop %v1951
      %v1953 = vsel %vm1668, %v1952, 0.0
      %1954 = vadd.xlane.f32.xlu0 %v1953
      %v1955 = vpop.xlane.xlu0 %1954
      %v1956 = vrcp.pop %v1955
      %v1957 = vmul.f32 %v1952, %v1956
      %v1959 = vsel %vm1668, %v1957, 0
      %1961 = vmatpush.msra.mxu0 0.0
      %1962 = vmatpush.msra.mxu0 0.0
      %1963 = vmatpush.msra.mxu0 0.0
      %1964 = vmatpush.msra.mxu0 0.0
      %1965 = vmatpush.msra.mxu0 0.0
      %1966 = vmatpush.msra.mxu0 0.0
      %1967 = vmatpush.msra.mxu0 0.0
      %1968 = vmatpush.msra.mxu0 0.0
      %1969 = vmatpush.msra.mxu0 0.0
      %1970 = vmatpush.msra.mxu0 0.0
      %1971 = vmatpush.msra.mxu0 0.0
      %1972 = vmatpush.msra.mxu0 0.0
      %1973 = vmatpush.msra.mxu0 0.0
      %1974 = vmatpush.msra.mxu0 0.0
      %1975 = vmatpush.msra.mxu0 0.0
      %1976 = vmatpush.msra.mxu0 %v1626
      %1977 = vmatmul.f32.gmra.mxu0 %v1959
      %v1978 = vpop.f32.mrf.mxu0
      %v1979 = vadd.f32 0.0, %v1978
      %1980 = vdwg.mxu0
      %1981 = vrot.lane.b32.xlu0 %v1603, 112
      %v1982 = vpop.permute.xlu0 %1981
      %1983 = vrot.lane.b32.xlu0 %v1603, 48
      %v1984 = vpop.permute.xlu0 %1983
      %v1985 = vsel %vm542, %v1982, 0
      %v1987 = vsel %vm542, %v1984, 0
      %1989 = vmatpush.xpose.msra.mxu0 0.0
      %1990 = vmatpush.xpose.msra.mxu0 0.0
      %1991 = vmatpush.xpose.msra.mxu0 0.0
      %1992 = vmatpush.xpose.msra.mxu0 0.0
      %1993 = vmatpush.xpose.msra.mxu0 0.0
      %1994 = vmatpush.xpose.msra.mxu0 0.0
      %1995 = vmatpush.xpose.msra.mxu0 0.0
      %1996 = vmatpush.xpose.msra.mxu0 0.0
      %1997 = vmatpush.xpose.msra.mxu0 0.0
      %1998 = vmatpush.xpose.msra.mxu0 0.0
      %1999 = vmatpush.xpose.msra.mxu0 0.0
      %2000 = vmatpush.xpose.msra.mxu0 0.0
      %2001 = vmatpush.xpose.msra.mxu0 0.0
      %2002 = vmatpush.xpose.msra.mxu0 0.0
      %2003 = vmatpush.xpose.msra.mxu0 0.0
      %2004 = vmatpush.xpose.msra.mxu0 %v1987
      %2005 = vmatmul.f32.gmra.mxu0 %v1985
      %v2006 = vpop.f32.mrf.mxu0
      %v2007 = vadd.f32 0.0, %v2006
      %2008 = vdwg.mxu0
      %v2009 = vmul.f32 %v2007, 0.25
      %v2010 = vsel %vm1668, %v2009, -inf
      %2011 = vmax.xlane.f32.xlu0 %v2010
      %v2012 = vpop.xlane.xlu0 %2011
      %v2013 = vsub.f32 %v2009, %v2012
      %v2014 = vmul.f32 %v2013, 1.442695
      %v2015 = vpow.pop %v2014
      %v2016 = vsel %vm1668, %v2015, 0.0
      %2017 = vadd.xlane.f32.xlu0 %v2016
      %v2018 = vpop.xlane.xlu0 %2017
      %v2019 = vrcp.pop %v2018
      %v2020 = vmul.f32 %v2015, %v2019
      %2022 = vrot.lane.b32.xlu0 %v1626, 112
      %v2023 = vpop.permute.xlu0 %2022
      %v2026 = vsel %vm1668, %v2020, 0
      %2028 = vmatpush.msra.mxu0 0.0
      %2029 = vmatpush.msra.mxu0 0.0
      %2030 = vmatpush.msra.mxu0 0.0
      %2031 = vmatpush.msra.mxu0 0.0
      %2032 = vmatpush.msra.mxu0 0.0
      %2033 = vmatpush.msra.mxu0 0.0
      %2034 = vmatpush.msra.mxu0 0.0
      %2035 = vmatpush.msra.mxu0 0.0
      %2036 = vmatpush.msra.mxu0 0.0
      %2037 = vmatpush.msra.mxu0 0.0
      %2038 = vmatpush.msra.mxu0 0.0
      %2039 = vmatpush.msra.mxu0 0.0
      %2040 = vmatpush.msra.mxu0 0.0
      %2041 = vmatpush.msra.mxu0 0.0
      %2042 = vmatpush.msra.mxu0 0.0
      %2043 = vmatpush.msra.mxu0 %v2023
      %2044 = vmatmul.f32.gmra.mxu0 %v2026
      %v2045 = vpop.f32.mrf.mxu0
      %v2046 = vadd.f32 0.0, %v2045
      %2047 = vdwg.mxu0
      %2048 = vrot.lane.b32.xlu0 %v1603, 96
      %v2049 = vpop.permute.xlu0 %2048
      %2050 = vrot.lane.b32.xlu0 %v1603, 32
      %v2051 = vpop.permute.xlu0 %2050
      %v2052 = vsel %vm542, %v2049, 0
      %v2054 = vsel %vm542, %v2051, 0
      %2056 = vmatpush.xpose.msra.mxu0 0.0
      %2057 = vmatpush.xpose.msra.mxu0 0.0
      %2058 = vmatpush.xpose.msra.mxu0 0.0
      %2059 = vmatpush.xpose.msra.mxu0 0.0
      %2060 = vmatpush.xpose.msra.mxu0 0.0
      %2061 = vmatpush.xpose.msra.mxu0 0.0
      %2062 = vmatpush.xpose.msra.mxu0 0.0
      %2063 = vmatpush.xpose.msra.mxu0 0.0
      %2064 = vmatpush.xpose.msra.mxu0 0.0
      %2065 = vmatpush.xpose.msra.mxu0 0.0
      %2066 = vmatpush.xpose.msra.mxu0 0.0
      %2067 = vmatpush.xpose.msra.mxu0 0.0
      %2068 = vmatpush.xpose.msra.mxu0 0.0
      %2069 = vmatpush.xpose.msra.mxu0 0.0
      %2070 = vmatpush.xpose.msra.mxu0 0.0
      %2071 = vmatpush.xpose.msra.mxu0 %v2054
      %2072 = vmatmul.f32.gmra.mxu0 %v2052
      %v2073 = vpop.f32.mrf.mxu0
      %v2074 = vadd.f32 0.0, %v2073
      %2075 = vdwg.mxu0
      %v2076 = vmul.f32 %v2074, 0.25
      %v2077 = vsel %vm1668, %v2076, -inf
      %2078 = vmax.xlane.f32.xlu0 %v2077
      %v2079 = vpop.xlane.xlu0 %2078
      %v2080 = vsub.f32 %v2076, %v2079
      %v2081 = vmul.f32 %v2080, 1.442695
      %v2082 = vpow.pop %v2081
      %v2083 = vsel %vm1668, %v2082, 0.0
      %2084 = vadd.xlane.f32.xlu0 %v2083
      %v2085 = vpop.xlane.xlu0 %2084
      %v2086 = vrcp.pop %v2085
      %v2087 = vmul.f32 %v2082, %v2086
      %2088 = vrot.lane.b32.xlu0 %v1626, 96
      %v2089 = vpop.permute.xlu0 %2088
      %v2092 = vsel %vm1668, %v2087, 0
      %2094 = vmatpush.msra.mxu0 0.0
      %2095 = vmatpush.msra.mxu0 0.0
      %2096 = vmatpush.msra.mxu0 0.0
      %2097 = vmatpush.msra.mxu0 0.0
      %2098 = vmatpush.msra.mxu0 0.0
      %2099 = vmatpush.msra.mxu0 0.0
      %2100 = vmatpush.msra.mxu0 0.0
      %2101 = vmatpush.msra.mxu0 0.0
      %2102 = vmatpush.msra.mxu0 0.0
      %2103 = vmatpush.msra.mxu0 0.0
      %2104 = vmatpush.msra.mxu0 0.0
      %2105 = vmatpush.msra.mxu0 0.0
      %2106 = vmatpush.msra.mxu0 0.0
      %2107 = vmatpush.msra.mxu0 0.0
      %2108 = vmatpush.msra.mxu0 0.0
      %2109 = vmatpush.msra.mxu0 %v2089
      %2110 = vmatmul.f32.gmra.mxu0 %v2092
      %v2111 = vpop.f32.mrf.mxu0
      %v2112 = vadd.f32 0.0, %v2111
      %2113 = vdwg.mxu0
      %2114 = vrot.lane.b32.xlu0 %v1603, 80
      %v2115 = vpop.permute.xlu0 %2114
      %2116 = vrot.lane.b32.xlu0 %v1603, 16
      %v2117 = vpop.permute.xlu0 %2116
      %v2118 = vsel %vm542, %v2115, 0
      %v2120 = vsel %vm542, %v2117, 0
      %2122 = vmatpush.xpose.msra.mxu0 0.0
      %2123 = vmatpush.xpose.msra.mxu0 0.0
      %2124 = vmatpush.xpose.msra.mxu0 0.0
      %2125 = vmatpush.xpose.msra.mxu0 0.0
      %2126 = vmatpush.xpose.msra.mxu0 0.0
      %2127 = vmatpush.xpose.msra.mxu0 0.0
      %2128 = vmatpush.xpose.msra.mxu0 0.0
      %2129 = vmatpush.xpose.msra.mxu0 0.0
      %2130 = vmatpush.xpose.msra.mxu0 0.0
      %2131 = vmatpush.xpose.msra.mxu0 0.0
      %2132 = vmatpush.xpose.msra.mxu0 0.0
      %2133 = vmatpush.xpose.msra.mxu0 0.0
      %2134 = vmatpush.xpose.msra.mxu0 0.0
      %2135 = vmatpush.xpose.msra.mxu0 0.0
      %2136 = vmatpush.xpose.msra.mxu0 0.0
      %2137 = vmatpush.xpose.msra.mxu0 %v2120
      %2138 = vmatmul.f32.gmra.mxu0 %v2118
      %v2139 = vpop.f32.mrf.mxu0
      %v2140 = vadd.f32 0.0, %v2139
      %2141 = vdwg.mxu0
      %v2142 = vmul.f32 %v2140, 0.25
      %v2143 = vsel %vm1668, %v2142, -inf
      %2144 = vmax.xlane.f32.xlu0 %v2143
      %v2145 = vpop.xlane.xlu0 %2144
      %v2146 = vsub.f32 %v2142, %v2145
      %v2147 = vmul.f32 %v2146, 1.442695
      %v2148 = vpow.pop %v2147
      %v2149 = vsel %vm1668, %v2148, 0.0
      %2150 = vadd.xlane.f32.xlu0 %v2149
      %v2151 = vpop.xlane.xlu0 %2150
      %v2152 = vrcp.pop %v2151
      %v2153 = vmul.f32 %v2148, %v2152
      %2154 = vrot.lane.b32.xlu0 %v1626, 80
      %v2155 = vpop.permute.xlu0 %2154
      %v2158 = vsel %vm1668, %v2153, 0
      %2160 = vmatpush.msra.mxu0 0.0
      %2161 = vmatpush.msra.mxu0 0.0
      %2162 = vmatpush.msra.mxu0 0.0
      %2163 = vmatpush.msra.mxu0 0.0
      %2164 = vmatpush.msra.mxu0 0.0
      %2165 = vmatpush.msra.mxu0 0.0
      %2166 = vmatpush.msra.mxu0 0.0
      %2167 = vmatpush.msra.mxu0 0.0
      %2168 = vmatpush.msra.mxu0 0.0
      %2169 = vmatpush.msra.mxu0 0.0
      %2170 = vmatpush.msra.mxu0 0.0
      %2171 = vmatpush.msra.mxu0 0.0
      %2172 = vmatpush.msra.mxu0 0.0
      %2173 = vmatpush.msra.mxu0 0.0
      %2174 = vmatpush.msra.mxu0 0.0
      %2175 = vmatpush.msra.mxu0 %v2155
      %2176 = vmatmul.f32.gmra.mxu0 %v2158
      %v2177 = vpop.f32.mrf.mxu0
      %v2178 = vadd.f32 0.0, %v2177
      %2179 = vdwg.mxu0
      %2181 = vrot.lane.b32.xlu0 %v2046, 16
      %v2182 = vpop.permute.xlu0 %2181
      %2185 = vrot.lane.b32.xlu0 %v2112, 32
      %v2186 = vpop.permute.xlu0 %2185
      %2189 = vrot.lane.b32.xlu0 %v2178, 48
      %v2190 = vpop.permute.xlu0 %2189
      %v2192 = vsel %vm542, %v1979, %v2182
      %v2193 = vsel %vm1915, %v2192, %v2186
      %v2194 = vsel %vm1917, %v2193, %v2190
      %v2196 = vperm.slane %v1639, 0
      %v2199 = vsel %vm1479, %v1918, 0
      %v2202 = vsel %vm1479, %v2194, 0
      %2204 = vmatpush.msra.mxu0 0.0
      %2205 = vmatpush.msra.mxu0 0.0
      %2206 = vmatpush.msra.mxu0 0.0
      %2207 = vmatpush.msra.mxu0 0.0
      %2208 = vmatpush.msra.mxu0 0.0
      %2209 = vmatpush.msra.mxu0 0.0
      %2210 = vmatpush.msra.mxu0 0.0
      %2211 = vmatpush.msra.mxu0 0.0
      %2212 = vmatpush.msra.mxu0 %v1637
      %2213 = vmatpush.msra.mxu0 %v1636
      %2214 = vmatpush.msra.mxu0 %v1635
      %2215 = vmatpush.msra.mxu0 %v1634
      %2216 = vmatpush.msra.mxu0 %v1633
      %2217 = vmatpush.msra.mxu0 %v1632
      %2218 = vmatpush.msra.mxu0 %v1631
      %2219 = vmatpush.msra.mxu0 %v1630
      %2220 = vmatmul.f32.gmra.mxu0 %v2199
      %v2221 = vpop.f32.mrf.mxu0
      %v2222 = vadd.f32 %v2196, %v2221
      %2223 = vmatmul.f32.gmra.mxu0 %v2202
      %v2224 = vpop.f32.mrf.mxu0
      %v2225 = vadd.f32 %v2196, %v2224
      %2226 = vdwg.mxu0
      %v2227 = vadd.f32 %v1547, %v2222
      %v2228 = vadd.f32 %v1548, %v2225
      %s2229 = scalar_lea.vmem [#allocation19], %s1542
      %v2230 = vld [vmem:[%s2229] sm:$0x1]
      %s2231 = scalar_lea.vmem [#allocation20], %s1542
      %v2232 = vld [vmem:[%s2231] sm:$0x1]
      %v2233 = vsel %vm1479, %v2227, 0.0
      %2234 = vadd.xlane.f32.xlu0 %v2233
      %v2235 = vpop.xlane.xlu0 %2234
      %v2236 = vsel %vm1479, %v2228, 0.0
      %2237 = vadd.xlane.f32.xlu0 %v2236
      %v2238 = vpop.xlane.xlu0 %2237
      %v2239 = vmul.f32 %v2235, %v1492
      %v2240 = vmul.f32 %v2238, %v1492
      %v2241 = vsub.f32 %v2227, %v2239
      %v2242 = vsub.f32 %v2228, %v2240
      %v2243 = vmul.f32 %v2241, %v2241
      %v2244 = vmul.f32 %v2242, %v2242
      %v2245 = vsel %vm1479, %v2243, 0.0
      %2246 = vadd.xlane.f32.xlu0 %v2245
      %v2247 = vpop.xlane.xlu0 %2246
      %v2248 = vsel %vm1479, %v2244, 0.0
      %2249 = vadd.xlane.f32.xlu0 %v2248
      %v2250 = vpop.xlane.xlu0 %2249
      %v2251 = vmul.f32 %v2247, %v1492
      %v2252 = vmul.f32 %v2250, %v1492
      %v2253 = vadd.f32 %v2251, 1e-05
      %v2254 = vadd.f32 %v2252, 1e-05
      %v2255 = vrsqrt.pop %v2253
      %v2256 = vmul.f32 %v2255, %v2253
      %v2257 = vmul.f32 %v2256, %v2255
      %v2258 = vmul.f32 0.5, %v2257
      %v2259 = vsub.f32 1.5, %v2258
      %v2260 = vmul.f32 %v2255, %v2259
      %vm2261 = vweird.f32 %v2253
      %vm2262 = vweird.f32 %v2255
      %vm2263 = vmor %vm2261, %vm2262
      %v2264 = vsel %vm2263, %v2255, %v2260
      %v2265 = vrsqrt.pop %v2254
      %v2266 = vmul.f32 %v2265, %v2254
      %v2267 = vmul.f32 %v2266, %v2265
      %v2268 = vmul.f32 0.5, %v2267
      %v2269 = vsub.f32 1.5, %v2268
      %v2270 = vmul.f32 %v2265, %v2269
      %vm2271 = vweird.f32 %v2254
      %vm2272 = vweird.f32 %v2265
      %vm2273 = vmor %vm2271, %vm2272
      %v2274 = vsel %vm2273, %v2265, %v2270
      %v2275 = vmul.f32 %v2241, %v2264
      %v2276 = vmul.f32 %v2242, %v2274
      %v2278 = vperm.slane %v2230, 0
      %v2280 = vmul.f32 %v2275, %v2278
      %v2281 = vmul.f32 %v2276, %v2278
      %v2283 = vperm.slane %v2232, 0
      %v2285 = vadd.f32 %v2280, %v2283
      %v2286 = vadd.f32 %v2281, %v2283
      %s2287 = smul.addr %s1549, 8
      %s2288 = scalar_lea.vmem [#allocation22], %s2287
      %v2289 = vld [vmem:[%s2288] sm:$0xff]
      %v2290 = vld [vmem:[%s2288 + $0x8] sm:$0xff]
      %v2291 = vld [vmem:[%s2288 + $0x10] sm:$0xff]
      %v2292 = vld [vmem:[%s2288 + $0x18] sm:$0xff]
      %v2293 = vld [vmem:[%s2288 + $0x20] sm:$0xff]
      %v2294 = vld [vmem:[%s2288 + $0x28] sm:$0xff]
      %v2295 = vld [vmem:[%s2288 + $0x30] sm:$0xff]
      %v2296 = vld [vmem:[%s2288 + $0x38] sm:$0xff]
      %v2297 = vld [vmem:[%s2288 + $0x40] sm:$0xff]
      %v2298 = vld [vmem:[%s2288 + $0x48] sm:$0xff]
      %v2299 = vld [vmem:[%s2288 + $0x50] sm:$0xff]
      %v2300 = vld [vmem:[%s2288 + $0x58] sm:$0xff]
      %v2301 = vld [vmem:[%s2288 + $0x60] sm:$0xff]
      %v2302 = vld [vmem:[%s2288 + $0x68] sm:$0xff]
      %v2303 = vld [vmem:[%s2288 + $0x70] sm:$0xff]
      %v2304 = vld [vmem:[%s2288 + $0x78] sm:$0xff]
      %s2305 = scalar_lea.vmem [#allocation23], %s1568
      %v2306 = vld [vmem:[%s2305] sm:$0x3]
      %v2308 = vperm.slane %v2306, 0
      %v2311 = vsel %vm1479, %v2285, 0
      %v2314 = vsel %vm1479, %v2286, 0
      %2316 = vmatpush.msra.mxu0 0.0
      %2317 = vmatpush.msra.mxu0 0.0
      %2318 = vmatpush.msra.mxu0 0.0
      %2319 = vmatpush.msra.mxu0 0.0
      %2320 = vmatpush.msra.mxu0 0.0
      %2321 = vmatpush.msra.mxu0 0.0
      %2322 = vmatpush.msra.mxu0 0.0
      %2323 = vmatpush.msra.mxu0 0.0
      %2324 = vmatpush.msra.mxu0 %v2303
      %2325 = vmatpush.msra.mxu0 %v2301
      %2326 = vmatpush.msra.mxu0 %v2299
      %2327 = vmatpush.msra.mxu0 %v2297
      %2328 = vmatpush.msra.mxu0 %v2295
      %2329 = vmatpush.msra.mxu0 %v2293
      %2330 = vmatpush.msra.mxu0 %v2291
      %2331 = vmatpush.msra.mxu0 %v2289
      %2332 = vmatmul.f32.gmra.mxu0 %v2311
      %v2333 = vpop.f32.mrf.mxu0
      %v2334 = vadd.f32 %v2308, %v2333
      %2335 = vmatmul.f32.gmra.mxu0 %v2314
      %v2336 = vpop.f32.mrf.mxu0
      %v2337 = vadd.f32 %v2308, %v2336
      %2338 = vdwg.mxu0
      %v2339 = vperm.slane %v2306, 1
      %2356 = vrot.lane.b32.xlu0 %v2289, 64
      %v2357 = vpop.permute.xlu0 %2356
      %2358 = vrot.lane.b32.xlu0 %v2290, 64
      %v2359 = vpop.permute.xlu0 %2358
      %2360 = vrot.lane.b32.xlu0 %v2291, 64
      %v2361 = vpop.permute.xlu0 %2360
      %2362 = vrot.lane.b32.xlu0 %v2292, 64
      %v2363 = vpop.permute.xlu0 %2362
      %2364 = vrot.lane.b32.xlu0 %v2293, 64
      %v2365 = vpop.permute.xlu0 %2364
      %2366 = vrot.lane.b32.xlu0 %v2294, 64
      %v2367 = vpop.permute.xlu0 %2366
      %2368 = vrot.lane.b32.xlu0 %v2295, 64
      %v2369 = vpop.permute.xlu0 %2368
      %2370 = vrot.lane.b32.xlu0 %v2296, 64
      %v2371 = vpop.permute.xlu0 %2370
      %2372 = vrot.lane.b32.xlu0 %v2297, 64
      %v2373 = vpop.permute.xlu0 %2372
      %2374 = vrot.lane.b32.xlu0 %v2298, 64
      %v2375 = vpop.permute.xlu0 %2374
      %2376 = vrot.lane.b32.xlu0 %v2299, 64
      %v2377 = vpop.permute.xlu0 %2376
      %2378 = vrot.lane.b32.xlu0 %v2300, 64
      %v2379 = vpop.permute.xlu0 %2378
      %2380 = vrot.lane.b32.xlu0 %v2301, 64
      %v2381 = vpop.permute.xlu0 %2380
      %2382 = vrot.lane.b32.xlu0 %v2302, 64
      %v2383 = vpop.permute.xlu0 %2382
      %2384 = vrot.lane.b32.xlu0 %v2303, 64
      %v2385 = vpop.permute.xlu0 %2384
      %2386 = vrot.lane.b32.xlu0 %v2304, 64
      %v2387 = vpop.permute.xlu0 %2386
      %v2388 = vsel %vm1479, %v2357, %v2359
      %v2389 = vsel %vm1479, %v2361, %v2363
      %v2390 = vsel %vm1479, %v2365, %v2367
      %v2391 = vsel %vm1479, %v2369, %v2371
      %v2392 = vsel %vm1479, %v2373, %v2375
      %v2393 = vsel %vm1479, %v2377, %v2379
      %v2394 = vsel %vm1479, %v2381, %v2383
      %v2395 = vsel %vm1479, %v2385, %v2387
      %2404 = vrot.lane.b32.xlu0 %v2308, 64
      %v2405 = vpop.permute.xlu0 %2404
      %2406 = vrot.lane.b32.xlu0 %v2339, 64
      %v2407 = vpop.permute.xlu0 %2406
      %v2408 = vsel %vm1479, %v2405, %v2407
      %v2411 = vsel %vm1479, %v1539, 0
      %v2414 = vsel %vm1479, %v1540, 0
      %2416 = vmatpush.msra.mxu0 0.0
      %2417 = vmatpush.msra.mxu0 0.0
      %2418 = vmatpush.msra.mxu0 0.0
      %2419 = vmatpush.msra.mxu0 0.0
      %2420 = vmatpush.msra.mxu0 0.0
      %2421 = vmatpush.msra.mxu0 0.0
      %2422 = vmatpush.msra.mxu0 0.0
      %2423 = vmatpush.msra.mxu0 0.0
      %2424 = vmatpush.msra.mxu0 %v2395
      %2425 = vmatpush.msra.mxu0 %v2394
      %2426 = vmatpush.msra.mxu0 %v2393
      %2427 = vmatpush.msra.mxu0 %v2392
      %2428 = vmatpush.msra.mxu0 %v2391
      %2429 = vmatpush.msra.mxu0 %v2390
      %2430 = vmatpush.msra.mxu0 %v2389
      %2431 = vmatpush.msra.mxu0 %v2388
      %2432 = vmatmul.f32.gmra.mxu0 %v2411
      %v2433 = vpop.f32.mrf.mxu0
      %v2434 = vadd.f32 %v2408, %v2433
      %2435 = vmatmul.f32.gmra.mxu0 %v2414
      %v2436 = vpop.f32.mrf.mxu0
      %v2437 = vadd.f32 %v2408, %v2436
      %2438 = vdwg.mxu0
      %s2439 = scalar_lea.vmem [#allocation25], %s1628
      %v2440 = vld [vmem:[%s2439] sm:$0xff]
      %v2441 = vld [vmem:[%s2439 + $0x8] sm:$0xff]
      %v2442 = vld [vmem:[%s2439 + $0x10] sm:$0xff]
      %v2443 = vld [vmem:[%s2439 + $0x18] sm:$0xff]
      %v2444 = vld [vmem:[%s2439 + $0x20] sm:$0xff]
      %v2445 = vld [vmem:[%s2439 + $0x28] sm:$0xff]
      %v2446 = vld [vmem:[%s2439 + $0x30] sm:$0xff]
      %v2447 = vld [vmem:[%s2439 + $0x38] sm:$0xff]
      %s2448 = scalar_lea.vmem [#allocation26], %s1542
      %v2449 = vld [vmem:[%s2448] sm:$0x1]
      %v2451 = vsel %vm542, %v2334, 0
      %v2454 = vsel %vm542, %v2434, 0
      %2456 = vmatpush.xpose.msra.mxu0 0.0
      %2457 = vmatpush.xpose.msra.mxu0 0.0
      %2458 = vmatpush.xpose.msra.mxu0 0.0
      %2459 = vmatpush.xpose.msra.mxu0 0.0
      %2460 = vmatpush.xpose.msra.mxu0 0.0
      %2461 = vmatpush.xpose.msra.mxu0 0.0
      %2462 = vmatpush.xpose.msra.mxu0 0.0
      %2463 = vmatpush.xpose.msra.mxu0 0.0
      %2464 = vmatpush.xpose.msra.mxu0 0.0
      %2465 = vmatpush.xpose.msra.mxu0 0.0
      %2466 = vmatpush.xpose.msra.mxu0 0.0
      %2467 = vmatpush.xpose.msra.mxu0 0.0
      %2468 = vmatpush.xpose.msra.mxu0 0.0
      %2469 = vmatpush.xpose.msra.mxu0 0.0
      %2470 = vmatpush.xpose.msra.mxu0 0.0
      %2471 = vmatpush.xpose.msra.mxu0 %v2454
      %2472 = vmatmul.f32.gmra.mxu0 %v2451
      %v2473 = vpop.f32.mrf.mxu0
      %v2474 = vadd.f32 0.0, %v2473
      %2475 = vdwg.mxu0
      %v2476 = vmul.f32 %v2474, 0.25
      %v2477 = vsel %vm1668, %v2476, -inf
      %2478 = vmax.xlane.f32.xlu0 %v2477
      %v2479 = vpop.xlane.xlu0 %2478
      %v2480 = vsub.f32 %v2476, %v2479
      %v2481 = vmul.f32 %v2480, 1.442695
      %v2482 = vpow.pop %v2481
      %v2483 = vsel %vm1668, %v2482, 0.0
      %2484 = vadd.xlane.f32.xlu0 %v2483
      %v2485 = vpop.xlane.xlu0 %2484
      %v2486 = vrcp.pop %v2485
      %v2487 = vmul.f32 %v2482, %v2486
      %2488 = vrot.lane.b32.xlu0 %v2434, 64
      %v2489 = vpop.permute.xlu0 %2488
      %v2492 = vsel %vm1668, %v2487, 0
      %2494 = vmatpush.msra.mxu0 0.0
      %2495 = vmatpush.msra.mxu0 0.0
      %2496 = vmatpush.msra.mxu0 0.0
      %2497 = vmatpush.msra.mxu0 0.0
      %2498 = vmatpush.msra.mxu0 0.0
      %2499 = vmatpush.msra.mxu0 0.0
      %2500 = vmatpush.msra.mxu0 0.0
      %2501 = vmatpush.msra.mxu0 0.0
      %2502 = vmatpush.msra.mxu0 0.0
      %2503 = vmatpush.msra.mxu0 0.0
      %2504 = vmatpush.msra.mxu0 0.0
      %2505 = vmatpush.msra.mxu0 0.0
      %2506 = vmatpush.msra.mxu0 0.0
      %2507 = vmatpush.msra.mxu0 0.0
      %2508 = vmatpush.msra.mxu0 0.0
      %2509 = vmatpush.msra.mxu0 %v2489
      %2510 = vmatmul.f32.gmra.mxu0 %v2492
      %v2511 = vpop.f32.mrf.mxu0
      %v2512 = vadd.f32 0.0, %v2511
      %2513 = vdwg.mxu0
      %2514 = vrot.lane.b32.xlu0 %v2334, 112
      %v2515 = vpop.permute.xlu0 %2514
      %2516 = vrot.lane.b32.xlu0 %v2434, 112
      %v2517 = vpop.permute.xlu0 %2516
      %v2518 = vsel %vm542, %v2515, 0
      %v2520 = vsel %vm542, %v2517, 0
      %2522 = vmatpush.xpose.msra.mxu0 0.0
      %2523 = vmatpush.xpose.msra.mxu0 0.0
      %2524 = vmatpush.xpose.msra.mxu0 0.0
      %2525 = vmatpush.xpose.msra.mxu0 0.0
      %2526 = vmatpush.xpose.msra.mxu0 0.0
      %2527 = vmatpush.xpose.msra.mxu0 0.0
      %2528 = vmatpush.xpose.msra.mxu0 0.0
      %2529 = vmatpush.xpose.msra.mxu0 0.0
      %2530 = vmatpush.xpose.msra.mxu0 0.0
      %2531 = vmatpush.xpose.msra.mxu0 0.0
      %2532 = vmatpush.xpose.msra.mxu0 0.0
      %2533 = vmatpush.xpose.msra.mxu0 0.0
      %2534 = vmatpush.xpose.msra.mxu0 0.0
      %2535 = vmatpush.xpose.msra.mxu0 0.0
      %2536 = vmatpush.xpose.msra.mxu0 0.0
      %2537 = vmatpush.xpose.msra.mxu0 %v2520
      %2538 = vmatmul.f32.gmra.mxu0 %v2518
      %v2539 = vpop.f32.mrf.mxu0
      %v2540 = vadd.f32 0.0, %v2539
      %2541 = vdwg.mxu0
      %v2542 = vmul.f32 %v2540, 0.25
      %v2543 = vsel %vm1668, %v2542, -inf
      %2544 = vmax.xlane.f32.xlu0 %v2543
      %v2545 = vpop.xlane.xlu0 %2544
      %v2546 = vsub.f32 %v2542, %v2545
      %v2547 = vmul.f32 %v2546, 1.442695
      %v2548 = vpow.pop %v2547
      %v2549 = vsel %vm1668, %v2548, 0.0
      %2550 = vadd.xlane.f32.xlu0 %v2549
      %v2551 = vpop.xlane.xlu0 %2550
      %v2552 = vrcp.pop %v2551
      %v2553 = vmul.f32 %v2548, %v2552
      %2554 = vrot.lane.b32.xlu0 %v2434, 48
      %v2555 = vpop.permute.xlu0 %2554
      %v2558 = vsel %vm1668, %v2553, 0
      %2560 = vmatpush.msra.mxu0 0.0
      %2561 = vmatpush.msra.mxu0 0.0
      %2562 = vmatpush.msra.mxu0 0.0
      %2563 = vmatpush.msra.mxu0 0.0
      %2564 = vmatpush.msra.mxu0 0.0
      %2565 = vmatpush.msra.mxu0 0.0
      %2566 = vmatpush.msra.mxu0 0.0
      %2567 = vmatpush.msra.mxu0 0.0
      %2568 = vmatpush.msra.mxu0 0.0
      %2569 = vmatpush.msra.mxu0 0.0
      %2570 = vmatpush.msra.mxu0 0.0
      %2571 = vmatpush.msra.mxu0 0.0
      %2572 = vmatpush.msra.mxu0 0.0
      %2573 = vmatpush.msra.mxu0 0.0
      %2574 = vmatpush.msra.mxu0 0.0
      %2575 = vmatpush.msra.mxu0 %v2555
      %2576 = vmatmul.f32.gmra.mxu0 %v2558
      %v2577 = vpop.f32.mrf.mxu0
      %v2578 = vadd.f32 0.0, %v2577
      %2579 = vdwg.mxu0
      %2580 = vrot.lane.b32.xlu0 %v2334, 96
      %v2581 = vpop.permute.xlu0 %2580
      %2582 = vrot.lane.b32.xlu0 %v2434, 96
      %v2583 = vpop.permute.xlu0 %2582
      %v2584 = vsel %vm542, %v2581, 0
      %v2586 = vsel %vm542, %v2583, 0
      %2588 = vmatpush.xpose.msra.mxu0 0.0
      %2589 = vmatpush.xpose.msra.mxu0 0.0
      %2590 = vmatpush.xpose.msra.mxu0 0.0
      %2591 = vmatpush.xpose.msra.mxu0 0.0
      %2592 = vmatpush.xpose.msra.mxu0 0.0
      %2593 = vmatpush.xpose.msra.mxu0 0.0
      %2594 = vmatpush.xpose.msra.mxu0 0.0
      %2595 = vmatpush.xpose.msra.mxu0 0.0
      %2596 = vmatpush.xpose.msra.mxu0 0.0
      %2597 = vmatpush.xpose.msra.mxu0 0.0
      %2598 = vmatpush.xpose.msra.mxu0 0.0
      %2599 = vmatpush.xpose.msra.mxu0 0.0
      %2600 = vmatpush.xpose.msra.mxu0 0.0
      %2601 = vmatpush.xpose.msra.mxu0 0.0
      %2602 = vmatpush.xpose.msra.mxu0 0.0
      %2603 = vmatpush.xpose.msra.mxu0 %v2586
      %2604 = vmatmul.f32.gmra.mxu0 %v2584
      %v2605 = vpop.f32.mrf.mxu0
      %v2606 = vadd.f32 0.0, %v2605
      %2607 = vdwg.mxu0
      %v2608 = vmul.f32 %v2606, 0.25
      %v2609 = vsel %vm1668, %v2608, -inf
      %2610 = vmax.xlane.f32.xlu0 %v2609
      %v2611 = vpop.xlane.xlu0 %2610
      %v2612 = vsub.f32 %v2608, %v2611
      %v2613 = vmul.f32 %v2612, 1.442695
      %v2614 = vpow.pop %v2613
      %v2615 = vsel %vm1668, %v2614, 0.0
      %2616 = vadd.xlane.f32.xlu0 %v2615
      %v2617 = vpop.xlane.xlu0 %2616
      %v2618 = vrcp.pop %v2617
      %v2619 = vmul.f32 %v2614, %v2618
      %2620 = vrot.lane.b32.xlu0 %v2434, 32
      %v2621 = vpop.permute.xlu0 %2620
      %v2624 = vsel %vm1668, %v2619, 0
      %2626 = vmatpush.msra.mxu0 0.0
      %2627 = vmatpush.msra.mxu0 0.0
      %2628 = vmatpush.msra.mxu0 0.0
      %2629 = vmatpush.msra.mxu0 0.0
      %2630 = vmatpush.msra.mxu0 0.0
      %2631 = vmatpush.msra.mxu0 0.0
      %2632 = vmatpush.msra.mxu0 0.0
      %2633 = vmatpush.msra.mxu0 0.0
      %2634 = vmatpush.msra.mxu0 0.0
      %2635 = vmatpush.msra.mxu0 0.0
      %2636 = vmatpush.msra.mxu0 0.0
      %2637 = vmatpush.msra.mxu0 0.0
      %2638 = vmatpush.msra.mxu0 0.0
      %2639 = vmatpush.msra.mxu0 0.0
      %2640 = vmatpush.msra.mxu0 0.0
      %2641 = vmatpush.msra.mxu0 %v2621
      %2642 = vmatmul.f32.gmra.mxu0 %v2624
      %v2643 = vpop.f32.mrf.mxu0
      %v2644 = vadd.f32 0.0, %v2643
      %2645 = vdwg.mxu0
      %2646 = vrot.lane.b32.xlu0 %v2334, 80
      %v2647 = vpop.permute.xlu0 %2646
      %2648 = vrot.lane.b32.xlu0 %v2434, 80
      %v2649 = vpop.permute.xlu0 %2648
      %v2650 = vsel %vm542, %v2647, 0
      %v2652 = vsel %vm542, %v2649, 0
      %2654 = vmatpush.xpose.msra.mxu0 0.0
      %2655 = vmatpush.xpose.msra.mxu0 0.0
      %2656 = vmatpush.xpose.msra.mxu0 0.0
      %2657 = vmatpush.xpose.msra.mxu0 0.0
      %2658 = vmatpush.xpose.msra.mxu0 0.0
      %2659 = vmatpush.xpose.msra.mxu0 0.0
      %2660 = vmatpush.xpose.msra.mxu0 0.0
      %2661 = vmatpush.xpose.msra.mxu0 0.0
      %2662 = vmatpush.xpose.msra.mxu0 0.0
      %2663 = vmatpush.xpose.msra.mxu0 0.0
      %2664 = vmatpush.xpose.msra.mxu0 0.0
      %2665 = vmatpush.xpose.msra.mxu0 0.0
      %2666 = vmatpush.xpose.msra.mxu0 0.0
      %2667 = vmatpush.xpose.msra.mxu0 0.0
      %2668 = vmatpush.xpose.msra.mxu0 0.0
      %2669 = vmatpush.xpose.msra.mxu0 %v2652
      %2670 = vmatmul.f32.gmra.mxu0 %v2650
      %v2671 = vpop.f32.mrf.mxu0
      %v2672 = vadd.f32 0.0, %v2671
      %2673 = vdwg.mxu0
      %v2674 = vmul.f32 %v2672, 0.25
      %v2675 = vsel %vm1668, %v2674, -inf
      %2676 = vmax.xlane.f32.xlu0 %v2675
      %v2677 = vpop.xlane.xlu0 %2676
      %v2678 = vsub.f32 %v2674, %v2677
      %v2679 = vmul.f32 %v2678, 1.442695
      %v2680 = vpow.pop %v2679
      %v2681 = vsel %vm1668, %v2680, 0.0
      %2682 = vadd.xlane.f32.xlu0 %v2681
      %v2683 = vpop.xlane.xlu0 %2682
      %v2684 = vrcp.pop %v2683
      %v2685 = vmul.f32 %v2680, %v2684
      %2686 = vrot.lane.b32.xlu0 %v2434, 16
      %v2687 = vpop.permute.xlu0 %2686
      %v2690 = vsel %vm1668, %v2685, 0
      %2692 = vmatpush.msra.mxu0 0.0
      %2693 = vmatpush.msra.mxu0 0.0
      %2694 = vmatpush.msra.mxu0 0.0
      %2695 = vmatpush.msra.mxu0 0.0
      %2696 = vmatpush.msra.mxu0 0.0
      %2697 = vmatpush.msra.mxu0 0.0
      %2698 = vmatpush.msra.mxu0 0.0
      %2699 = vmatpush.msra.mxu0 0.0
      %2700 = vmatpush.msra.mxu0 0.0
      %2701 = vmatpush.msra.mxu0 0.0
      %2702 = vmatpush.msra.mxu0 0.0
      %2703 = vmatpush.msra.mxu0 0.0
      %2704 = vmatpush.msra.mxu0 0.0
      %2705 = vmatpush.msra.mxu0 0.0
      %2706 = vmatpush.msra.mxu0 0.0
      %2707 = vmatpush.msra.mxu0 %v2687
      %2708 = vmatmul.f32.gmra.mxu0 %v2690
      %v2709 = vpop.f32.mrf.mxu0
      %v2710 = vadd.f32 0.0, %v2709
      %2711 = vdwg.mxu0
      %2713 = vrot.lane.b32.xlu0 %v2578, 16
      %v2714 = vpop.permute.xlu0 %2713
      %2717 = vrot.lane.b32.xlu0 %v2644, 32
      %v2718 = vpop.permute.xlu0 %2717
      %2721 = vrot.lane.b32.xlu0 %v2710, 48
      %v2722 = vpop.permute.xlu0 %2721
      %v2724 = vsel %vm542, %v2512, %v2714
      %v2725 = vsel %vm1915, %v2724, %v2718
      %v2726 = vsel %vm1917, %v2725, %v2722
      %v2728 = vsel %vm542, %v2337, 0
      %v2731 = vsel %vm542, %v2437, 0
      %2733 = vmatpush.xpose.msra.mxu0 0.0
      %2734 = vmatpush.xpose.msra.mxu0 0.0
      %2735 = vmatpush.xpose.msra.mxu0 0.0
      %2736 = vmatpush.xpose.msra.mxu0 0.0
      %2737 = vmatpush.xpose.msra.mxu0 0.0
      %2738 = vmatpush.xpose.msra.mxu0 0.0
      %2739 = vmatpush.xpose.msra.mxu0 0.0
      %2740 = vmatpush.xpose.msra.mxu0 0.0
      %2741 = vmatpush.xpose.msra.mxu0 0.0
      %2742 = vmatpush.xpose.msra.mxu0 0.0
      %2743 = vmatpush.xpose.msra.mxu0 0.0
      %2744 = vmatpush.xpose.msra.mxu0 0.0
      %2745 = vmatpush.xpose.msra.mxu0 0.0
      %2746 = vmatpush.xpose.msra.mxu0 0.0
      %2747 = vmatpush.xpose.msra.mxu0 0.0
      %2748 = vmatpush.xpose.msra.mxu0 %v2731
      %2749 = vmatmul.f32.gmra.mxu0 %v2728
      %v2750 = vpop.f32.mrf.mxu0
      %v2751 = vadd.f32 0.0, %v2750
      %2752 = vdwg.mxu0
      %v2753 = vmul.f32 %v2751, 0.25
      %v2754 = vsel %vm1668, %v2753, -inf
      %2755 = vmax.xlane.f32.xlu0 %v2754
      %v2756 = vpop.xlane.xlu0 %2755
      %v2757 = vsub.f32 %v2753, %v2756
      %v2758 = vmul.f32 %v2757, 1.442695
      %v2759 = vpow.pop %v2758
      %v2760 = vsel %vm1668, %v2759, 0.0
      %2761 = vadd.xlane.f32.xlu0 %v2760
      %v2762 = vpop.xlane.xlu0 %2761
      %v2763 = vrcp.pop %v2762
      %v2764 = vmul.f32 %v2759, %v2763
      %2765 = vrot.lane.b32.xlu0 %v2437, 64
      %v2766 = vpop.permute.xlu0 %2765
      %v2769 = vsel %vm1668, %v2764, 0
      %2771 = vmatpush.msra.mxu0 0.0
      %2772 = vmatpush.msra.mxu0 0.0
      %2773 = vmatpush.msra.mxu0 0.0
      %2774 = vmatpush.msra.mxu0 0.0
      %2775 = vmatpush.msra.mxu0 0.0
      %2776 = vmatpush.msra.mxu0 0.0
      %2777 = vmatpush.msra.mxu0 0.0
      %2778 = vmatpush.msra.mxu0 0.0
      %2779 = vmatpush.msra.mxu0 0.0
      %2780 = vmatpush.msra.mxu0 0.0
      %2781 = vmatpush.msra.mxu0 0.0
      %2782 = vmatpush.msra.mxu0 0.0
      %2783 = vmatpush.msra.mxu0 0.0
      %2784 = vmatpush.msra.mxu0 0.0
      %2785 = vmatpush.msra.mxu0 0.0
      %2786 = vmatpush.msra.mxu0 %v2766
      %2787 = vmatmul.f32.gmra.mxu0 %v2769
      %v2788 = vpop.f32.mrf.mxu0
      %v2789 = vadd.f32 0.0, %v2788
      %2790 = vdwg.mxu0
      %2791 = vrot.lane.b32.xlu0 %v2337, 112
      %v2792 = vpop.permute.xlu0 %2791
      %2793 = vrot.lane.b32.xlu0 %v2437, 112
      %v2794 = vpop.permute.xlu0 %2793
      %v2795 = vsel %vm542, %v2792, 0
      %v2797 = vsel %vm542, %v2794, 0
      %2799 = vmatpush.xpose.msra.mxu0 0.0
      %2800 = vmatpush.xpose.msra.mxu0 0.0
      %2801 = vmatpush.xpose.msra.mxu0 0.0
      %2802 = vmatpush.xpose.msra.mxu0 0.0
      %2803 = vmatpush.xpose.msra.mxu0 0.0
      %2804 = vmatpush.xpose.msra.mxu0 0.0
      %2805 = vmatpush.xpose.msra.mxu0 0.0
      %2806 = vmatpush.xpose.msra.mxu0 0.0
      %2807 = vmatpush.xpose.msra.mxu0 0.0
      %2808 = vmatpush.xpose.msra.mxu0 0.0
      %2809 = vmatpush.xpose.msra.mxu0 0.0
      %2810 = vmatpush.xpose.msra.mxu0 0.0
      %2811 = vmatpush.xpose.msra.mxu0 0.0
      %2812 = vmatpush.xpose.msra.mxu0 0.0
      %2813 = vmatpush.xpose.msra.mxu0 0.0
      %2814 = vmatpush.xpose.msra.mxu0 %v2797
      %2815 = vmatmul.f32.gmra.mxu0 %v2795
      %v2816 = vpop.f32.mrf.mxu0
      %v2817 = vadd.f32 0.0, %v2816
      %2818 = vdwg.mxu0
      %v2819 = vmul.f32 %v2817, 0.25
      %v2820 = vsel %vm1668, %v2819, -inf
      %2821 = vmax.xlane.f32.xlu0 %v2820
      %v2822 = vpop.xlane.xlu0 %2821
      %v2823 = vsub.f32 %v2819, %v2822
      %v2824 = vmul.f32 %v2823, 1.442695
      %v2825 = vpow.pop %v2824
      %v2826 = vsel %vm1668, %v2825, 0.0
      %2827 = vadd.xlane.f32.xlu0 %v2826
      %v2828 = vpop.xlane.xlu0 %2827
      %v2829 = vrcp.pop %v2828
      %v2830 = vmul.f32 %v2825, %v2829
      %2831 = vrot.lane.b32.xlu0 %v2437, 48
      %v2832 = vpop.permute.xlu0 %2831
      %v2835 = vsel %vm1668, %v2830, 0
      %2837 = vmatpush.msra.mxu0 0.0
      %2838 = vmatpush.msra.mxu0 0.0
      %2839 = vmatpush.msra.mxu0 0.0
      %2840 = vmatpush.msra.mxu0 0.0
      %2841 = vmatpush.msra.mxu0 0.0
      %2842 = vmatpush.msra.mxu0 0.0
      %2843 = vmatpush.msra.mxu0 0.0
      %2844 = vmatpush.msra.mxu0 0.0
      %2845 = vmatpush.msra.mxu0 0.0
      %2846 = vmatpush.msra.mxu0 0.0
      %2847 = vmatpush.msra.mxu0 0.0
      %2848 = vmatpush.msra.mxu0 0.0
      %2849 = vmatpush.msra.mxu0 0.0
      %2850 = vmatpush.msra.mxu0 0.0
      %2851 = vmatpush.msra.mxu0 0.0
      %2852 = vmatpush.msra.mxu0 %v2832
      %2853 = vmatmul.f32.gmra.mxu0 %v2835
      %v2854 = vpop.f32.mrf.mxu0
      %v2855 = vadd.f32 0.0, %v2854
      %2856 = vdwg.mxu0
      %2857 = vrot.lane.b32.xlu0 %v2337, 96
      %v2858 = vpop.permute.xlu0 %2857
      %2859 = vrot.lane.b32.xlu0 %v2437, 96
      %v2860 = vpop.permute.xlu0 %2859
      %v2861 = vsel %vm542, %v2858, 0
      %v2863 = vsel %vm542, %v2860, 0
      %2865 = vmatpush.xpose.msra.mxu0 0.0
      %2866 = vmatpush.xpose.msra.mxu0 0.0
      %2867 = vmatpush.xpose.msra.mxu0 0.0
      %2868 = vmatpush.xpose.msra.mxu0 0.0
      %2869 = vmatpush.xpose.msra.mxu0 0.0
      %2870 = vmatpush.xpose.msra.mxu0 0.0
      %2871 = vmatpush.xpose.msra.mxu0 0.0
      %2872 = vmatpush.xpose.msra.mxu0 0.0
      %2873 = vmatpush.xpose.msra.mxu0 0.0
      %2874 = vmatpush.xpose.msra.mxu0 0.0
      %2875 = vmatpush.xpose.msra.mxu0 0.0
      %2876 = vmatpush.xpose.msra.mxu0 0.0
      %2877 = vmatpush.xpose.msra.mxu0 0.0
      %2878 = vmatpush.xpose.msra.mxu0 0.0
      %2879 = vmatpush.xpose.msra.mxu0 0.0
      %2880 = vmatpush.xpose.msra.mxu0 %v2863
      %2881 = vmatmul.f32.gmra.mxu0 %v2861
      %v2882 = vpop.f32.mrf.mxu0
      %v2883 = vadd.f32 0.0, %v2882
      %2884 = vdwg.mxu0
      %v2885 = vmul.f32 %v2883, 0.25
      %v2886 = vsel %vm1668, %v2885, -inf
      %2887 = vmax.xlane.f32.xlu0 %v2886
      %v2888 = vpop.xlane.xlu0 %2887
      %v2889 = vsub.f32 %v2885, %v2888
      %v2890 = vmul.f32 %v2889, 1.442695
      %v2891 = vpow.pop %v2890
      %v2892 = vsel %vm1668, %v2891, 0.0
      %2893 = vadd.xlane.f32.xlu0 %v2892
      %v2894 = vpop.xlane.xlu0 %2893
      %v2895 = vrcp.pop %v2894
      %v2896 = vmul.f32 %v2891, %v2895
      %2897 = vrot.lane.b32.xlu0 %v2437, 32
      %v2898 = vpop.permute.xlu0 %2897
      %v2901 = vsel %vm1668, %v2896, 0
      %2903 = vmatpush.msra.mxu0 0.0
      %2904 = vmatpush.msra.mxu0 0.0
      %2905 = vmatpush.msra.mxu0 0.0
      %2906 = vmatpush.msra.mxu0 0.0
      %2907 = vmatpush.msra.mxu0 0.0
      %2908 = vmatpush.msra.mxu0 0.0
      %2909 = vmatpush.msra.mxu0 0.0
      %2910 = vmatpush.msra.mxu0 0.0
      %2911 = vmatpush.msra.mxu0 0.0
      %2912 = vmatpush.msra.mxu0 0.0
      %2913 = vmatpush.msra.mxu0 0.0
      %2914 = vmatpush.msra.mxu0 0.0
      %2915 = vmatpush.msra.mxu0 0.0
      %2916 = vmatpush.msra.mxu0 0.0
      %2917 = vmatpush.msra.mxu0 0.0
      %2918 = vmatpush.msra.mxu0 %v2898
      %2919 = vmatmul.f32.gmra.mxu0 %v2901
      %v2920 = vpop.f32.mrf.mxu0
      %v2921 = vadd.f32 0.0, %v2920
      %2922 = vdwg.mxu0
      %2923 = vrot.lane.b32.xlu0 %v2337, 80
      %v2924 = vpop.permute.xlu0 %2923
      %2925 = vrot.lane.b32.xlu0 %v2437, 80
      %v2926 = vpop.permute.xlu0 %2925
      %v2927 = vsel %vm542, %v2924, 0
      %v2929 = vsel %vm542, %v2926, 0
      %2931 = vmatpush.xpose.msra.mxu0 0.0
      %2932 = vmatpush.xpose.msra.mxu0 0.0
      %2933 = vmatpush.xpose.msra.mxu0 0.0
      %2934 = vmatpush.xpose.msra.mxu0 0.0
      %2935 = vmatpush.xpose.msra.mxu0 0.0
      %2936 = vmatpush.xpose.msra.mxu0 0.0
      %2937 = vmatpush.xpose.msra.mxu0 0.0
      %2938 = vmatpush.xpose.msra.mxu0 0.0
      %2939 = vmatpush.xpose.msra.mxu0 0.0
      %2940 = vmatpush.xpose.msra.mxu0 0.0
      %2941 = vmatpush.xpose.msra.mxu0 0.0
      %2942 = vmatpush.xpose.msra.mxu0 0.0
      %2943 = vmatpush.xpose.msra.mxu0 0.0
      %2944 = vmatpush.xpose.msra.mxu0 0.0
      %2945 = vmatpush.xpose.msra.mxu0 0.0
      %2946 = vmatpush.xpose.msra.mxu0 %v2929
      %2947 = vmatmul.f32.gmra.mxu0 %v2927
      %v2948 = vpop.f32.mrf.mxu0
      %v2949 = vadd.f32 0.0, %v2948
      %2950 = vdwg.mxu0
      %v2951 = vmul.f32 %v2949, 0.25
      %v2952 = vsel %vm1668, %v2951, -inf
      %2953 = vmax.xlane.f32.xlu0 %v2952
      %v2954 = vpop.xlane.xlu0 %2953
      %v2955 = vsub.f32 %v2951, %v2954
      %v2956 = vmul.f32 %v2955, 1.442695
      %v2957 = vpow.pop %v2956
      %v2958 = vsel %vm1668, %v2957, 0.0
      %2959 = vadd.xlane.f32.xlu0 %v2958
      %v2960 = vpop.xlane.xlu0 %2959
      %v2961 = vrcp.pop %v2960
      %v2962 = vmul.f32 %v2957, %v2961
      %2963 = vrot.lane.b32.xlu0 %v2437, 16
      %v2964 = vpop.permute.xlu0 %2963
      %v2967 = vsel %vm1668, %v2962, 0
      %2969 = vmatpush.msra.mxu0 0.0
      %2970 = vmatpush.msra.mxu0 0.0
      %2971 = vmatpush.msra.mxu0 0.0
      %2972 = vmatpush.msra.mxu0 0.0
      %2973 = vmatpush.msra.mxu0 0.0
      %2974 = vmatpush.msra.mxu0 0.0
      %2975 = vmatpush.msra.mxu0 0.0
      %2976 = vmatpush.msra.mxu0 0.0
      %2977 = vmatpush.msra.mxu0 0.0
      %2978 = vmatpush.msra.mxu0 0.0
      %2979 = vmatpush.msra.mxu0 0.0
      %2980 = vmatpush.msra.mxu0 0.0
      %2981 = vmatpush.msra.mxu0 0.0
      %2982 = vmatpush.msra.mxu0 0.0
      %2983 = vmatpush.msra.mxu0 0.0
      %2984 = vmatpush.msra.mxu0 %v2964
      %2985 = vmatmul.f32.gmra.mxu0 %v2967
      %v2986 = vpop.f32.mrf.mxu0
      %v2987 = vadd.f32 0.0, %v2986
      %2988 = vdwg.mxu0
      %2990 = vrot.lane.b32.xlu0 %v2855, 16
      %v2991 = vpop.permute.xlu0 %2990
      %2994 = vrot.lane.b32.xlu0 %v2921, 32
      %v2995 = vpop.permute.xlu0 %2994
      %2998 = vrot.lane.b32.xlu0 %v2987, 48
      %v2999 = vpop.permute.xlu0 %2998
      %v3001 = vsel %vm542, %v2789, %v2991
      %v3002 = vsel %vm1915, %v3001, %v2995
      %v3003 = vsel %vm1917, %v3002, %v2999
      %v3005 = vperm.slane %v2449, 0
      %v3008 = vsel %vm1479, %v2726, 0
      %v3011 = vsel %vm1479, %v3003, 0
      %3013 = vmatpush.msra.mxu0 0.0
      %3014 = vmatpush.msra.mxu0 0.0
      %3015 = vmatpush.msra.mxu0 0.0
      %3016 = vmatpush.msra.mxu0 0.0
      %3017 = vmatpush.msra.mxu0 0.0
      %3018 = vmatpush.msra.mxu0 0.0
      %3019 = vmatpush.msra.mxu0 0.0
      %3020 = vmatpush.msra.mxu0 0.0
      %3021 = vmatpush.msra.mxu0 %v2447
      %3022 = vmatpush.msra.mxu0 %v2446
      %3023 = vmatpush.msra.mxu0 %v2445
      %3024 = vmatpush.msra.mxu0 %v2444
      %3025 = vmatpush.msra.mxu0 %v2443
      %3026 = vmatpush.msra.mxu0 %v2442
      %3027 = vmatpush.msra.mxu0 %v2441
      %3028 = vmatpush.msra.mxu0 %v2440
      %3029 = vmatmul.f32.gmra.mxu0 %v3008
      %v3030 = vpop.f32.mrf.mxu0
      %v3031 = vadd.f32 %v3005, %v3030
      %3032 = vmatmul.f32.gmra.mxu0 %v3011
      %v3033 = vpop.f32.mrf.mxu0
      %v3034 = vadd.f32 %v3005, %v3033
      %3035 = vdwg.mxu0
      %v3036 = vadd.f32 %v2285, %v3031
      %v3037 = vadd.f32 %v2286, %v3034
      %s3038 = scalar_lea.vmem [#allocation28], %s1542
      %v3039 = vld [vmem:[%s3038] sm:$0x1]
      %s3040 = scalar_lea.vmem [#allocation29], %s1542
      %v3041 = vld [vmem:[%s3040] sm:$0x1]
      %v3042 = vsel %vm1479, %v3036, 0.0
      %3043 = vadd.xlane.f32.xlu0 %v3042
      %v3044 = vpop.xlane.xlu0 %3043
      %v3045 = vsel %vm1479, %v3037, 0.0
      %3046 = vadd.xlane.f32.xlu0 %v3045
      %v3047 = vpop.xlane.xlu0 %3046
      %v3048 = vmul.f32 %v3044, %v1492
      %v3049 = vmul.f32 %v3047, %v1492
      %v3050 = vsub.f32 %v3036, %v3048
      %v3051 = vsub.f32 %v3037, %v3049
      %v3052 = vmul.f32 %v3050, %v3050
      %v3053 = vmul.f32 %v3051, %v3051
      %v3054 = vsel %vm1479, %v3052, 0.0
      %3055 = vadd.xlane.f32.xlu0 %v3054
      %v3056 = vpop.xlane.xlu0 %3055
      %v3057 = vsel %vm1479, %v3053, 0.0
      %3058 = vadd.xlane.f32.xlu0 %v3057
      %v3059 = vpop.xlane.xlu0 %3058
      %v3060 = vmul.f32 %v3056, %v1492
      %v3061 = vmul.f32 %v3059, %v1492
      %v3062 = vadd.f32 %v3060, 1e-05
      %v3063 = vadd.f32 %v3061, 1e-05
      %v3064 = vrsqrt.pop %v3062
      %v3065 = vmul.f32 %v3064, %v3062
      %v3066 = vmul.f32 %v3065, %v3064
      %v3067 = vmul.f32 0.5, %v3066
      %v3068 = vsub.f32 1.5, %v3067
      %v3069 = vmul.f32 %v3064, %v3068
      %vm3070 = vweird.f32 %v3062
      %vm3071 = vweird.f32 %v3064
      %vm3072 = vmor %vm3070, %vm3071
      %v3073 = vsel %vm3072, %v3064, %v3069
      %v3074 = vrsqrt.pop %v3063
      %v3075 = vmul.f32 %v3074, %v3063
      %v3076 = vmul.f32 %v3075, %v3074
      %v3077 = vmul.f32 0.5, %v3076
      %v3078 = vsub.f32 1.5, %v3077
      %v3079 = vmul.f32 %v3074, %v3078
      %vm3080 = vweird.f32 %v3063
      %vm3081 = vweird.f32 %v3074
      %vm3082 = vmor %vm3080, %vm3081
      %v3083 = vsel %vm3082, %v3074, %v3079
      %v3084 = vmul.f32 %v3050, %v3073
      %v3085 = vmul.f32 %v3051, %v3083
      %v3087 = vperm.slane %v3039, 0
      %v3089 = vmul.f32 %v3084, %v3087
      %v3090 = vmul.f32 %v3085, %v3087
      %v3092 = vperm.slane %v3041, 0
      %v3094 = vadd.f32 %v3089, %v3092
      %v3095 = vadd.f32 %v3090, %v3092
      %s3096 = scalar_lea.vmem [#allocation31], %s1628
      %v3097 = vld [vmem:[%s3096] sm:$0xff]
      %v3098 = vld [vmem:[%s3096 + $0x8] sm:$0xff]
      %v3099 = vld [vmem:[%s3096 + $0x10] sm:$0xff]
      %v3100 = vld [vmem:[%s3096 + $0x18] sm:$0xff]
      %v3101 = vld [vmem:[%s3096 + $0x20] sm:$0xff]
      %v3102 = vld [vmem:[%s3096 + $0x28] sm:$0xff]
      %v3103 = vld [vmem:[%s3096 + $0x30] sm:$0xff]
      %v3104 = vld [vmem:[%s3096 + $0x38] sm:$0xff]
      %s3105 = scalar_lea.vmem [#allocation32], %s1542
      %v3106 = vld [vmem:[%s3105] sm:$0x1]
      %s3107 = smul.u32 %s1542, 128
      %s3108 = scalar_lea.vmem %s63, %s3107
      %v3109 = vld [vmem:[%s3108] sm:$0xff]
      %v3110 = vld [vmem:[%s3108 + $0x8] sm:$0xff]
      %v3111 = vld [vmem:[%s3108 + $0x10] sm:$0xff]
      %v3112 = vld [vmem:[%s3108 + $0x18] sm:$0xff]
      %v3113 = vld [vmem:[%s3108 + $0x20] sm:$0xff]
      %v3114 = vld [vmem:[%s3108 + $0x28] sm:$0xff]
      %v3115 = vld [vmem:[%s3108 + $0x30] sm:$0xff]
      %v3116 = vld [vmem:[%s3108 + $0x38] sm:$0xff]
      %v3117 = vld [vmem:[%s3108 + $0x40] sm:$0xff]
      %v3118 = vld [vmem:[%s3108 + $0x48] sm:$0xff]
      %v3119 = vld [vmem:[%s3108 + $0x50] sm:$0xff]
      %v3120 = vld [vmem:[%s3108 + $0x58] sm:$0xff]
      %v3121 = vld [vmem:[%s3108 + $0x60] sm:$0xff]
      %v3122 = vld [vmem:[%s3108 + $0x68] sm:$0xff]
      %v3123 = vld [vmem:[%s3108 + $0x70] sm:$0xff]
      %v3124 = vld [vmem:[%s3108 + $0x78] sm:$0xff]
      %s3125 = scalar_lea.vmem [#allocation34], %s1542
      %v3126 = vld [vmem:[%s3125] sm:$0x1]
      %v3128 = vperm.slane %v3106, 0
      %v3131 = vsel %vm1479, %v3094, 0
      %v3134 = vsel %vm1479, %v3095, 0
      %3136 = vmatpush.msra.mxu0 0.0
      %3137 = vmatpush.msra.mxu0 0.0
      %3138 = vmatpush.msra.mxu0 0.0
      %3139 = vmatpush.msra.mxu0 0.0
      %3140 = vmatpush.msra.mxu0 0.0
      %3141 = vmatpush.msra.mxu0 0.0
      %3142 = vmatpush.msra.mxu0 0.0
      %3143 = vmatpush.msra.mxu0 0.0
      %3144 = vmatpush.msra.mxu0 %v3104
      %3145 = vmatpush.msra.mxu0 %v3103
      %3146 = vmatpush.msra.mxu0 %v3102
      %3147 = vmatpush.msra.mxu0 %v3101
      %3148 = vmatpush.msra.mxu0 %v3100
      %3149 = vmatpush.msra.mxu0 %v3099
      %3150 = vmatpush.msra.mxu0 %v3098
      %3151 = vmatpush.msra.mxu0 %v3097
      %3152 = vmatmul.f32.gmra.mxu0 %v3131
      %v3153 = vpop.f32.mrf.mxu0
      %v3154 = vadd.f32 %v3128, %v3153
      %3155 = vmatmul.f32.gmra.mxu0 %v3134
      %v3156 = vpop.f32.mrf.mxu0
      %v3157 = vadd.f32 %v3128, %v3156
      %3158 = vdwg.mxu0
      %v3159 = vmax.f32 %v3154, 0.0
      %v3160 = vmax.f32 %v3157, 0.0
      %v3162 = vperm.slane %v3126, 0
      %3164 = vmatpush.msra.mxu0 %v3124
      %3165 = vmatpush.msra.mxu0 %v3123
      %3166 = vmatpush.msra.mxu0 %v3122
      %3167 = vmatpush.msra.mxu0 %v3121
      %3168 = vmatpush.msra.mxu0 %v3120
      %3169 = vmatpush.msra.mxu0 %v3119
      %3170 = vmatpush.msra.mxu0 %v3118
      %3171 = vmatpush.msra.mxu0 %v3117
      %3172 = vmatpush.msra.mxu0 %v3116
      %3173 = vmatpush.msra.mxu0 %v3115
      %3174 = vmatpush.msra.mxu0 %v3114
      %3175 = vmatpush.msra.mxu0 %v3113
      %3176 = vmatpush.msra.mxu0 %v3112
      %3177 = vmatpush.msra.mxu0 %v3111
      %3178 = vmatpush.msra.mxu0 %v3110
      %3179 = vmatpush.msra.mxu0 %v3109
      %3180 = vmatmul.f32.gmra.mxu0 %v3159
      %v3181 = vpop.f32.mrf.mxu0
      %v3182 = vadd.f32 %v3162, %v3181
      %3183 = vmatmul.f32.gmra.mxu0 %v3160
      %v3184 = vpop.f32.mrf.mxu0
      %v3185 = vadd.f32 %v3162, %v3184
      %3186 = vdwg.mxu0
      %v3187 = vadd.f32 %v3094, %v3182
      %v3188 = vadd.f32 %v3095, %v3185
      %s3189 = scalar_lea.vmem [#allocation35], %s1542
      %v3190 = vld [vmem:[%s3189] sm:$0x1]
      %s3191 = scalar_lea.vmem [#allocation37], %s1542
      %v3192 = vld [vmem:[%s3191] sm:$0x1]
      %v3193 = vsel %vm1479, %v3187, 0.0
      %3194 = vadd.xlane.f32.xlu0 %v3193
      %v3195 = vpop.xlane.xlu0 %3194
      %v3196 = vsel %vm1479, %v3188, 0.0
      %3197 = vadd.xlane.f32.xlu0 %v3196
      %v3198 = vpop.xlane.xlu0 %3197
      %v3199 = vmul.f32 %v3195, %v1492
      %v3200 = vmul.f32 %v3198, %v1492
      %v3201 = vsub.f32 %v3187, %v3199
      %v3202 = vsub.f32 %v3188, %v3200
      %v3203 = vmul.f32 %v3201, %v3201
      %v3204 = vmul.f32 %v3202, %v3202
      %v3205 = vsel %vm1479, %v3203, 0.0
      %3206 = vadd.xlane.f32.xlu0 %v3205
      %v3207 = vpop.xlane.xlu0 %3206
      %v3208 = vsel %vm1479, %v3204, 0.0
      %3209 = vadd.xlane.f32.xlu0 %v3208
      %v3210 = vpop.xlane.xlu0 %3209
      %v3211 = vmul.f32 %v3207, %v1492
      %v3212 = vmul.f32 %v3210, %v1492
      %v3213 = vadd.f32 %v3211, 1e-05
      %v3214 = vadd.f32 %v3212, 1e-05
      %v3215 = vrsqrt.pop %v3213
      %v3216 = vmul.f32 %v3215, %v3213
      %v3217 = vmul.f32 %v3216, %v3215
      %v3218 = vmul.f32 0.5, %v3217
      %v3219 = vsub.f32 1.5, %v3218
      %v3220 = vmul.f32 %v3215, %v3219
      %vm3221 = vweird.f32 %v3213
      %vm3222 = vweird.f32 %v3215
      %vm3223 = vmor %vm3221, %vm3222
      %v3224 = vsel %vm3223, %v3215, %v3220
      %v3225 = vrsqrt.pop %v3214
      %v3226 = vmul.f32 %v3225, %v3214
      %v3227 = vmul.f32 %v3226, %v3225
      %v3228 = vmul.f32 0.5, %v3227
      %v3229 = vsub.f32 1.5, %v3228
      %v3230 = vmul.f32 %v3225, %v3229
      %vm3231 = vweird.f32 %v3214
      %vm3232 = vweird.f32 %v3225
      %vm3233 = vmor %vm3231, %vm3232
      %v3234 = vsel %vm3233, %v3225, %v3230
      %v3235 = vmul.f32 %v3201, %v3224
      %v3236 = vmul.f32 %v3202, %v3234
      %v3238 = vperm.slane %v3190, 0
      %v3240 = vmul.f32 %v3235, %v3238
      %v3241 = vmul.f32 %v3236, %v3238
      %v3243 = vperm.slane %v3192, 0
      %v3245 = vadd.f32 %v3240, %v3243
      %v3246 = vadd.f32 %v3241, %v3243
    $region265: #{forward.1} parent=1 // loop_footer
      %s1546 = sadd.s32 1, %s1542
    $region266: #{forward.1} parent=1 // loop_footer_branch
      %1541 = sbr.rel target = $region262
    $region267: #{forward.1} parent=1 // loop_exit
      _
    %v3247 = vld [vmem:[%s71] sm:$0x1]
    %v3248 = vld [vmem:[#allocation38] sm:$0x1]
    %v3249 = vsel %vm1479, %v1547, 0.0
    %3250 = vadd.xlane.f32.xlu0 %v3249
    %v3251 = vpop.xlane.xlu0 %3250
    %v3252 = vsel %vm1479, %v1548, 0.0
    %3253 = vadd.xlane.f32.xlu0 %v3252
    %v3254 = vpop.xlane.xlu0 %3253
    %v3255 = vmul.f32 %v3251, %v1492
    %v3256 = vmul.f32 %v3254, %v1492
    %v3257 = vsub.f32 %v1547, %v3255
    %v3258 = vsub.f32 %v1548, %v3256
    %v3259 = vmul.f32 %v3257, %v3257
    %v3260 = vmul.f32 %v3258, %v3258
    %v3261 = vsel %vm1479, %v3259, 0.0
    %3262 = vadd.xlane.f32.xlu0 %v3261
    %v3263 = vpop.xlane.xlu0 %3262
    %v3264 = vsel %vm1479, %v3260, 0.0
    %3265 = vadd.xlane.f32.xlu0 %v3264
    %v3266 = vpop.xlane.xlu0 %3265
    %v3267 = vmul.f32 %v3263, %v1492
    %v3268 = vmul.f32 %v3266, %v1492
    %v3269 = vadd.f32 %v3267, 1e-05
    %v3270 = vadd.f32 %v3268, 1e-05
    %v3271 = vrsqrt.pop %v3269
    %v3272 = vmul.f32 %v3271, %v3269
    %v3273 = vmul.f32 %v3272, %v3271
    %v3274 = vmul.f32 0.5, %v3273
    %v3275 = vsub.f32 1.5, %v3274
    %v3276 = vmul.f32 %v3271, %v3275
    %vm3277 = vweird.f32 %v3269
    %vm3278 = vweird.f32 %v3271
    %vm3279 = vmor %vm3277, %vm3278
    %v3280 = vsel %vm3279, %v3271, %v3276
    %v3281 = vrsqrt.pop %v3270
    %v3282 = vmul.f32 %v3281, %v3270
    %v3283 = vmul.f32 %v3282, %v3281
    %v3284 = vmul.f32 0.5, %v3283
    %v3285 = vsub.f32 1.5, %v3284
    %v3286 = vmul.f32 %v3281, %v3285
    %vm3287 = vweird.f32 %v3270
    %vm3288 = vweird.f32 %v3281
    %vm3289 = vmor %vm3287, %vm3288
    %v3290 = vsel %vm3289, %v3281, %v3286
    %v3291 = vmul.f32 %v3257, %v3280
    %v3292 = vmul.f32 %v3258, %v3290
    %v3294 = vperm.slane %v3247, 0
    %v3296 = vmul.f32 %v3291, %v3294
    %v3297 = vmul.f32 %v3292, %v3294
    %v3299 = vperm.slane %v3248, 0
    %v3301 = vadd.f32 %v3296, %v3299
    %v3302 = vadd.f32 %v3297, %v3299
    %v3304 = vrot.slane %v3301, 7
    %v3307 = vrot.slane %v3302, 6
    %vm3309 = vcmask 1040384
    %v3310 = vsel %vm3309, %v3304, %v3307
    %v3311 = vld [vmem:[%s75] sm:$0xff]
    %v3312 = vld [vmem:[%s75 + $0x8] sm:$0xff]
    %v3313 = vld [vmem:[%s75 + $0x10] sm:$0xff]
    %v3314 = vld [vmem:[%s75 + $0x18] sm:$0xff]
    %v3315 = vld [vmem:[%s75 + $0x20] sm:$0xff]
    %v3316 = vld [vmem:[%s75 + $0x28] sm:$0xff]
    %v3317 = vld [vmem:[%s75 + $0x30] sm:$0xff]
    %v3318 = vld [vmem:[%s75 + $0x38] sm:$0xff]
    %v3319 = vld [vmem:[%s77] sm:$0x1]
    %v3321 = vperm.slane %v3319, 0
    %v3324 = vsel %vm1479, %v3310, 0
    %3326 = vmatpush.msra.mxu0 0.0
    %3327 = vmatpush.msra.mxu0 0.0
    %3328 = vmatpush.msra.mxu0 0.0
    %3329 = vmatpush.msra.mxu0 0.0
    %3330 = vmatpush.msra.mxu0 0.0
    %3331 = vmatpush.msra.mxu0 0.0
    %3332 = vmatpush.msra.mxu0 0.0
    %3333 = vmatpush.msra.mxu0 0.0
    %3334 = vmatpush.msra.mxu0 %v3318
    %3335 = vmatpush.msra.mxu0 %v3317
    %3336 = vmatpush.msra.mxu0 %v3316
    %3337 = vmatpush.msra.mxu0 %v3315
    %3338 = vmatpush.msra.mxu0 %v3314
    %3339 = vmatpush.msra.mxu0 %v3313
    %3340 = vmatpush.msra.mxu0 %v3312
    %3341 = vmatpush.msra.mxu0 %v3311
    %3342 = vmatmul.f32.gmra.mxu0 %v3324
    %v3343 = vpop.f32.mrf.mxu0
    %v3344 = vadd.f32 %v3321, %v3343
    %3345 = vdwg.mxu0
    %vm3346 = vcmask 25600
    %3347 = vst.msk [vmem:[#allocation40] sm:$0x3] %vm3346, %v3344
    // Predicated region
    $region268: #{forward.1} parent=1 // pred_check
      _
    $region269: #{forward.1} parent=1 // pred_check_branch
      %3349 = sbr.rel (0) target = $region271
    $region270: #{forward.1} parent=1 // pred_region
      %3351 = vsyncadd [#allocation4], 0
      %s3353 = sshll.u32 [#allocation40], 4
      %s3354 = int_to_ptr.vmem [resolvable:$true] %s3353
      %s3355 = sshll.u32 %s79, 4
      %s3356 = int_to_ptr.hbm [resolvable:$true] %s3355
      %3358 = dma.vmem_to_hbm [thread:$0]  %s3354, 32, %s3356, [#allocation4]
    $region271: #{forward.1} parent=1 // pred_fallthru
      _
    // Predicated region
    $region272: #{forward.1} parent=1 // pred_check
      _
    $region273: #{forward.1} parent=1 // pred_check_branch
      %3360 = sbr.rel (0) target = $region275
    $region274: #{forward.1} parent=1 // pred_region
      %3362 = dma.done [#allocation4], 32
    $region275: #{forward.1} parent=1 // pred_fallthru
      _
    %3363 = vsyncpa [#allocation3], 1
    %3364 = vsyncpa [#allocation6], 1
    %3365 = vsyncpa [#allocation9], 1
    %3366 = vsyncpa [#allocation12], 1
    %3367 = vsyncpa [#allocation15], 1
    %3368 = vsyncpa [#allocation18], 1
    %3369 = vsyncpa [#allocation21], 1
    %3370 = vsyncpa [#allocation24], 1
    %3371 = vsyncpa [#allocation27], 1
    %3372 = vsyncpa [#allocation30], 1
    %3373 = vsyncpa [#allocation33], 1
    %3374 = vsyncpa [#allocation36], 1
    %3375 = vsyncpa [#allocation39], 1
    %3376 = vsyncpa [#allocation4], 1

</llo_original>
